<compile_context>
chip_gen: v7x
topology: tpu7x:2x2x1
jax: 0.10.0
libtpu: 0.0.40
codegen_flags: <defaults>
</compile_context>

<pallas_src>
import functools
import inspect

import jax
import jax.numpy as jnp
from jax import lax
from jax.experimental import pallas as pl
from jax.experimental.pallas import tpu as pltpu

_EPS = 1.1920928955078125e-07     # torch.finfo(float32).eps (nn.RMSNorm eps=None default)
_SQRT2_INV = 0.7071067811865476
_LANE = 128


def _single_buffer_supported():
    """pipeline_mode=pl.Buffered(1) lets grid-invariant weights be single-buffered."""
    if not hasattr(pl, "Buffered"):
        return False
    try:
        return "pipeline_mode" in inspect.signature(pl.BlockSpec).parameters
    except (TypeError, ValueError):
        return False


_SINGLE_BUFFER_WEIGHTS_OK = _single_buffer_supported()


def _gelu(v, use_tanh):
    if use_tanh:
        # tanh-approx GELU runs on the EUP slot (otherwise idle) — opt-in only, since
        # torch.nn.GELU() default is the exact erf form.
        return jax.nn.gelu(v, approximate=True)
    # torch.nn.GELU() default (approximate='none'): 0.5*x*(1+erf(x/sqrt(2))).
    return 0.5 * v * (1.0 + lax.erf(v * _SQRT2_INV))


def _inverted_residual_kernel(block_batch, seq_len, lane_pad, add_residual,
                              use_tanh_gelu, mm_precision,
                              x_ref, w1_ref, n1_ref, dw_ref, n2_ref,
                              w2_ref, n3_ref, o_ref):
    cexp = w1_ref.shape[0]
    cout = w2_ref.shape[0]
    lp = x_ref.shape[-1]                       # lane-padded sequence length (mult of 128)

    w1 = w1_ref[...]
    n1 = n1_ref[...]
    dw = dw_ref[...]
    n2 = n2_ref[...]
    w2 = w2_ref[...]
    n3 = n3_ref[...]                           # LayerScale gamma already folded in

    w_prev = dw[:, 0:1]                        # depthwise taps, (Cexp, 1)
    w_mid = dw[:, 1:2]
    w_next = dw[:, 2:3]

    # Lane index / masks built ONCE at (1, Lp); broadcast inside jnp.where.
    lane = lax.broadcasted_iota(jnp.int32, (1, lp), 1)
    if lane_pad:
        # Rolled-in lanes come from the (all-zero) padding region, so the two boundary
        # selects are unnecessary; only keep the z-padding mask so RMSNorm sums stay exact.
        pad_mask = lane >= seq_len
    else:
        first_mask = lane == 0
        last_mask = lane == seq_len - 1

    inv_n_exp = 1.0 / float(cexp * seq_len)    # RMSNorm mean over the *real* (C, L) extent
    inv_n_out = 1.0 / float(cout * seq_len)

    def sample(b):
        x = x_ref[b]                           # (Cin, Lp); lane padding is exactly zero

        # ---- pw_exp: 1x1 conv == plain 2-D matmul on the MXU ----
        y = jnp.dot(w1, x, preferred_element_type=jnp.float32,
                    precision=mm_precision)                       # (Cexp, Lp)
        y = y * lax.rsqrt(jnp.sum(y * y) * inv_n_exp + _EPS) * n1
        y = _gelu(y, use_tanh_gelu)

        # ---- dw_mid: depthwise conv k=3, pad=1, shifts via lane rolls (XLU) ----
        left = pltpu.roll(y, 1, axis=1)                           # left[l]  = y[l-1]
        right = pltpu.roll(y, lp - 1, axis=1)                     # right[l] = y[l+1]
        if not lane_pad:
            left = jnp.where(first_mask, 0.0, left)
            right = jnp.where(last_mask, 0.0, right)
        z = w_mid * y + w_prev * left + w_next * right
        if lane_pad:
            z = jnp.where(pad_mask, 0.0, z)                       # keep lane padding zero
        z = z * lax.rsqrt(jnp.sum(z * z) * inv_n_exp + _EPS) * n2
        z = _gelu(z, use_tanh_gelu)

        # ---- pw_proj: 1x1 conv + RMSNorm (gamma folded into n3, no activation) ----
        p = jnp.dot(w2, z, preferred_element_type=jnp.float32,
                    precision=mm_precision)                       # (Cout, Lp)
        p = p * lax.rsqrt(jnp.sum(p * p) * inv_n_out + _EPS) * n3

        if add_residual:                                          # static: in_dim == out_dim
            p = p + x
        o_ref[b] = p

    if block_batch <= 2:
        for b in range(block_batch):                              # tiny tile: straight-line
            sample(b)
    else:
        # Bounded live ranges: fori_loop with unroll=2 lets one sample's cross-lane
        # reductions overlap the next sample's matmuls without exploding vreg pressure.
        def body(b, carry):
            sample(b)
            return carry
        lax.fori_loop(0, block_batch, body, None, unroll=2)


def _vmem_budget_and_min_steps():
    """(vmem budget bytes, min grid steps) from the actual chip.

    v7x-like (<=64 MiB VMEM, 2 TensorCores): keep >=2 grid steps so the parallel batch
    axis shards across both cores, leave headroom under the 64 MiB physical VMEM.
    v5e/v6e (128 MiB, single TC): extra grid steps are pure overhead, use ~80% of VMEM.
    Conservative (v7x-like) fallback if the query is unavailable.
    """
    vmem_cap = 64 * 1024 * 1024
    try:
        vmem_cap = int(pltpu.get_tpu_info().vmem_capacity_bytes)
    except Exception:
        pass
    if vmem_cap <= 64 * 1024 * 1024:
        return max(vmem_cap - 12 * 1024 * 1024, 16 * 1024 * 1024), 2
    return int(vmem_cap * 0.8), 1


def _pick_block_batch(batch, cin, cexp, cout, lane_len, single_buffer_weights):
    """Largest per-step batch tile whose FULL resident set fits the per-chip budget."""
    budget, min_steps = _vmem_budget_and_min_steps()
    wbuf = 1 if single_buffer_weights else 2
    # Grid-invariant residents: RMSNorm weights (the big ones), conv weights, dw taps.
    resident = 4 * wbuf * ((2 * cexp + cout) * lane_len
                           + cexp * cin + cout * cexp + 3 * cexp)
    # Per-sample I/O: x + out blocks, double-buffered by the pipeline.
    per_sample_io = 2 * 4 * lane_len * (cin + cout)
    # Live (Cexp, Lp) f32 intermediates, bounded by the unroll=2 loop (not * Bt).
    live_intermediates = 2 * 3 * 4 * cexp * lane_len

    best = 1
    for bt in range(1, min(batch, 16) + 1):
        if batch % bt:
            continue
        steps = batch // bt
        if batch >= min_steps and steps < min_steps:
            continue
        if resident + live_intermediates + bt * per_sample_io <= budget:
            best = bt
    # On two-TC chips prefer an even step count so both cores get equal work.
    if min_steps == 2 and batch // best > 1 and (batch // best) % 2:
        for bt in range(best, 0, -1):
            if batch % bt == 0 and (batch // bt) % 2 == 0:
                best = bt
                break
    return best, budget


def inverted_residual_1d(x, params, *, use_tanh_gelu=False, fast_matmul=False):
    """x: (B, Cin, L) float32 -> (B, Cout, L) float32 (matches InvertedResidual1D.forward)."""
    B, Cin, L = x.shape
    Cexp = params["w1"].shape[0]
    Cout = params["w2"].shape[0]
    add_residual = (Cin == Cout)

    # Lane-dense sequence axis: pad L up to a multiple of 128. Padded lanes stay exactly
    # zero through the pipeline and the RMSNorm mean uses the real L, so semantics are
    # unchanged; the output is sliced back afterwards.
    Lp = ((L + _LANE - 1) // _LANE) * _LANE
    pad = Lp - L

    # Fold LayerScale gamma into the last RMSNorm weight: one fewer (Cout, Lp) VPU
    # multiply per sample and one fewer input DMA; numerically equivalent in fp32.
    n3g = params["n3"] * params["gamma"]

    if pad:
        x_p = jnp.pad(x, ((0, 0), (0, 0), (0, pad)))
        n1 = jnp.pad(params["n1"], ((0, 0), (0, pad)))
        n2 = jnp.pad(params["n2"], ((0, 0), (0, pad)))
        n3 = jnp.pad(n3g, ((0, 0), (0, pad)))
    else:
        x_p, n1, n2, n3 = x, params["n1"], params["n2"], n3g

    single_buf = _SINGLE_BUFFER_WEIGHTS_OK
    Bt, budget = _pick_block_batch(B, Cin, Cexp, Cout, Lp, single_buf)
    grid = (B // Bt,)

    # HIGHEST keeps f32 Conv1d parity with PyTorch; `fast_matmul` trades it for bf16 MXU
    # throughput on v6e/v7x when the shape is matmul-bound.
    mm_precision = None if fast_matmul else lax.Precision.HIGHEST
    kernel = functools.partial(_inverted_residual_kernel, Bt, L, pad > 0,
                               add_residual, use_tanh_gelu, mm_precision)

    # Advisory cost estimate so XLA schedules the custom call sensibly.
    flops = int(2 * B * Lp * (Cexp * Cin + Cout * Cexp)
                + 12 * B * Cexp * Lp + 5 * B * Cout * Lp)
    transcendentals = int(2 * B * Cexp * Lp + 3 * B)
    bytes_accessed = int(4 * (B * Cin * Lp + B * Cout * Lp + Cexp * Cin + Cout * Cexp
                              + 2 * Cexp * Lp + Cout * Lp + 3 * Cexp))

    def run(single_buffer_weights):
        def wspec(shape):
            idx = lambda b: (0,) * len(shape)
            if single_buffer_weights:
                # Constant index map -> single-buffer to halve the weights' VMEM footprint.
                return pl.BlockSpec(shape, idx, pipeline_mode=pl.Buffered(1))
            return pl.BlockSpec(shape, idx)

        return pl.pallas_call(
            kernel,
            out_shape=jax.ShapeDtypeStruct((B, Cout, Lp), jnp.float32),
            grid=grid,
            in_specs=[
                pl.BlockSpec((Bt, Cin, Lp), lambda b: (b, 0, 0)),   # x, per-step batch tile
                wspec((Cexp, Cin)),                                 # pw_exp weight
                wspec((Cexp, Lp)),                                  # RMSNorm1 weight (padded)
                wspec((Cexp, 3)),                                   # depthwise weight (C, 3)
                wspec((Cexp, Lp)),                                  # RMSNorm2 weight (padded)
                wspec((Cout, Cexp)),                                # pw_proj weight
                wspec((Cout, Lp)),                                  # RMSNorm3 * gamma (padded)
            ],
            out_specs=pl.BlockSpec((Bt, Cout, Lp), lambda b: (b, 0, 0)),
            compiler_params=pltpu.CompilerParams(
                dimension_semantics=("parallel",),
                vmem_limit_bytes=int(budget),
            ),
            cost_estimate=pl.CostEstimate(
                flops=flops,
                transcendentals=transcendentals,
                bytes_accessed=bytes_accessed,
            ),
        )(x_p, params["w1"], n1, params["dw"], n2, params["w2"], n3)

    if single_buf:
        try:
            out = run(True)
        except Exception:       # pipeline_mode not honored on this jax/libtpu combo
            out = run(False)
    else:
        out = run(False)

    return out[:, :, :L] if pad else out


def _reference(x, params):
    """Plain-JAX reference mirroring the PyTorch forward, for verification."""
    def rmsnorm(v, w):
        ms = jnp.mean(v * v, axis=(-2, -1), keepdims=True)
        return v * lax.rsqrt(ms + _EPS) * w

    gelu = lambda v: 0.5 * v * (1.0 + lax.erf(v * _SQRT2_INV))
    hp = lax.Precision.HIGHEST
    y = jnp.einsum("ec,bcl->bel", params["w1"], x, precision=hp)
    y = gelu(rmsnorm(y, params["n1"]))
    yp = jnp.pad(y, ((0, 0), (0, 0), (1, 1)))
    z = (params["dw"][:, 0:1] * yp[:, :, :-2]
         + params["dw"][:, 1:2] * yp[:, :, 1:-1]
         + params["dw"][:, 2:3] * yp[:, :, 2:])
    z = gelu(rmsnorm(z, params["n2"]))
    p = jnp.einsum("oe,bel->bol", params["w2"], z, precision=hp)
    p = rmsnorm(p, params["n3"])
    p = p * params["gamma"][None]
    if x.shape[1] == p.shape[1]:
        p = p + x
    return p


def _make_params(key, in_dim, out_dim, seq_len, exp_ratio):
    exp_dim = int(in_dim * exp_ratio)
    k = jax.random.split(key, 7)
    return {
        # Conv weights (PyTorch Conv1d kernel_size=1 / depthwise k=3 weights squeezed)
        "w1": 0.1 * jax.random.normal(k[0], (exp_dim, in_dim), jnp.float32),
        "dw": 0.1 * jax.random.normal(k[1], (exp_dim, 3), jnp.float32),
        "w2": 0.1 * jax.random.normal(k[2], (out_dim, exp_dim), jnp.float32),
        # RMSNorm weights: shape = normalized_shape (C, L); perturbed from the torch
        # default (ones) so the elementwise-weight path is actually exercised.
        "n1": 1.0 + 0.05 * jax.random.normal(k[3], (exp_dim, seq_len), jnp.float32),
        "n2": 1.0 + 0.05 * jax.random.normal(k[4], (exp_dim, seq_len), jnp.float32),
        "n3": 1.0 + 0.05 * jax.random.normal(k[5], (out_dim, seq_len), jnp.float32),
        # LayerScale1D gamma stored as (out_dim, 1); scaled up from 1e-5 so that a
        # broadcast bug would be visible above test tolerance.
        "gamma": 0.5 + 0.1 * jax.random.normal(k[6], (out_dim, 1), jnp.float32),
    }


if __name__ == "__main__":
    key = jax.random.PRNGKey(0)
    k_main = jax.random.split(key, 6)

    # Config 1: in_dim == out_dim (residual path active), L not a lane multiple.
    B, in_dim, out_dim, seq_len, exp_ratio = 2, 4, 4, 16, 4
    x = jax.random.normal(k_main[0], (B, in_dim, seq_len), jnp.float32)
    params = _make_params(k_main[1], in_dim, out_dim, seq_len, exp_ratio)
    out = jax.block_until_ready(inverted_residual_1d(x, params))
    ref = _reference(x, params)
    assert out.shape == (B, out_dim, seq_len)
    assert jnp.allclose(out, ref, rtol=1e-4, atol=1e-5), float(jnp.max(jnp.abs(out - ref)))

    # Config 2: in_dim != out_dim (no residual), odd batch.
    B2, in2, out2, L2, r2 = 3, 4, 8, 16, 4
    x2 = jax.random.normal(k_main[2], (B2, in2, L2), jnp.float32)
    params2 = _make_params(k_main[3], in2, out2, L2, r2)
    out2_v = jax.block_until_ready(inverted_residual_1d(x2, params2))
    ref2 = _reference(x2, params2)
    assert out2_v.shape == (B2, out2, L2)
    assert jnp.allclose(out2_v, ref2, rtol=1e-4, atol=1e-5), float(jnp.max(jnp.abs(out2_v - ref2)))

    # Config 3: L is an exact lane multiple (exercises the boundary-mask path), batch 4.
    B3, in3, out3, L3, r3 = 4, 4, 4, 128, 2
    x3 = jax.random.normal(k_main[4], (B3, in3, L3), jnp.float32)
    params3 = _make_params(k_main[5], in3, out3, L3, r3)
    out3_v = jax.block_until_ready(inverted_residual_1d(x3, params3))
    ref3 = _reference(x3, params3)
    assert out3_v.shape == (B3, out3, L3)
    assert jnp.allclose(out3_v, ref3, rtol=1e-4, atol=1e-5), float(jnp.max(jnp.abs(out3_v - ref3)))

    print("KERNEL_OK")
</pallas_src>

<mosaic_0001>
module attributes {stable_mosaic.version = 11 : i64} {
  func.func @_inverted_residual_kernel(%arg0: i32, %arg1: memref<1x4x128xf32, #tpu.memory_space<vmem>>, %arg2: memref<16x4xf32, #tpu.memory_space<vmem>>, %arg3: memref<16x128xf32, #tpu.memory_space<vmem>>, %arg4: memref<16x3xf32, #tpu.memory_space<vmem>>, %arg5: memref<16x128xf32, #tpu.memory_space<vmem>>, %arg6: memref<4x16xf32, #tpu.memory_space<vmem>>, %arg7: memref<4x128xf32, #tpu.memory_space<vmem>>, %arg8: memref<1x4x128xf32, #tpu.memory_space<vmem>>) attributes {dimension_semantics = [#tpu.dimension_semantics<parallel>], iteration_bounds = array<i64: 2>, scalar_prefetch = 0 : i64, scratch_operands = 0 : i64, tpu.core_type = #tpu.core_type<tc>, window_params = [{transform_indices = @transform_0, window_bounds = array<i64: 1, 4, 128>}, {pipeline_mode = #tpu.pipeline_mode<synchronous>, transform_indices = @transform_1, window_bounds = array<i64: 16, 4>}, {pipeline_mode = #tpu.pipeline_mode<synchronous>, transform_indices = @transform_2, window_bounds = array<i64: 16, 128>}, {pipeline_mode = #tpu.pipeline_mode<synchronous>, transform_indices = @transform_3, window_bounds = array<i64: 16, 3>}, {pipeline_mode = #tpu.pipeline_mode<synchronous>, transform_indices = @transform_4, window_bounds = array<i64: 16, 128>}, {pipeline_mode = #tpu.pipeline_mode<synchronous>, transform_indices = @transform_5, window_bounds = array<i64: 4, 16>}, {pipeline_mode = #tpu.pipeline_mode<synchronous>, transform_indices = @transform_6, window_bounds = array<i64: 4, 128>}, {transform_indices = @transform_7, window_bounds = array<i64: 1, 4, 128>}]} {
    %c0 = arith.constant 0 : index
    %c0_0 = arith.constant 0 : index
    %0 = vector.load %arg2[%c0, %c0_0] : memref<16x4xf32, #tpu.memory_space<vmem>>, vector<16x4xf32>
    %c0_1 = arith.constant 0 : index
    %c0_2 = arith.constant 0 : index
    %1 = vector.load %arg3[%c0_1, %c0_2] : memref<16x128xf32, #tpu.memory_space<vmem>>, vector<16x128xf32>
    %c0_3 = arith.constant 0 : index
    %c0_4 = arith.constant 0 : index
    %2 = vector.load %arg4[%c0_3, %c0_4] : memref<16x3xf32, #tpu.memory_space<vmem>>, vector<16x3xf32>
    %c0_5 = arith.constant 0 : index
    %c0_6 = arith.constant 0 : index
    %3 = vector.load %arg5[%c0_5, %c0_6] : memref<16x128xf32, #tpu.memory_space<vmem>>, vector<16x128xf32>
    %c0_7 = arith.constant 0 : index
    %c0_8 = arith.constant 0 : index
    %4 = vector.load %arg6[%c0_7, %c0_8] : memref<4x16xf32, #tpu.memory_space<vmem>>, vector<4x16xf32>
    %c0_9 = arith.constant 0 : index
    %c0_10 = arith.constant 0 : index
    %5 = vector.load %arg7[%c0_9, %c0_10] : memref<4x128xf32, #tpu.memory_space<vmem>>, vector<4x128xf32>
    %6 = vector.extract_strided_slice %2 {offsets = [0, 0], sizes = [16, 1], strides = [1, 1]} : vector<16x3xf32> to vector<16x1xf32>
    %7 = vector.extract_strided_slice %2 {offsets = [0, 1], sizes = [16, 1], strides = [1, 1]} : vector<16x3xf32> to vector<16x1xf32>
    %8 = vector.extract_strided_slice %2 {offsets = [0, 2], sizes = [16, 1], strides = [1, 1]} : vector<16x3xf32> to vector<16x1xf32>
    %9 = tpu.iota {dimensions = array<i32: 1>} : vector<1x128xi32>
    %c16_i32 = arith.constant 16 : i32
    %10 = vector.broadcast %c16_i32 : i32 to vector<1x128xi32>
    %11 = arith.cmpi sge, %9, %10 : vector<1x128xi32>
    %c0_11 = arith.constant 0 : index
    %c0_12 = arith.constant 0 : index
    %c0_13 = arith.constant 0 : index
    %12 = vector.load %arg1[%c0_11, %c0_12, %c0_13] : memref<1x4x128xf32, #tpu.memory_space<vmem>>, vector<1x4x128xf32>
    %13 = vector.shape_cast %12 : vector<1x4x128xf32> to vector<4x128xf32>
    %cst = arith.constant dense<0.000000e+00> : vector<16x128xf32>
    %14 = tpu.matmul %0, %13, %cst {dimension_numbers = #tpu.dot_dimension_numbers<[1], [0], [0], [1], [0, 0, 1, 1], [], []>, precision = #tpu.contract_precision<fp32>} : vector<16x4xf32>, vector<4x128xf32>, vector<16x128xf32> -> vector<16x128xf32>
    %15 = arith.mulf %14, %14 : vector<16x128xf32>
    %16 = vector.shape_cast %15 : vector<16x128xf32> to vector<1x16x128xf32>
    %cst_14 = arith.constant dense<0.000000e+00> : vector<1xf32>
    %17 = vector.multi_reduction <add>, %16, %cst_14 [1, 2] : vector<1x16x128xf32> to vector<1xf32>
    %18 = vector.shape_cast %17 : vector<1xf32> to vector<1x1x1xf32>
    %19 = vector.extract %18[0, 0, 0] : f32 from vector<1x1x1xf32>
    %cst_15 = arith.constant 3.906250e-03 : f32
    %20 = arith.mulf %19, %cst_15 : f32
    %cst_16 = arith.constant 1.1920929E-7 : f32
    %21 = arith.addf %20, %cst_16 : f32
    %22 = math.rsqrt %21 : f32
    %23 = vector.broadcast %22 : f32 to vector<16x128xf32>
    %24 = arith.mulf %14, %23 : vector<16x128xf32>
    %25 = arith.mulf %24, %1 : vector<16x128xf32>
    %cst_17 = arith.constant 5.000000e-01 : f32
    %26 = vector.broadcast %cst_17 : f32 to vector<16x128xf32>
    %27 = arith.mulf %26, %25 : vector<16x128xf32>
    %cst_18 = arith.constant 0.707106769 : f32
    %28 = vector.broadcast %cst_18 : f32 to vector<16x128xf32>
    %29 = arith.mulf %25, %28 : vector<16x128xf32>
    %30 = math.erf %29 : vector<16x128xf32>
    %cst_19 = arith.constant 1.000000e+00 : f32
    %31 = vector.broadcast %cst_19 : f32 to vector<16x128xf32>
    %32 = arith.addf %31, %30 : vector<16x128xf32>
    %33 = arith.mulf %27, %32 : vector<16x128xf32>
    %c1_i32 = arith.constant 1 : i32
    %34 = tpu.dynamic_rotate %33 by %c1_i32 dim 1 : vector<16x128xf32>, i32 -> vector<16x128xf32>
    %c127_i32 = arith.constant 127 : i32
    %35 = tpu.dynamic_rotate %33 by %c127_i32 dim 1 : vector<16x128xf32>, i32 -> vector<16x128xf32>
    %36 = vector.broadcast %7 : vector<16x1xf32> to vector<16x128xf32>
    %37 = arith.mulf %36, %33 : vector<16x128xf32>
    %38 = vector.broadcast %6 : vector<16x1xf32> to vector<16x128xf32>
    %39 = arith.mulf %38, %34 : vector<16x128xf32>
    %40 = arith.addf %37, %39 : vector<16x128xf32>
    %41 = vector.broadcast %8 : vector<16x1xf32> to vector<16x128xf32>
    %42 = arith.mulf %41, %35 : vector<16x128xf32>
    %43 = arith.addf %40, %42 : vector<16x128xf32>
    %cst_20 = arith.constant 0.000000e+00 : f32
    %44 = vector.shape_cast %11 : vector<1x128xi1> to vector<1x128xi1>
    %45 = vector.broadcast %44 : vector<1x128xi1> to vector<16x128xi1>
    %46 = vector.broadcast %cst_20 : f32 to vector<16x128xf32>
    %47 = arith.select %45, %46, %43 : vector<16x128xi1>, vector<16x128xf32>
    %48 = arith.mulf %47, %47 : vector<16x128xf32>
    %49 = vector.shape_cast %48 : vector<16x128xf32> to vector<1x16x128xf32>
    %cst_21 = arith.constant dense<0.000000e+00> : vector<1xf32>
    %50 = vector.multi_reduction <add>, %49, %cst_21 [1, 2] : vector<1x16x128xf32> to vector<1xf32>
    %51 = vector.shape_cast %50 : vector<1xf32> to vector<1x1x1xf32>
    %52 = vector.extract %51[0, 0, 0] : f32 from vector<1x1x1xf32>
    %cst_22 = arith.constant 3.906250e-03 : f32
    %53 = arith.mulf %52, %cst_22 : f32
    %cst_23 = arith.constant 1.1920929E-7 : f32
    %54 = arith.addf %53, %cst_23 : f32
    %55 = math.rsqrt %54 : f32
    %56 = vector.broadcast %55 : f32 to vector<16x128xf32>
    %57 = arith.mulf %47, %56 : vector<16x128xf32>
    %58 = arith.mulf %57, %3 : vector<16x128xf32>
    %cst_24 = arith.constant 5.000000e-01 : f32
    %59 = vector.broadcast %cst_24 : f32 to vector<16x128xf32>
    %60 = arith.mulf %59, %58 : vector<16x128xf32>
    %cst_25 = arith.constant 0.707106769 : f32
    %61 = vector.broadcast %cst_25 : f32 to vector<16x128xf32>
    %62 = arith.mulf %58, %61 : vector<16x128xf32>
    %63 = math.erf %62 : vector<16x128xf32>
    %cst_26 = arith.constant 1.000000e+00 : f32
    %64 = vector.broadcast %cst_26 : f32 to vector<16x128xf32>
    %65 = arith.addf %64, %63 : vector<16x128xf32>
    %66 = arith.mulf %60, %65 : vector<16x128xf32>
    %cst_27 = arith.constant dense<0.000000e+00> : vector<4x128xf32>
    %67 = tpu.matmul %4, %66, %cst_27 {dimension_numbers = #tpu.dot_dimension_numbers<[1], [0], [0], [1], [0, 0, 1, 1], [], []>, precision = #tpu.contract_precision<fp32>} : vector<4x16xf32>, vector<16x128xf32>, vector<4x128xf32> -> vector<4x128xf32>
    %68 = arith.mulf %67, %67 : vector<4x128xf32>
    %69 = vector.shape_cast %68 : vector<4x128xf32> to vector<1x4x128xf32>
    %cst_28 = arith.constant dense<0.000000e+00> : vector<1xf32>
    %70 = vector.multi_reduction <add>, %69, %cst_28 [1, 2] : vector<1x4x128xf32> to vector<1xf32>
    %71 = vector.shape_cast %70 : vector<1xf32> to vector<1x1x1xf32>
    %72 = vector.extract %71[0, 0, 0] : f32 from vector<1x1x1xf32>
    %cst_29 = arith.constant 1.562500e-02 : f32
    %73 = arith.mulf %72, %cst_29 : f32
    %cst_30 = arith.constant 1.1920929E-7 : f32
    %74 = arith.addf %73, %cst_30 : f32
    %75 = math.rsqrt %74 : f32
    %76 = vector.broadcast %75 : f32 to vector<4x128xf32>
    %77 = arith.mulf %67, %76 : vector<4x128xf32>
    %78 = arith.mulf %77, %5 : vector<4x128xf32>
    %79 = arith.addf %78, %13 : vector<4x128xf32>
    %c0_31 = arith.constant 0 : index
    %c0_32 = arith.constant 0 : index
    %c0_33 = arith.constant 0 : index
    %80 = vector.load %arg8[%c0_31, %c0_32, %c0_33] : memref<1x4x128xf32, #tpu.memory_space<vmem>>, vector<1x4x128xf32>
    %81 = vector.shape_cast %80 : vector<1x4x128xf32> to vector<4x128xf32>
    %82 = vector.shape_cast %79 : vector<4x128xf32> to vector<1x4x128xf32>
    tpu.vector_store %arg8[%c0_31, %c0_32, %c0_33], %82 {strides = array<i32>} : memref<1x4x128xf32, #tpu.memory_space<vmem>>, vector<1x4x128xf32>,
    return
  }
  func.func @transform_0(%arg0: i32) -> (i32, i32, i32) {
    %c0_i32 = arith.constant 0 : i32
    %c0_i32_0 = arith.constant 0 : i32
    %c0_i32_1 = arith.constant 0 : i32
    return %arg0, %c0_i32, %c0_i32_0 : i32, i32, i32
  }
  func.func @transform_1(%arg0: i32) -> (i32, i32) {
    %c0_i32 = arith.constant 0 : i32
    %c0_i32_0 = arith.constant 0 : i32
    %c0_i32_1 = arith.constant 0 : i32
    return %c0_i32, %c0_i32_0 : i32, i32
  }
  func.func @transform_2(%arg0: i32) -> (i32, i32) {
    %c0_i32 = arith.constant 0 : i32
    %c0_i32_0 = arith.constant 0 : i32
    %c0_i32_1 = arith.constant 0 : i32
    return %c0_i32, %c0_i32_0 : i32, i32
  }
  func.func @transform_3(%arg0: i32) -> (i32, i32) {
    %c0_i32 = arith.constant 0 : i32
    %c0_i32_0 = arith.constant 0 : i32
    %c0_i32_1 = arith.constant 0 : i32
    return %c0_i32, %c0_i32_0 : i32, i32
  }
  func.func @transform_4(%arg0: i32) -> (i32, i32) {
    %c0_i32 = arith.constant 0 : i32
    %c0_i32_0 = arith.constant 0 : i32
    %c0_i32_1 = arith.constant 0 : i32
    return %c0_i32, %c0_i32_0 : i32, i32
  }
  func.func @transform_5(%arg0: i32) -> (i32, i32) {
    %c0_i32 = arith.constant 0 : i32
    %c0_i32_0 = arith.constant 0 : i32
    %c0_i32_1 = arith.constant 0 : i32
    return %c0_i32, %c0_i32_0 : i32, i32
  }
  func.func @transform_6(%arg0: i32) -> (i32, i32) {
    %c0_i32 = arith.constant 0 : i32
    %c0_i32_0 = arith.constant 0 : i32
    %c0_i32_1 = arith.constant 0 : i32
    return %c0_i32, %c0_i32_0 : i32, i32
  }
  func.func @transform_7(%arg0: i32) -> (i32, i32, i32) {
    %c0_i32 = arith.constant 0 : i32
    %c0_i32_0 = arith.constant 0 : i32
    %c0_i32_1 = arith.constant 0 : i32
    return %arg0, %c0_i32, %c0_i32_0 : i32, i32, i32
  }
}

module attributes {stable_mosaic.version = 11 : i64} {
  func.func @_inverted_residual_kernel(%arg0: i32, %arg1: memref<1x4x128xf32, #tpu.memory_space<vmem>>, %arg2: memref<16x4xf32, #tpu.memory_space<vmem>>, %arg3: memref<16x128xf32, #tpu.memory_space<vmem>>, %arg4: memref<16x3xf32, #tpu.memory_space<vmem>>, %arg5: memref<16x128xf32, #tpu.memory_space<vmem>>, %arg6: memref<4x16xf32, #tpu.memory_space<vmem>>, %arg7: memref<4x128xf32, #tpu.memory_space<vmem>>, %arg8: memref<1x4x128xf32, #tpu.memory_space<vmem>>) attributes {dimension_semantics = [#tpu.dimension_semantics<parallel>], iteration_bounds = array<i64: 2>, scalar_prefetch = 0 : i64, scratch_operands = 0 : i64, tpu.core_type = #tpu.core_type<tc>, window_params = [{transform_indices = @transform_0, window_bounds = array<i64: 1, 4, 128>}, {pipeline_mode = #tpu.pipeline_mode<synchronous>, transform_indices = @transform_1, window_bounds = array<i64: 16, 4>}, {pipeline_mode = #tpu.pipeline_mode<synchronous>, transform_indices = @transform_2, window_bounds = array<i64: 16, 128>}, {pipeline_mode = #tpu.pipeline_mode<synchronous>, transform_indices = @transform_3, window_bounds = array<i64: 16, 3>}, {pipeline_mode = #tpu.pipeline_mode<synchronous>, transform_indices = @transform_4, window_bounds = array<i64: 16, 128>}, {pipeline_mode = #tpu.pipeline_mode<synchronous>, transform_indices = @transform_5, window_bounds = array<i64: 4, 16>}, {pipeline_mode = #tpu.pipeline_mode<synchronous>, transform_indices = @transform_6, window_bounds = array<i64: 4, 128>}, {transform_indices = @transform_7, window_bounds = array<i64: 1, 4, 128>}]} {
    %c0 = arith.constant 0 : index
    %c0_0 = arith.constant 0 : index
    %0 = vector.load %arg2[%c0, %c0_0] : memref<16x4xf32, #tpu.memory_space<vmem>>, vector<16x4xf32>
    %c0_1 = arith.constant 0 : index
    %c0_2 = arith.constant 0 : index
    %1 = vector.load %arg3[%c0_1, %c0_2] : memref<16x128xf32, #tpu.memory_space<vmem>>, vector<16x128xf32>
    %c0_3 = arith.constant 0 : index
    %c0_4 = arith.constant 0 : index
    %2 = vector.load %arg4[%c0_3, %c0_4] : memref<16x3xf32, #tpu.memory_space<vmem>>, vector<16x3xf32>
    %c0_5 = arith.constant 0 : index
    %c0_6 = arith.constant 0 : index
    %3 = vector.load %arg5[%c0_5, %c0_6] : memref<16x128xf32, #tpu.memory_space<vmem>>, vector<16x128xf32>
    %c0_7 = arith.constant 0 : index
    %c0_8 = arith.constant 0 : index
    %4 = vector.load %arg6[%c0_7, %c0_8] : memref<4x16xf32, #tpu.memory_space<vmem>>, vector<4x16xf32>
    %c0_9 = arith.constant 0 : index
    %c0_10 = arith.constant 0 : index
    %5 = vector.load %arg7[%c0_9, %c0_10] : memref<4x128xf32, #tpu.memory_space<vmem>>, vector<4x128xf32>
    %6 = vector.extract_strided_slice %2 {offsets = [0, 0], sizes = [16, 1], strides = [1, 1]} : vector<16x3xf32> to vector<16x1xf32>
    %7 = vector.extract_strided_slice %2 {offsets = [0, 1], sizes = [16, 1], strides = [1, 1]} : vector<16x3xf32> to vector<16x1xf32>
    %8 = vector.extract_strided_slice %2 {offsets = [0, 2], sizes = [16, 1], strides = [1, 1]} : vector<16x3xf32> to vector<16x1xf32>
    %9 = tpu.iota {dimensions = array<i32: 1>} : vector<1x128xi32>
    %c16_i32 = arith.constant 16 : i32
    %10 = vector.broadcast %c16_i32 : i32 to vector<1x128xi32>
    %11 = arith.cmpi sge, %9, %10 : vector<1x128xi32>
    %c0_11 = arith.constant 0 : index
    %c0_12 = arith.constant 0 : index
    %c0_13 = arith.constant 0 : index
    %12 = vector.load %arg1[%c0_11, %c0_12, %c0_13] : memref<1x4x128xf32, #tpu.memory_space<vmem>>, vector<1x4x128xf32>
    %13 = vector.shape_cast %12 : vector<1x4x128xf32> to vector<4x128xf32>
    %cst = arith.constant dense<0.000000e+00> : vector<16x128xf32>
    %14 = tpu.matmul %0, %13, %cst {dimension_numbers = #tpu.dot_dimension_numbers<[1], [0], [0], [1], [0, 0, 1, 1], [], []>, precision = #tpu.contract_precision<fp32>} : vector<16x4xf32>, vector<4x128xf32>, vector<16x128xf32> -> vector<16x128xf32>
    %15 = arith.mulf %14, %14 : vector<16x128xf32>
    %16 = vector.shape_cast %15 : vector<16x128xf32> to vector<1x16x128xf32>
    %cst_14 = arith.constant dense<0.000000e+00> : vector<1xf32>
    %17 = vector.multi_reduction <add>, %16, %cst_14 [1, 2] : vector<1x16x128xf32> to vector<1xf32>
    %18 = vector.shape_cast %17 : vector<1xf32> to vector<1x1x1xf32>
    %19 = vector.extract %18[0, 0, 0] : f32 from vector<1x1x1xf32>
    %cst_15 = arith.constant 3.906250e-03 : f32
    %20 = arith.mulf %19, %cst_15 : f32
    %cst_16 = arith.constant 1.1920929E-7 : f32
    %21 = arith.addf %20, %cst_16 : f32
    %22 = math.rsqrt %21 : f32
    %23 = vector.broadcast %22 : f32 to vector<16x128xf32>
    %24 = arith.mulf %14, %23 : vector<16x128xf32>
    %25 = arith.mulf %24, %1 : vector<16x128xf32>
    %cst_17 = arith.constant 5.000000e-01 : f32
    %26 = vector.broadcast %cst_17 : f32 to vector<16x128xf32>
    %27 = arith.mulf %26, %25 : vector<16x128xf32>
    %cst_18 = arith.constant 0.707106769 : f32
    %28 = vector.broadcast %cst_18 : f32 to vector<16x128xf32>
    %29 = arith.mulf %25, %28 : vector<16x128xf32>
    %30 = math.erf %29 : vector<16x128xf32>
    %cst_19 = arith.constant 1.000000e+00 : f32
    %31 = vector.broadcast %cst_19 : f32 to vector<16x128xf32>
    %32 = arith.addf %31, %30 : vector<16x128xf32>
    %33 = arith.mulf %27, %32 : vector<16x128xf32>
    %c1_i32 = arith.constant 1 : i32
    %34 = tpu.dynamic_rotate %33 by %c1_i32 dim 1 : vector<16x128xf32>, i32 -> vector<16x128xf32>
    %c127_i32 = arith.constant 127 : i32
    %35 = tpu.dynamic_rotate %33 by %c127_i32 dim 1 : vector<16x128xf32>, i32 -> vector<16x128xf32>
    %36 = vector.broadcast %7 : vector<16x1xf32> to vector<16x128xf32>
    %37 = arith.mulf %36, %33 : vector<16x128xf32>
    %38 = vector.broadcast %6 : vector<16x1xf32> to vector<16x128xf32>
    %39 = arith.mulf %38, %34 : vector<16x128xf32>
    %40 = arith.addf %37, %39 : vector<16x128xf32>
    %41 = vector.broadcast %8 : vector<16x1xf32> to vector<16x128xf32>
    %42 = arith.mulf %41, %35 : vector<16x128xf32>
    %43 = arith.addf %40, %42 : vector<16x128xf32>
    %cst_20 = arith.constant 0.000000e+00 : f32
    %44 = vector.shape_cast %11 : vector<1x128xi1> to vector<1x128xi1>
    %45 = vector.broadcast %44 : vector<1x128xi1> to vector<16x128xi1>
    %46 = vector.broadcast %cst_20 : f32 to vector<16x128xf32>
    %47 = arith.select %45, %46, %43 : vector<16x128xi1>, vector<16x128xf32>
    %48 = arith.mulf %47, %47 : vector<16x128xf32>
    %49 = vector.shape_cast %48 : vector<16x128xf32> to vector<1x16x128xf32>
    %cst_21 = arith.constant dense<0.000000e+00> : vector<1xf32>
    %50 = vector.multi_reduction <add>, %49, %cst_21 [1, 2] : vector<1x16x128xf32> to vector<1xf32>
    %51 = vector.shape_cast %50 : vector<1xf32> to vector<1x1x1xf32>
    %52 = vector.extract %51[0, 0, 0] : f32 from vector<1x1x1xf32>
    %cst_22 = arith.constant 3.906250e-03 : f32
    %53 = arith.mulf %52, %cst_22 : f32
    %cst_23 = arith.constant 1.1920929E-7 : f32
    %54 = arith.addf %53, %cst_23 : f32
    %55 = math.rsqrt %54 : f32
    %56 = vector.broadcast %55 : f32 to vector<16x128xf32>
    %57 = arith.mulf %47, %56 : vector<16x128xf32>
    %58 = arith.mulf %57, %3 : vector<16x128xf32>
    %cst_24 = arith.constant 5.000000e-01 : f32
    %59 = vector.broadcast %cst_24 : f32 to vector<16x128xf32>
    %60 = arith.mulf %59, %58 : vector<16x128xf32>
    %cst_25 = arith.constant 0.707106769 : f32
    %61 = vector.broadcast %cst_25 : f32 to vector<16x128xf32>
    %62 = arith.mulf %58, %61 : vector<16x128xf32>
    %63 = math.erf %62 : vector<16x128xf32>
    %cst_26 = arith.constant 1.000000e+00 : f32
    %64 = vector.broadcast %cst_26 : f32 to vector<16x128xf32>
    %65 = arith.addf %64, %63 : vector<16x128xf32>
    %66 = arith.mulf %60, %65 : vector<16x128xf32>
    %cst_27 = arith.constant dense<0.000000e+00> : vector<4x128xf32>
    %67 = tpu.matmul %4, %66, %cst_27 {dimension_numbers = #tpu.dot_dimension_numbers<[1], [0], [0], [1], [0, 0, 1, 1], [], []>, precision = #tpu.contract_precision<fp32>} : vector<4x16xf32>, vector<16x128xf32>, vector<4x128xf32> -> vector<4x128xf32>
    %68 = arith.mulf %67, %67 : vector<4x128xf32>
    %69 = vector.shape_cast %68 : vector<4x128xf32> to vector<1x4x128xf32>
    %cst_28 = arith.constant dense<0.000000e+00> : vector<1xf32>
    %70 = vector.multi_reduction <add>, %69, %cst_28 [1, 2] : vector<1x4x128xf32> to vector<1xf32>
    %71 = vector.shape_cast %70 : vector<1xf32> to vector<1x1x1xf32>
    %72 = vector.extract %71[0, 0, 0] : f32 from vector<1x1x1xf32>
    %cst_29 = arith.constant 1.562500e-02 : f32
    %73 = arith.mulf %72, %cst_29 : f32
    %cst_30 = arith.constant 1.1920929E-7 : f32
    %74 = arith.addf %73, %cst_30 : f32
    %75 = math.rsqrt %74 : f32
    %76 = vector.broadcast %75 : f32 to vector<4x128xf32>
    %77 = arith.mulf %67, %76 : vector<4x128xf32>
    %78 = arith.mulf %77, %5 : vector<4x128xf32>
    %79 = arith.addf %78, %13 : vector<4x128xf32>
    %c0_31 = arith.constant 0 : index
    %c0_32 = arith.constant 0 : index
    %c0_33 = arith.constant 0 : index
    %80 = vector.load %arg8[%c0_31, %c0_32, %c0_33] : memref<1x4x128xf32, #tpu.memory_space<vmem>>, vector<1x4x128xf32>
    %81 = vector.shape_cast %80 : vector<1x4x128xf32> to vector<4x128xf32>
    %82 = vector.shape_cast %79 : vector<4x128xf32> to vector<1x4x128xf32>
    tpu.vector_store %arg8[%c0_31, %c0_32, %c0_33], %82 {strides = array<i32>} : memref<1x4x128xf32, #tpu.memory_space<vmem>>, vector<1x4x128xf32>,
    return
  }
  func.func @transform_0(%arg0: i32) -> (i32, i32, i32) {
    %c0_i32 = arith.constant 0 : i32
    %c0_i32_0 = arith.constant 0 : i32
    %c0_i32_1 = arith.constant 0 : i32
    return %arg0, %c0_i32, %c0_i32_0 : i32, i32, i32
  }
  func.func @transform_1(%arg0: i32) -> (i32, i32) {
    %c0_i32 = arith.constant 0 : i32
    %c0_i32_0 = arith.constant 0 : i32
    %c0_i32_1 = arith.constant 0 : i32
    return %c0_i32, %c0_i32_0 : i32, i32
  }
  func.func @transform_2(%arg0: i32) -> (i32, i32) {
    %c0_i32 = arith.constant 0 : i32
    %c0_i32_0 = arith.constant 0 : i32
    %c0_i32_1 = arith.constant 0 : i32
    return %c0_i32, %c0_i32_0 : i32, i32
  }
  func.func @transform_3(%arg0: i32) -> (i32, i32) {
    %c0_i32 = arith.constant 0 : i32
    %c0_i32_0 = arith.constant 0 : i32
    %c0_i32_1 = arith.constant 0 : i32
    return %c0_i32, %c0_i32_0 : i32, i32
  }
  func.func @transform_4(%arg0: i32) -> (i32, i32) {
    %c0_i32 = arith.constant 0 : i32
    %c0_i32_0 = arith.constant 0 : i32
    %c0_i32_1 = arith.constant 0 : i32
    return %c0_i32, %c0_i32_0 : i32, i32
  }
  func.func @transform_5(%arg0: i32) -> (i32, i32) {
    %c0_i32 = arith.constant 0 : i32
    %c0_i32_0 = arith.constant 0 : i32
    %c0_i32_1 = arith.constant 0 : i32
    return %c0_i32, %c0_i32_0 : i32, i32
  }
  func.func @transform_6(%arg0: i32) -> (i32, i32) {
    %c0_i32 = arith.constant 0 : i32
    %c0_i32_0 = arith.constant 0 : i32
    %c0_i32_1 = arith.constant 0 : i32
    return %c0_i32, %c0_i32_0 : i32, i32
  }
  func.func @transform_7(%arg0: i32) -> (i32, i32, i32) {
    %c0_i32 = arith.constant 0 : i32
    %c0_i32_0 = arith.constant 0 : i32
    %c0_i32_1 = arith.constant 0 : i32
    return %arg0, %c0_i32, %c0_i32_0 : i32, i32, i32
  }
}

</mosaic_0001>

<llo_original>
// kernel: tpu_custom_call.1
$region0: #{tpu_custom_call.1}
  #allocation0 [shape = 'u32[]', space=smem, size = 0x4, offset = 0x4, fixed_abs, tag = 'smem constant byte address 0x4 - core index']
  #allocation1 [shape = 'u32[144,128]{1,0:T(1,128)}', space=vmem, size = 0x12000, scoped, tag = 'internal scratch']
  %s0 = inlined_call_operand.vmem [shape: f32[2,4,128], index: 0, kind: input, shape index: {}]
  %s1 = inlined_call_operand.vmem [shape: f32[16,4], index: 1, kind: input, shape index: {}]
  %s2 = inlined_call_operand.vmem [shape: f32[16,128], index: 2, kind: input, shape index: {}]
  %s3 = inlined_call_operand.vmem [shape: f32[16,3], index: 3, kind: input, shape index: {}]
  %s4 = inlined_call_operand.vmem [shape: f32[16,128], index: 4, kind: input, shape index: {}]
  %s5 = inlined_call_operand.vmem [shape: f32[4,16], index: 5, kind: input, shape index: {}]
  %s6 = inlined_call_operand.vmem [shape: f32[4,128], index: 6, kind: input, shape index: {}]
  %s7 = inlined_call_operand.hbm [shape: f32[2,4,128], index: 7, kind: output, shape index: {}]
  %s8 = sld [smem:[#allocation0]]
  $region61: #{tpu_custom_call.1} parent=0
    _
  %s10 = ssub.s32 1, %s8
  %s11 = scalar_select 0, %s10, %s8
  $region1: #{tpu_custom_call.1} parent=0
    #allocation2 [shape = 'u8[4096]{0}', space=vmem, size = 0x1000, scoped, tag = 'output window, operand 0']
    #allocation3 [shape = 's32[2]{0}', space=sflag, size = 0x8, scoped, tag = 'scoped memory for tpu_custom_call.1']
    %12 = vsyncpa [#allocation3], 0
    %s13 = scalar_lea.sflag [#allocation3], 1
    %14 = vsyncpa %s13, 0
    loop: start=0, step=1, limit=4
    $region2: #{tpu_custom_call.1} parent=1 // loop_pre_header
      _
    $region3: #{tpu_custom_call.1} parent=1 // loop_header
      %s16 = sphi 0, %s20
      %p17 = scmp.ge.s32.totalorder %s16, 4
      %s26 = sphi 0, %s28
      %s29 = sphi 0, %s26
      %s30 = sphi 0, %s29
      %s46 = sphi 0, %s30
      %s50 = sphi 0, %s50
      %s52 = sphi 0, %s50
      %s53 = sphi 0, %s52
      %s67 = sphi 0, %s53
      %s71 = sphi 0, %s71
      %s73 = sphi 0, %s71
      %s74 = sphi 0, %s73
      %s88 = sphi 0, %s74
      %s92 = sphi 0, %s92
      %s94 = sphi 0, %s92
      %s95 = sphi 0, %s94
      %s109 = sphi 0, %s95
      %s113 = sphi 0, %s113
      %s115 = sphi 0, %s113
      %s116 = sphi 0, %s115
      %s130 = sphi 0, %s116
      %s134 = sphi 0, %s134
      %s136 = sphi 0, %s134
      %s137 = sphi 0, %s136
      %s151 = sphi 0, %s137
      %s155 = sphi 0, %s155
      %s157 = sphi 0, %s155
      %s158 = sphi 0, %s157
      %s172 = sphi 0, %s158
      %s178 = sphi 0, %s180
      %s181 = sphi 0, %s178
      %s182 = sphi 0, %s181
      %s198 = sphi 0, %s182
    $region4: #{tpu_custom_call.1} parent=1 // loop_header_branch
      %19 = sbr.rel (%p17) target = $region8
    $region5: #{tpu_custom_call.1} parent=1 // loop_body
      %s21 = ssub.s32 %s16, 1
      %s22 = ssub.s32 %s16, 2
      %s23 = sadd.s32 %s16, 1
      %s24 = ssub.s32 %s16, %s23
      %p25 = scmp.eq.s32.totalorder %s24, 0
      %s27 = sadd.s32 %s26, 1
      %s28 = scalar_select %p25, %s26, %s27
      %p31 = pneg %p25
      %p32 = scmp.eq.s32.totalorder %s16, 1
      %p33 = por %p31, %p32
      %p34 = scmp.ne.s32.totalorder %s26, %s29
      %p35 = scmp.eq.s32.totalorder %s16, 0
      %p36 = por %p34, %p35
      %p37 = scmp.ne.s32.totalorder %s26, %s29
      %p38 = scmp.eq.s32.totalorder %s21, 1
      %p39 = por %p37, %p38
      %p40 = scmp.ne.s32.totalorder %s29, %s30
      %p41 = scmp.eq.s32.totalorder %s21, 0
      %p42 = por %p40, %p41
      %p43 = scmp.ne.s32.totalorder %s29, %s30
      %p44 = scmp.eq.s32.totalorder %s22, 1
      %p45 = por %p43, %p44
      %p47 = scmp.ne.s32.totalorder %s30, %s46
      %p48 = scmp.eq.s32.totalorder %s22, 0
      %p49 = por %p47, %p48
      %s51 = sadd.s32 %s50, 1
      %p54 = scmp.eq.s32.totalorder %s16, 1
      %p55 = scmp.ne.s32.totalorder %s50, %s52
      %p56 = scmp.eq.s32.totalorder %s16, 0
      %p57 = por %p55, %p56
      %p58 = scmp.ne.s32.totalorder %s50, %s52
      %p59 = scmp.eq.s32.totalorder %s21, 1
      %p60 = por %p58, %p59
      %p61 = scmp.ne.s32.totalorder %s52, %s53
      %p62 = scmp.eq.s32.totalorder %s21, 0
      %p63 = por %p61, %p62
      %p64 = scmp.ne.s32.totalorder %s52, %s53
      %p65 = scmp.eq.s32.totalorder %s22, 1
      %p66 = por %p64, %p65
      %p68 = scmp.ne.s32.totalorder %s53, %s67
      %p69 = scmp.eq.s32.totalorder %s22, 0
      %p70 = por %p68, %p69
      %s72 = sadd.s32 %s71, 1
      %p75 = scmp.eq.s32.totalorder %s16, 1
      %p76 = scmp.ne.s32.totalorder %s71, %s73
      %p77 = scmp.eq.s32.totalorder %s16, 0
      %p78 = por %p76, %p77
      %p79 = scmp.ne.s32.totalorder %s71, %s73
      %p80 = scmp.eq.s32.totalorder %s21, 1
      %p81 = por %p79, %p80
      %p82 = scmp.ne.s32.totalorder %s73, %s74
      %p83 = scmp.eq.s32.totalorder %s21, 0
      %p84 = por %p82, %p83
      %p85 = scmp.ne.s32.totalorder %s73, %s74
      %p86 = scmp.eq.s32.totalorder %s22, 1
      %p87 = por %p85, %p86
      %p89 = scmp.ne.s32.totalorder %s74, %s88
      %p90 = scmp.eq.s32.totalorder %s22, 0
      %p91 = por %p89, %p90
      %s93 = sadd.s32 %s92, 1
      %p96 = scmp.eq.s32.totalorder %s16, 1
      %p97 = scmp.ne.s32.totalorder %s92, %s94
      %p98 = scmp.eq.s32.totalorder %s16, 0
      %p99 = por %p97, %p98
      %p100 = scmp.ne.s32.totalorder %s92, %s94
      %p101 = scmp.eq.s32.totalorder %s21, 1
      %p102 = por %p100, %p101
      %p103 = scmp.ne.s32.totalorder %s94, %s95
      %p104 = scmp.eq.s32.totalorder %s21, 0
      %p105 = por %p103, %p104
      %p106 = scmp.ne.s32.totalorder %s94, %s95
      %p107 = scmp.eq.s32.totalorder %s22, 1
      %p108 = por %p106, %p107
      %p110 = scmp.ne.s32.totalorder %s95, %s109
      %p111 = scmp.eq.s32.totalorder %s22, 0
      %p112 = por %p110, %p111
      %s114 = sadd.s32 %s113, 1
      %p117 = scmp.eq.s32.totalorder %s16, 1
      %p118 = scmp.ne.s32.totalorder %s113, %s115
      %p119 = scmp.eq.s32.totalorder %s16, 0
      %p120 = por %p118, %p119
      %p121 = scmp.ne.s32.totalorder %s113, %s115
      %p122 = scmp.eq.s32.totalorder %s21, 1
      %p123 = por %p121, %p122
      %p124 = scmp.ne.s32.totalorder %s115, %s116
      %p125 = scmp.eq.s32.totalorder %s21, 0
      %p126 = por %p124, %p125
      %p127 = scmp.ne.s32.totalorder %s115, %s116
      %p128 = scmp.eq.s32.totalorder %s22, 1
      %p129 = por %p127, %p128
      %p131 = scmp.ne.s32.totalorder %s116, %s130
      %p132 = scmp.eq.s32.totalorder %s22, 0
      %p133 = por %p131, %p132
      %s135 = sadd.s32 %s134, 1
      %p138 = scmp.eq.s32.totalorder %s16, 1
      %p139 = scmp.ne.s32.totalorder %s134, %s136
      %p140 = scmp.eq.s32.totalorder %s16, 0
      %p141 = por %p139, %p140
      %p142 = scmp.ne.s32.totalorder %s134, %s136
      %p143 = scmp.eq.s32.totalorder %s21, 1
      %p144 = por %p142, %p143
      %p145 = scmp.ne.s32.totalorder %s136, %s137
      %p146 = scmp.eq.s32.totalorder %s21, 0
      %p147 = por %p145, %p146
      %p148 = scmp.ne.s32.totalorder %s136, %s137
      %p149 = scmp.eq.s32.totalorder %s22, 1
      %p150 = por %p148, %p149
      %p152 = scmp.ne.s32.totalorder %s137, %s151
      %p153 = scmp.eq.s32.totalorder %s22, 0
      %p154 = por %p152, %p153
      %s156 = sadd.s32 %s155, 1
      %p159 = scmp.eq.s32.totalorder %s16, 1
      %p160 = scmp.ne.s32.totalorder %s155, %s157
      %p161 = scmp.eq.s32.totalorder %s16, 0
      %p162 = por %p160, %p161
      %p163 = scmp.ne.s32.totalorder %s155, %s157
      %p164 = scmp.eq.s32.totalorder %s21, 1
      %p165 = por %p163, %p164
      %p166 = scmp.ne.s32.totalorder %s157, %s158
      %p167 = scmp.eq.s32.totalorder %s21, 0
      %p168 = por %p166, %p167
      %p169 = scmp.ne.s32.totalorder %s157, %s158
      %p170 = scmp.eq.s32.totalorder %s22, 1
      %p171 = por %p169, %p170
      %p173 = scmp.ne.s32.totalorder %s158, %s172
      %p174 = scmp.eq.s32.totalorder %s22, 0
      %p175 = por %p173, %p174
      %s176 = ssub.s32 %s16, %s23
      %p177 = scmp.eq.s32.totalorder %s176, 0
      %s179 = sadd.s32 %s178, 1
      %s180 = scalar_select %p177, %s178, %s179
      %p183 = pneg %p177
      %p184 = scmp.eq.s32.totalorder %s16, 1
      %p185 = por %p183, %p184
      %p186 = scmp.ne.s32.totalorder %s178, %s181
      %p187 = scmp.eq.s32.totalorder %s16, 0
      %p188 = por %p186, %p187
      %p189 = scmp.ne.s32.totalorder %s178, %s181
      %p190 = scmp.eq.s32.totalorder %s21, 1
      %p191 = por %p189, %p190
      %p192 = scmp.ne.s32.totalorder %s181, %s182
      %p193 = scmp.eq.s32.totalorder %s21, 0
      %p194 = por %p192, %p193
      %p195 = scmp.ne.s32.totalorder %s181, %s182
      %p196 = scmp.eq.s32.totalorder %s22, 1
      %p197 = por %p195, %p196
      %p199 = scmp.ne.s32.totalorder %s182, %s198
      %p200 = scmp.eq.s32.totalorder %s22, 0
      %p201 = por %p199, %p200
      %p202 = scmp.le.s32.totalorder 1, %s16
      %p203 = scmp.lt.s32.totalorder %s16, 3
      %p204 = pnand %p202, %p203
      %p205 = pneg %p204
      // Predicated region
      $region9: #{tpu_custom_call.1} parent=5 // pred_check
        _
      $region10: #{tpu_custom_call.1} parent=5 // pred_check_branch
        %207 = sbr.rel (%p204) target = $region12
      $region11: #{tpu_custom_call.1} parent=5 // pred_region
        %s208 = ssub.s32 %s16, 1
        // Predicated region
        $region13: #{tpu_custom_call.1} parent=11 // pred_check
          %p209 = pneg %p63
        $region14: #{tpu_custom_call.1} parent=11 // pred_check_branch
          %211 = sbr.rel (%p209) target = $region16
        $region15: #{tpu_custom_call.1} parent=11 // pred_region
          _
        $region16: #{tpu_custom_call.1} parent=11 // pred_fallthru
          _
        // Predicated region
        $region17: #{tpu_custom_call.1} parent=11 // pred_check
          %p212 = pneg %p84
        $region18: #{tpu_custom_call.1} parent=11 // pred_check_branch
          %214 = sbr.rel (%p212) target = $region20
        $region19: #{tpu_custom_call.1} parent=11 // pred_region
          _
        $region20: #{tpu_custom_call.1} parent=11 // pred_fallthru
          _
        // Predicated region
        $region21: #{tpu_custom_call.1} parent=11 // pred_check
          %p215 = pneg %p105
        $region22: #{tpu_custom_call.1} parent=11 // pred_check_branch
          %217 = sbr.rel (%p215) target = $region24
        $region23: #{tpu_custom_call.1} parent=11 // pred_region
          _
        $region24: #{tpu_custom_call.1} parent=11 // pred_fallthru
          _
        // Predicated region
        $region25: #{tpu_custom_call.1} parent=11 // pred_check
          %p218 = pneg %p126
        $region26: #{tpu_custom_call.1} parent=11 // pred_check_branch
          %220 = sbr.rel (%p218) target = $region28
        $region27: #{tpu_custom_call.1} parent=11 // pred_region
          _
        $region28: #{tpu_custom_call.1} parent=11 // pred_fallthru
          _
        // Predicated region
        $region29: #{tpu_custom_call.1} parent=11 // pred_check
          %p221 = pneg %p147
        $region30: #{tpu_custom_call.1} parent=11 // pred_check_branch
          %223 = sbr.rel (%p221) target = $region32
        $region31: #{tpu_custom_call.1} parent=11 // pred_region
          _
        $region32: #{tpu_custom_call.1} parent=11 // pred_fallthru
          _
        // Predicated region
        $region33: #{tpu_custom_call.1} parent=11 // pred_check
          %p224 = pneg %p168
        $region34: #{tpu_custom_call.1} parent=11 // pred_check_branch
          %226 = sbr.rel (%p224) target = $region36
        $region35: #{tpu_custom_call.1} parent=11 // pred_region
          _
        $region36: #{tpu_custom_call.1} parent=11 // pred_fallthru
          _
      $region12: #{tpu_custom_call.1} parent=5 // pred_fallthru
        _
      %p227 = scmp.lt.s32.totalorder %s16, 2
      // Predicated region
      $region37: #{tpu_custom_call.1} parent=5 // pred_check
        %p228 = pneg %p227
      $region38: #{tpu_custom_call.1} parent=5 // pred_check_branch
        %230 = sbr.rel (%p228) target = $region40
      $region39: #{tpu_custom_call.1} parent=5 // pred_region
        // Predicated region
        $region41: #{tpu_custom_call.1} parent=39 // pred_check
          %p231 = pneg %p36
        $region42: #{tpu_custom_call.1} parent=39 // pred_check_branch
          %233 = sbr.rel (%p231) target = $region44
        $region43: #{tpu_custom_call.1} parent=39 // pred_region
          %p234 = scmp.lt.s32.totalorder %s16, 1
          %s235 = scalar_select %p234, %s16, 1
          %s236 = smul.addr %s235, 4
          %s237 = scalar_lea.vmem %s0, %s236
        $region44: #{tpu_custom_call.1} parent=39 // pred_fallthru
          _
      $region40: #{tpu_custom_call.1} parent=5 // pred_fallthru
        _
      %p238 = scmp.le.s32.totalorder 1, %s16
      %p239 = scmp.lt.s32.totalorder %s16, 3
      %p240 = pnand %p238, %p239
      %p241 = pneg %p240
      // Predicated region
      $region45: #{tpu_custom_call.1} parent=5 // pred_check
        _
      $region46: #{tpu_custom_call.1} parent=5 // pred_check_branch
        %243 = sbr.rel (%p240) target = $region48
      $region47: #{tpu_custom_call.1} parent=5 // pred_region
        %s244 = ssub.s32 %s16, 1
        %p245 = scmp.lt.s32.totalorder %s21, 1
        %s246 = scalar_select %p245, %s21, 1
        %s247 = smul.addr %s246, 4
        %s248 = scalar_lea.vmem %s0, %s247
        %p249 = pneg %p42
        %p250 = pneg %p39
        %p251 = pneg %p63
        %p252 = pneg %p60
        %p253 = pneg %p84
        %p254 = pneg %p81
        %p255 = pneg %p105
        %p256 = pneg %p102
        %p257 = pneg %p126
        %p258 = pneg %p123
        %p259 = pneg %p147
        %p260 = pneg %p144
        %p261 = pneg %p168
        %p262 = pneg %p165
        %p263 = pneg %p194
        %p264 = pneg %p191
        %s265 = sand.u32 %s181, 1
        %s266 = scalar_lea.sflag [#allocation3], %s265
        %s267 = sand.u32 %s181, 1
        %s268 = smul.addr %s267, 4
        %s269 = scalar_lea.vmem [#allocation2], %s268
        %p270 = scmp.lt.s32.totalorder %s21, 1
        %s271 = scalar_select %p270, %s21, 1
        %s272 = smul.addr %s271, 4
        %s273 = scalar_lea.vmem %s0, %s272
        %v274 = vld [vmem:[%s1] sm:$0xff]
        %v275 = vld [vmem:[%s1 + $0x8] sm:$0xff]
        %v276 = vld [vmem:[%s2] sm:$0xff]
        %v277 = vld [vmem:[%s2 + $0x8] sm:$0xff]
        %v278 = vld [vmem:[%s3] sm:$0xff]
        %v279 = vld [vmem:[%s3 + $0x8] sm:$0xff]
        %v280 = vld [vmem:[%s4] sm:$0xff]
        %v281 = vld [vmem:[%s4 + $0x8] sm:$0xff]
        %v282 = vld [vmem:[%s5] sm:$0xf]
        %v283 = vld [vmem:[%s6] sm:$0xf]
        %v284 = vlaneseq
        %v285 = vand.u32 %v284, 127
        %vm286 = vcmp.ge.s32.totalorder %v285, 16
        %v287 = vld [vmem:[%s273] sm:$0xf]
        %vm288 = vcmask 31744
        %v290 = vsel %vm288, %v274, 0
        %v293 = vsel %vm288, %v275, 0
        %vm295 = vcmask 1043456
        %v297 = vsel %vm295, %v287, 0
        %299 = vmatprep.subr.mxu0 0.0
        %v300 = vand.u32 %v297, 4294901760
        %301 = vmatpush1.msra.mxu0 %v300
        %302 = vmatprep.subr.mxu0 0.0
        %303 = vmatpush1.msra.mxu0 0.0
        %304 = vmatprep.subr.mxu0 0.0
        %305 = vmatpush1.msra.mxu0 0.0
        %306 = vmatprep.subr.mxu0 0.0
        %307 = vmatpush1.msra.mxu0 0.0
        %308 = vmatprep.subr.mxu0 0.0
        %309 = vmatpush1.msra.mxu0 0.0
        %310 = vmatprep.subr.mxu0 0.0
        %311 = vmatpush1.msra.mxu0 0.0
        %312 = vmatprep.subr.mxu0 0.0
        %313 = vmatpush1.msra.mxu0 0.0
        %314 = vmatprep.subr.mxu0 0.0
        %315 = vmatpush1.msra.mxu0 0.0
        %316 = vmatprep.subr.mxu0 0.0
        %317 = vmatpush1.msra.mxu0 0.0
        %318 = vmatprep.subr.mxu0 0.0
        %319 = vmatpush1.msra.mxu0 0.0
        %320 = vmatprep.subr.mxu0 0.0
        %321 = vmatpush1.msra.mxu0 0.0
        %322 = vmatprep.subr.mxu0 0.0
        %323 = vmatpush1.msra.mxu0 0.0
        %324 = vmatprep.subr.mxu0 0.0
        %325 = vmatpush1.msra.mxu0 0.0
        %326 = vmatprep.subr.mxu0 0.0
        %327 = vmatpush1.msra.mxu0 0.0
        %328 = vmatprep.subr.mxu0 0.0
        %329 = vmatpush1.msra.mxu0 0.0
        %330 = vmatprep.subr.mxu0 0.0
        %331 = vmatpush1.msra.mxu0 0.0
        %332 = vmatprep.subr.mxu0 0.0
        %333 = vmatpush1.msra.mxu0 0.0
        %334 = vmatprep.subr.mxu0 0.0
        %335 = vmatpush1.msra.mxu0 0.0
        %336 = vmatprep.subr.mxu0 0.0
        %337 = vmatpush1.msra.mxu0 0.0
        %338 = vmatprep.subr.mxu0 0.0
        %339 = vmatpush1.msra.mxu0 0.0
        %340 = vmatprep.subr.mxu0 0.0
        %341 = vmatpush1.msra.mxu0 0.0
        %342 = vmatprep.subr.mxu0 0.0
        %343 = vmatpush1.msra.mxu0 0.0
        %344 = vmatprep.subr.mxu0 0.0
        %345 = vmatpush1.msra.mxu0 0.0
        %346 = vmatprep.subr.mxu0 0.0
        %347 = vmatpush1.msra.mxu0 0.0
        %348 = vmatprep.subr.mxu0 0.0
        %349 = vmatpush1.msra.mxu0 0.0
        %350 = vmatprep.subr.mxu0 0.0
        %351 = vmatpush1.msra.mxu0 0.0
        %352 = vmatprep.subr.mxu0 0.0
        %353 = vmatpush1.msra.mxu0 0.0
        %354 = vmatprep.subr.mxu0 0.0
        %355 = vmatpush1.msra.mxu0 0.0
        %356 = vmatprep.subr.mxu0 0.0
        %357 = vmatpush1.msra.mxu0 0.0
        %358 = vmatprep.subr.mxu0 0.0
        %359 = vmatpush1.msra.mxu0 0.0
        %360 = vmatprep.subr.mxu0 0.0
        %361 = vmatpush1.msra.mxu0 0.0
        %362 = vmatprep.subr.mxu0 0.0
        %363 = vmatpush1.msra.mxu0 0.0
        %364 = vmatprep.mubr.f32.mxu0 0.0
        %v365 = vand.u32 %v290, 4294901760
        %v366 = vsub.f32 %v290, %v365
        %v367 = vand.u32 %v366, 4294901760
        %v368 = vsub.f32 %v366, %v367
        %v369 = vand.u32 %v368, 4294901760
        %370 = vmatmul.mubr.f32.gmra.mrb[0].mxu0 %v369
        %v371 = vpop.f32.mrb[0].mxu0
        %v372 = vadd.f32 0.0, %v371
        %v373 = vpop.f32.mrb[0].mxu0
        %374 = vmatprep.mubr.f32.mxu0 0.0
        %v375 = vand.u32 %v293, 4294901760
        %v376 = vsub.f32 %v293, %v375
        %v377 = vand.u32 %v376, 4294901760
        %v378 = vsub.f32 %v376, %v377
        %v379 = vand.u32 %v378, 4294901760
        %380 = vmatmul.mubr.f32.gmra.mrb[0].mxu0 %v379
        %v381 = vpop.f32.mrb[0].mxu0
        %v382 = vadd.f32 0.0, %v381
        %v383 = vpop.f32.mrb[0].mxu0
        %384 = vdwg.mxu0
        %385 = vmatprep.subr.mxu0 0.0
        %v386 = vand.u32 %v297, 4294901760
        %v387 = vsub.f32 %v297, %v386
        %v388 = vand.u32 %v387, 4294901760
        %v389 = vsub.f32 %v387, %v388
        %v390 = vand.u32 %v389, 4294901760
        %391 = vmatpush1.msra.mxu0 %v390
        %392 = vmatprep.subr.mxu0 0.0
        %393 = vmatpush1.msra.mxu0 0.0
        %394 = vmatprep.subr.mxu0 0.0
        %395 = vmatpush1.msra.mxu0 0.0
        %396 = vmatprep.subr.mxu0 0.0
        %397 = vmatpush1.msra.mxu0 0.0
        %398 = vmatprep.subr.mxu0 0.0
        %399 = vmatpush1.msra.mxu0 0.0
        %400 = vmatprep.subr.mxu0 0.0
        %401 = vmatpush1.msra.mxu0 0.0
        %402 = vmatprep.subr.mxu0 0.0
        %403 = vmatpush1.msra.mxu0 0.0
        %404 = vmatprep.subr.mxu0 0.0
        %405 = vmatpush1.msra.mxu0 0.0
        %406 = vmatprep.subr.mxu0 0.0
        %407 = vmatpush1.msra.mxu0 0.0
        %408 = vmatprep.subr.mxu0 0.0
        %409 = vmatpush1.msra.mxu0 0.0
        %410 = vmatprep.subr.mxu0 0.0
        %411 = vmatpush1.msra.mxu0 0.0
        %412 = vmatprep.subr.mxu0 0.0
        %413 = vmatpush1.msra.mxu0 0.0
        %414 = vmatprep.subr.mxu0 0.0
        %415 = vmatpush1.msra.mxu0 0.0
        %416 = vmatprep.subr.mxu0 0.0
        %417 = vmatpush1.msra.mxu0 0.0
        %418 = vmatprep.subr.mxu0 0.0
        %419 = vmatpush1.msra.mxu0 0.0
        %420 = vmatprep.subr.mxu0 0.0
        %421 = vmatpush1.msra.mxu0 0.0
        %422 = vmatprep.subr.mxu0 0.0
        %423 = vmatpush1.msra.mxu0 0.0
        %424 = vmatprep.subr.mxu0 0.0
        %425 = vmatpush1.msra.mxu0 0.0
        %426 = vmatprep.subr.mxu0 0.0
        %427 = vmatpush1.msra.mxu0 0.0
        %428 = vmatprep.subr.mxu0 0.0
        %429 = vmatpush1.msra.mxu0 0.0
        %430 = vmatprep.subr.mxu0 0.0
        %431 = vmatpush1.msra.mxu0 0.0
        %432 = vmatprep.subr.mxu0 0.0
        %433 = vmatpush1.msra.mxu0 0.0
        %434 = vmatprep.subr.mxu0 0.0
        %435 = vmatpush1.msra.mxu0 0.0
        %436 = vmatprep.subr.mxu0 0.0
        %437 = vmatpush1.msra.mxu0 0.0
        %438 = vmatprep.subr.mxu0 0.0
        %439 = vmatpush1.msra.mxu0 0.0
        %440 = vmatprep.subr.mxu0 0.0
        %441 = vmatpush1.msra.mxu0 0.0
        %442 = vmatprep.subr.mxu0 0.0
        %443 = vmatpush1.msra.mxu0 0.0
        %444 = vmatprep.subr.mxu0 0.0
        %445 = vmatpush1.msra.mxu0 0.0
        %446 = vmatprep.subr.mxu0 0.0
        %447 = vmatpush1.msra.mxu0 0.0
        %448 = vmatprep.subr.mxu0 0.0
        %449 = vmatpush1.msra.mxu0 0.0
        %450 = vmatprep.subr.mxu0 0.0
        %451 = vmatpush1.msra.mxu0 0.0
        %452 = vmatprep.subr.mxu0 0.0
        %453 = vmatpush1.msra.mxu0 0.0
        %454 = vmatprep.mubr.f32.mxu0 0.0
        %v455 = vand.u32 %v290, 4294901760
        %456 = vmatmul.mubr.f32.gmra.mrb[0].mxu0 %v455
        %v457 = vpop.f32.mrb[0].mxu0
        %v458 = vadd.f32 %v372, %v457
        %v459 = vpop.f32.mrb[0].mxu0
        %460 = vmatprep.mubr.f32.mxu0 0.0
        %v461 = vand.u32 %v293, 4294901760
        %462 = vmatmul.mubr.f32.gmra.mrb[0].mxu0 %v461
        %v463 = vpop.f32.mrb[0].mxu0
        %v464 = vadd.f32 %v382, %v463
        %v465 = vpop.f32.mrb[0].mxu0
        %466 = vdwg.mxu0
        %467 = vmatprep.subr.mxu0 0.0
        %v468 = vand.u32 %v297, 4294901760
        %v469 = vsub.f32 %v297, %v468
        %470 = vmatpush1.msra.mxu0 %v469
        %471 = vmatprep.subr.mxu0 0.0
        %472 = vmatpush1.msra.mxu0 0.0
        %473 = vmatprep.subr.mxu0 0.0
        %474 = vmatpush1.msra.mxu0 0.0
        %475 = vmatprep.subr.mxu0 0.0
        %476 = vmatpush1.msra.mxu0 0.0
        %477 = vmatprep.subr.mxu0 0.0
        %478 = vmatpush1.msra.mxu0 0.0
        %479 = vmatprep.subr.mxu0 0.0
        %480 = vmatpush1.msra.mxu0 0.0
        %481 = vmatprep.subr.mxu0 0.0
        %482 = vmatpush1.msra.mxu0 0.0
        %483 = vmatprep.subr.mxu0 0.0
        %484 = vmatpush1.msra.mxu0 0.0
        %485 = vmatprep.subr.mxu0 0.0
        %486 = vmatpush1.msra.mxu0 0.0
        %487 = vmatprep.subr.mxu0 0.0
        %488 = vmatpush1.msra.mxu0 0.0
        %489 = vmatprep.subr.mxu0 0.0
        %490 = vmatpush1.msra.mxu0 0.0
        %491 = vmatprep.subr.mxu0 0.0
        %492 = vmatpush1.msra.mxu0 0.0
        %493 = vmatprep.subr.mxu0 0.0
        %494 = vmatpush1.msra.mxu0 0.0
        %495 = vmatprep.subr.mxu0 0.0
        %496 = vmatpush1.msra.mxu0 0.0
        %497 = vmatprep.subr.mxu0 0.0
        %498 = vmatpush1.msra.mxu0 0.0
        %499 = vmatprep.subr.mxu0 0.0
        %500 = vmatpush1.msra.mxu0 0.0
        %501 = vmatprep.subr.mxu0 0.0
        %502 = vmatpush1.msra.mxu0 0.0
        %503 = vmatprep.subr.mxu0 0.0
        %504 = vmatpush1.msra.mxu0 0.0
        %505 = vmatprep.subr.mxu0 0.0
        %506 = vmatpush1.msra.mxu0 0.0
        %507 = vmatprep.subr.mxu0 0.0
        %508 = vmatpush1.msra.mxu0 0.0
        %509 = vmatprep.subr.mxu0 0.0
        %510 = vmatpush1.msra.mxu0 0.0
        %511 = vmatprep.subr.mxu0 0.0
        %512 = vmatpush1.msra.mxu0 0.0
        %513 = vmatprep.subr.mxu0 0.0
        %514 = vmatpush1.msra.mxu0 0.0
        %515 = vmatprep.subr.mxu0 0.0
        %516 = vmatpush1.msra.mxu0 0.0
        %517 = vmatprep.subr.mxu0 0.0
        %518 = vmatpush1.msra.mxu0 0.0
        %519 = vmatprep.subr.mxu0 0.0
        %520 = vmatpush1.msra.mxu0 0.0
        %521 = vmatprep.subr.mxu0 0.0
        %522 = vmatpush1.msra.mxu0 0.0
        %523 = vmatprep.subr.mxu0 0.0
        %524 = vmatpush1.msra.mxu0 0.0
        %525 = vmatprep.subr.mxu0 0.0
        %526 = vmatpush1.msra.mxu0 0.0
        %527 = vmatprep.subr.mxu0 0.0
        %528 = vmatpush1.msra.mxu0 0.0
        %529 = vmatprep.subr.mxu0 0.0
        %530 = vmatpush1.msra.mxu0 0.0
        %531 = vmatprep.subr.mxu0 0.0
        %532 = vmatpush1.msra.mxu0 0.0
        %533 = vmatprep.mubr.f32.mxu0 0.0
        %v534 = vand.u32 %v290, 4294901760
        %v535 = vsub.f32 %v290, %v534
        %536 = vmatmul.mubr.f32.gmra.mrb[0].mxu0 %v535
        %v537 = vpop.f32.mrb[0].mxu0
        %v538 = vadd.f32 %v458, %v537
        %v539 = vpop.f32.mrb[0].mxu0
        %540 = vmatprep.mubr.f32.mxu0 0.0
        %v541 = vand.u32 %v293, 4294901760
        %v542 = vsub.f32 %v293, %v541
        %543 = vmatmul.mubr.f32.gmra.mrb[0].mxu0 %v542
        %v544 = vpop.f32.mrb[0].mxu0
        %v545 = vadd.f32 %v464, %v544
        %v546 = vpop.f32.mrb[0].mxu0
        %547 = vdwg.mxu0
        %548 = vmatprep.subr.mxu0 0.0
        %v549 = vand.u32 %v297, 4294901760
        %550 = vmatpush1.msra.mxu0 %v549
        %551 = vmatprep.subr.mxu0 0.0
        %552 = vmatpush1.msra.mxu0 0.0
        %553 = vmatprep.subr.mxu0 0.0
        %554 = vmatpush1.msra.mxu0 0.0
        %555 = vmatprep.subr.mxu0 0.0
        %556 = vmatpush1.msra.mxu0 0.0
        %557 = vmatprep.subr.mxu0 0.0
        %558 = vmatpush1.msra.mxu0 0.0
        %559 = vmatprep.subr.mxu0 0.0
        %560 = vmatpush1.msra.mxu0 0.0
        %561 = vmatprep.subr.mxu0 0.0
        %562 = vmatpush1.msra.mxu0 0.0
        %563 = vmatprep.subr.mxu0 0.0
        %564 = vmatpush1.msra.mxu0 0.0
        %565 = vmatprep.subr.mxu0 0.0
        %566 = vmatpush1.msra.mxu0 0.0
        %567 = vmatprep.subr.mxu0 0.0
        %568 = vmatpush1.msra.mxu0 0.0
        %569 = vmatprep.subr.mxu0 0.0
        %570 = vmatpush1.msra.mxu0 0.0
        %571 = vmatprep.subr.mxu0 0.0
        %572 = vmatpush1.msra.mxu0 0.0
        %573 = vmatprep.subr.mxu0 0.0
        %574 = vmatpush1.msra.mxu0 0.0
        %575 = vmatprep.subr.mxu0 0.0
        %576 = vmatpush1.msra.mxu0 0.0
        %577 = vmatprep.subr.mxu0 0.0
        %578 = vmatpush1.msra.mxu0 0.0
        %579 = vmatprep.subr.mxu0 0.0
        %580 = vmatpush1.msra.mxu0 0.0
        %581 = vmatprep.subr.mxu0 0.0
        %582 = vmatpush1.msra.mxu0 0.0
        %583 = vmatprep.subr.mxu0 0.0
        %584 = vmatpush1.msra.mxu0 0.0
        %585 = vmatprep.subr.mxu0 0.0
        %586 = vmatpush1.msra.mxu0 0.0
        %587 = vmatprep.subr.mxu0 0.0
        %588 = vmatpush1.msra.mxu0 0.0
        %589 = vmatprep.subr.mxu0 0.0
        %590 = vmatpush1.msra.mxu0 0.0
        %591 = vmatprep.subr.mxu0 0.0
        %592 = vmatpush1.msra.mxu0 0.0
        %593 = vmatprep.subr.mxu0 0.0
        %594 = vmatpush1.msra.mxu0 0.0
        %595 = vmatprep.subr.mxu0 0.0
        %596 = vmatpush1.msra.mxu0 0.0
        %597 = vmatprep.subr.mxu0 0.0
        %598 = vmatpush1.msra.mxu0 0.0
        %599 = vmatprep.subr.mxu0 0.0
        %600 = vmatpush1.msra.mxu0 0.0
        %601 = vmatprep.subr.mxu0 0.0
        %602 = vmatpush1.msra.mxu0 0.0
        %603 = vmatprep.subr.mxu0 0.0
        %604 = vmatpush1.msra.mxu0 0.0
        %605 = vmatprep.subr.mxu0 0.0
        %606 = vmatpush1.msra.mxu0 0.0
        %607 = vmatprep.subr.mxu0 0.0
        %608 = vmatpush1.msra.mxu0 0.0
        %609 = vmatprep.subr.mxu0 0.0
        %610 = vmatpush1.msra.mxu0 0.0
        %611 = vmatprep.subr.mxu0 0.0
        %612 = vmatpush1.msra.mxu0 0.0
        %613 = vmatprep.mubr.f32.mxu0 0.0
        %v614 = vand.u32 %v290, 4294901760
        %v615 = vsub.f32 %v290, %v614
        %v616 = vand.u32 %v615, 4294901760
        %617 = vmatmul.mubr.f32.gmra.mrb[0].mxu0 %v616
        %v618 = vpop.f32.mrb[0].mxu0
        %v619 = vadd.f32 %v538, %v618
        %v620 = vpop.f32.mrb[0].mxu0
        %621 = vmatprep.mubr.f32.mxu0 0.0
        %v622 = vand.u32 %v293, 4294901760
        %v623 = vsub.f32 %v293, %v622
        %v624 = vand.u32 %v623, 4294901760
        %625 = vmatmul.mubr.f32.gmra.mrb[0].mxu0 %v624
        %v626 = vpop.f32.mrb[0].mxu0
        %v627 = vadd.f32 %v545, %v626
        %v628 = vpop.f32.mrb[0].mxu0
        %629 = vdwg.mxu0
        %630 = vmatprep.subr.mxu0 0.0
        %v631 = vand.u32 %v297, 4294901760
        %v632 = vsub.f32 %v297, %v631
        %v633 = vand.u32 %v632, 4294901760
        %634 = vmatpush1.msra.mxu0 %v633
        %635 = vmatprep.subr.mxu0 0.0
        %636 = vmatpush1.msra.mxu0 0.0
        %637 = vmatprep.subr.mxu0 0.0
        %638 = vmatpush1.msra.mxu0 0.0
        %639 = vmatprep.subr.mxu0 0.0
        %640 = vmatpush1.msra.mxu0 0.0
        %641 = vmatprep.subr.mxu0 0.0
        %642 = vmatpush1.msra.mxu0 0.0
        %643 = vmatprep.subr.mxu0 0.0
        %644 = vmatpush1.msra.mxu0 0.0
        %645 = vmatprep.subr.mxu0 0.0
        %646 = vmatpush1.msra.mxu0 0.0
        %647 = vmatprep.subr.mxu0 0.0
        %648 = vmatpush1.msra.mxu0 0.0
        %649 = vmatprep.subr.mxu0 0.0
        %650 = vmatpush1.msra.mxu0 0.0
        %651 = vmatprep.subr.mxu0 0.0
        %652 = vmatpush1.msra.mxu0 0.0
        %653 = vmatprep.subr.mxu0 0.0
        %654 = vmatpush1.msra.mxu0 0.0
        %655 = vmatprep.subr.mxu0 0.0
        %656 = vmatpush1.msra.mxu0 0.0
        %657 = vmatprep.subr.mxu0 0.0
        %658 = vmatpush1.msra.mxu0 0.0
        %659 = vmatprep.subr.mxu0 0.0
        %660 = vmatpush1.msra.mxu0 0.0
        %661 = vmatprep.subr.mxu0 0.0
        %662 = vmatpush1.msra.mxu0 0.0
        %663 = vmatprep.subr.mxu0 0.0
        %664 = vmatpush1.msra.mxu0 0.0
        %665 = vmatprep.subr.mxu0 0.0
        %666 = vmatpush1.msra.mxu0 0.0
        %667 = vmatprep.subr.mxu0 0.0
        %668 = vmatpush1.msra.mxu0 0.0
        %669 = vmatprep.subr.mxu0 0.0
        %670 = vmatpush1.msra.mxu0 0.0
        %671 = vmatprep.subr.mxu0 0.0
        %672 = vmatpush1.msra.mxu0 0.0
        %673 = vmatprep.subr.mxu0 0.0
        %674 = vmatpush1.msra.mxu0 0.0
        %675 = vmatprep.subr.mxu0 0.0
        %676 = vmatpush1.msra.mxu0 0.0
        %677 = vmatprep.subr.mxu0 0.0
        %678 = vmatpush1.msra.mxu0 0.0
        %679 = vmatprep.subr.mxu0 0.0
        %680 = vmatpush1.msra.mxu0 0.0
        %681 = vmatprep.subr.mxu0 0.0
        %682 = vmatpush1.msra.mxu0 0.0
        %683 = vmatprep.subr.mxu0 0.0
        %684 = vmatpush1.msra.mxu0 0.0
        %685 = vmatprep.subr.mxu0 0.0
        %686 = vmatpush1.msra.mxu0 0.0
        %687 = vmatprep.subr.mxu0 0.0
        %688 = vmatpush1.msra.mxu0 0.0
        %689 = vmatprep.subr.mxu0 0.0
        %690 = vmatpush1.msra.mxu0 0.0
        %691 = vmatprep.subr.mxu0 0.0
        %692 = vmatpush1.msra.mxu0 0.0
        %693 = vmatprep.subr.mxu0 0.0
        %694 = vmatpush1.msra.mxu0 0.0
        %695 = vmatprep.subr.mxu0 0.0
        %696 = vmatpush1.msra.mxu0 0.0
        %697 = vmatprep.mubr.f32.mxu0 0.0
        %v698 = vand.u32 %v290, 4294901760
        %699 = vmatmul.mubr.f32.gmra.mrb[0].mxu0 %v698
        %v700 = vpop.f32.mrb[0].mxu0
        %v701 = vadd.f32 %v619, %v700
        %v702 = vpop.f32.mrb[0].mxu0
        %703 = vmatprep.mubr.f32.mxu0 0.0
        %v704 = vand.u32 %v293, 4294901760
        %705 = vmatmul.mubr.f32.gmra.mrb[0].mxu0 %v704
        %v706 = vpop.f32.mrb[0].mxu0
        %v707 = vadd.f32 %v627, %v706
        %v708 = vpop.f32.mrb[0].mxu0
        %709 = vdwg.mxu0
        %710 = vmatprep.subr.mxu0 0.0
        %v711 = vand.u32 %v297, 4294901760
        %712 = vmatpush1.msra.mxu0 %v711
        %713 = vmatprep.subr.mxu0 0.0
        %714 = vmatpush1.msra.mxu0 0.0
        %715 = vmatprep.subr.mxu0 0.0
        %716 = vmatpush1.msra.mxu0 0.0
        %717 = vmatprep.subr.mxu0 0.0
        %718 = vmatpush1.msra.mxu0 0.0
        %719 = vmatprep.subr.mxu0 0.0
        %720 = vmatpush1.msra.mxu0 0.0
        %721 = vmatprep.subr.mxu0 0.0
        %722 = vmatpush1.msra.mxu0 0.0
        %723 = vmatprep.subr.mxu0 0.0
        %724 = vmatpush1.msra.mxu0 0.0
        %725 = vmatprep.subr.mxu0 0.0
        %726 = vmatpush1.msra.mxu0 0.0
        %727 = vmatprep.subr.mxu0 0.0
        %728 = vmatpush1.msra.mxu0 0.0
        %729 = vmatprep.subr.mxu0 0.0
        %730 = vmatpush1.msra.mxu0 0.0
        %731 = vmatprep.subr.mxu0 0.0
        %732 = vmatpush1.msra.mxu0 0.0
        %733 = vmatprep.subr.mxu0 0.0
        %734 = vmatpush1.msra.mxu0 0.0
        %735 = vmatprep.subr.mxu0 0.0
        %736 = vmatpush1.msra.mxu0 0.0
        %737 = vmatprep.subr.mxu0 0.0
        %738 = vmatpush1.msra.mxu0 0.0
        %739 = vmatprep.subr.mxu0 0.0
        %740 = vmatpush1.msra.mxu0 0.0
        %741 = vmatprep.subr.mxu0 0.0
        %742 = vmatpush1.msra.mxu0 0.0
        %743 = vmatprep.subr.mxu0 0.0
        %744 = vmatpush1.msra.mxu0 0.0
        %745 = vmatprep.subr.mxu0 0.0
        %746 = vmatpush1.msra.mxu0 0.0
        %747 = vmatprep.subr.mxu0 0.0
        %748 = vmatpush1.msra.mxu0 0.0
        %749 = vmatprep.subr.mxu0 0.0
        %750 = vmatpush1.msra.mxu0 0.0
        %751 = vmatprep.subr.mxu0 0.0
        %752 = vmatpush1.msra.mxu0 0.0
        %753 = vmatprep.subr.mxu0 0.0
        %754 = vmatpush1.msra.mxu0 0.0
        %755 = vmatprep.subr.mxu0 0.0
        %756 = vmatpush1.msra.mxu0 0.0
        %757 = vmatprep.subr.mxu0 0.0
        %758 = vmatpush1.msra.mxu0 0.0
        %759 = vmatprep.subr.mxu0 0.0
        %760 = vmatpush1.msra.mxu0 0.0
        %761 = vmatprep.subr.mxu0 0.0
        %762 = vmatpush1.msra.mxu0 0.0
        %763 = vmatprep.subr.mxu0 0.0
        %764 = vmatpush1.msra.mxu0 0.0
        %765 = vmatprep.subr.mxu0 0.0
        %766 = vmatpush1.msra.mxu0 0.0
        %767 = vmatprep.subr.mxu0 0.0
        %768 = vmatpush1.msra.mxu0 0.0
        %769 = vmatprep.subr.mxu0 0.0
        %770 = vmatpush1.msra.mxu0 0.0
        %771 = vmatprep.subr.mxu0 0.0
        %772 = vmatpush1.msra.mxu0 0.0
        %773 = vmatprep.subr.mxu0 0.0
        %774 = vmatpush1.msra.mxu0 0.0
        %775 = vmatprep.mubr.f32.mxu0 0.0
        %v776 = vand.u32 %v290, 4294901760
        %777 = vmatmul.mubr.f32.gmra.mrb[0].mxu0 %v776
        %v778 = vpop.f32.mrb[0].mxu0
        %v779 = vadd.f32 %v701, %v778
        %v780 = vpop.f32.mrb[0].mxu0
        %781 = vmatprep.mubr.f32.mxu0 0.0
        %v782 = vand.u32 %v293, 4294901760
        %783 = vmatmul.mubr.f32.gmra.mrb[0].mxu0 %v782
        %v784 = vpop.f32.mrb[0].mxu0
        %v785 = vadd.f32 %v707, %v784
        %v786 = vpop.f32.mrb[0].mxu0
        %787 = vdwg.mxu0
        %v788 = vmul.f32 %v779, %v779
        %v789 = vmul.f32 %v785, %v785
        %v790 = vadd.f32 %v788, %v789
        %791 = vadd.xlane.f32.xlu0 %v790
        %v792 = vpop.xlane.xlu0 %791
        %v793 = vrot.slane %v792, 4
        %v794 = vadd.f32 %v792, %v793
        %v795 = vrot.slane %v794, 2
        %v796 = vadd.f32 %v794, %v795
        %v797 = vrot.slane %v796, 1
        %v798 = vadd.f32 %v796, %v797
        %s799 = vtos %v798
        %s800 = smul.f32 %s799, 0.00390625
        %s801 = sadd.f32 %s800, 1.1920929e-07
        %v802 = vstv %s801
        %v803 = vrsqrt.pop %v802
        %s804 = vtos %v803
        %v805 = vstv %s804
        %v806 = vmul.f32 %v779, %v805
        %v807 = vmul.f32 %v785, %v805
        %v808 = vmul.f32 %v806, %v276
        %v809 = vmul.f32 %v807, %v277
        %v810 = vmul.f32 %v808, 0.5
        %v811 = vmul.f32 %v809, 0.5
        %v812 = vmul.f32 %v808, 0.70710677
        %v813 = vmul.f32 %v809, 0.70710677
        %v814 = verf.f32.pop %v812
        %v815 = verf.f32.pop %v813
        %v816 = vadd.f32 %v814, 1.0
        %v817 = vadd.f32 %v815, 1.0
        %v818 = vmul.f32 %v810, %v816
        %v819 = vmul.f32 %v811, %v817
        %820 = vrot.lane.b32.xlu0 %v818, 1
        %v821 = vpop.permute.xlu0 %820
        %822 = vrot.lane.b32.xlu0 %v819, 1
        %v823 = vpop.permute.xlu0 %822
        %824 = vrot.lane.b32.xlu0 %v818, 127
        %v825 = vpop.permute.xlu0 %824
        %826 = vrot.lane.b32.xlu0 %v819, 127
        %v827 = vpop.permute.xlu0 %826
        %829 = vset.pattern.permute.xlu0 1
        %830 = vperm.xlu0 %829, %v278
        %v831 = vpop.permute.xlu0 %830
        %834 = vset.pattern.permute.xlu0 1
        %835 = vperm.xlu0 %834, %v279
        %v836 = vpop.permute.xlu0 %835
        %v838 = vmul.f32 %v831, %v818
        %v839 = vmul.f32 %v836, %v819
        %840 = vset.pattern.permute.xlu0 0
        %841 = vperm.xlu0 %840, %v278
        %v842 = vpop.permute.xlu0 %841
        %844 = vset.pattern.permute.xlu0 0
        %845 = vperm.xlu0 %844, %v279
        %v846 = vpop.permute.xlu0 %845
        %v848 = vmul.f32 %v842, %v821
        %v849 = vmul.f32 %v846, %v823
        %v850 = vadd.f32 %v838, %v848
        %v851 = vadd.f32 %v839, %v849
        %852 = vset.pattern.permute.xlu0 2
        %853 = vperm.xlu0 %852, %v278
        %v854 = vpop.permute.xlu0 %853
        %856 = vset.pattern.permute.xlu0 2
        %857 = vperm.xlu0 %856, %v279
        %v858 = vpop.permute.xlu0 %857
        %v860 = vmul.f32 %v854, %v825
        %v861 = vmul.f32 %v858, %v827
        %v862 = vadd.f32 %v850, %v860
        %v863 = vadd.f32 %v851, %v861
        %v864 = vsel %vm286, 1, 0
        %vm865 = vcmp.eq.s32.totalorder %v864, 1
        %v866 = vsel %vm865, 0.0, %v862
        %v867 = vsel %vm865, 0.0, %v863
        %v868 = vmul.f32 %v866, %v866
        %v869 = vmul.f32 %v867, %v867
        %v870 = vadd.f32 %v868, %v869
        %871 = vadd.xlane.f32.xlu0 %v870
        %v872 = vpop.xlane.xlu0 %871
        %v873 = vrot.slane %v872, 4
        %v874 = vadd.f32 %v872, %v873
        %v875 = vrot.slane %v874, 2
        %v876 = vadd.f32 %v874, %v875
        %v877 = vrot.slane %v876, 1
        %v878 = vadd.f32 %v876, %v877
        %s879 = vtos %v878
        %s880 = smul.f32 %s879, 0.00390625
        %s881 = sadd.f32 %s880, 1.1920929e-07
        %v882 = vstv %s881
        %v883 = vrsqrt.pop %v882
        %s884 = vtos %v883
        %v885 = vstv %s884
        %v886 = vmul.f32 %v866, %v885
        %v887 = vmul.f32 %v867, %v885
        %v888 = vmul.f32 %v886, %v280
        %v889 = vmul.f32 %v887, %v281
        %v890 = vmul.f32 %v888, 0.5
        %v891 = vmul.f32 %v889, 0.5
        %v892 = vmul.f32 %v888, 0.70710677
        %v893 = vmul.f32 %v889, 0.70710677
        %v894 = verf.f32.pop %v892
        %v895 = verf.f32.pop %v893
        %v896 = vadd.f32 %v894, 1.0
        %v897 = vadd.f32 %v895, 1.0
        %v898 = vmul.f32 %v890, %v896
        %v899 = vmul.f32 %v891, %v897
        %vm900 = vcmask 130048
        %v902 = vsel %vm900, %v282, 0
        %904 = vmatprep.subr.mxu0 0.0
        %v905 = vand.u32 %v898, 4294901760
        %906 = vmatpush1.msra.mxu0 %v905
        %907 = vmatprep.subr.mxu0 0.0
        %v908 = vand.u32 %v899, 4294901760
        %909 = vmatpush1.msra.mxu0 %v908
        %910 = vmatprep.subr.mxu0 0.0
        %911 = vmatpush1.msra.mxu0 0.0
        %912 = vmatprep.subr.mxu0 0.0
        %913 = vmatpush1.msra.mxu0 0.0
        %914 = vmatprep.subr.mxu0 0.0
        %915 = vmatpush1.msra.mxu0 0.0
        %916 = vmatprep.subr.mxu0 0.0
        %917 = vmatpush1.msra.mxu0 0.0
        %918 = vmatprep.subr.mxu0 0.0
        %919 = vmatpush1.msra.mxu0 0.0
        %920 = vmatprep.subr.mxu0 0.0
        %921 = vmatpush1.msra.mxu0 0.0
        %922 = vmatprep.subr.mxu0 0.0
        %923 = vmatpush1.msra.mxu0 0.0
        %924 = vmatprep.subr.mxu0 0.0
        %925 = vmatpush1.msra.mxu0 0.0
        %926 = vmatprep.subr.mxu0 0.0
        %927 = vmatpush1.msra.mxu0 0.0
        %928 = vmatprep.subr.mxu0 0.0
        %929 = vmatpush1.msra.mxu0 0.0
        %930 = vmatprep.subr.mxu0 0.0
        %931 = vmatpush1.msra.mxu0 0.0
        %932 = vmatprep.subr.mxu0 0.0
        %933 = vmatpush1.msra.mxu0 0.0
        %934 = vmatprep.subr.mxu0 0.0
        %935 = vmatpush1.msra.mxu0 0.0
        %936 = vmatprep.subr.mxu0 0.0
        %937 = vmatpush1.msra.mxu0 0.0
        %938 = vmatprep.subr.mxu0 0.0
        %939 = vmatpush1.msra.mxu0 0.0
        %940 = vmatprep.subr.mxu0 0.0
        %941 = vmatpush1.msra.mxu0 0.0
        %942 = vmatprep.subr.mxu0 0.0
        %943 = vmatpush1.msra.mxu0 0.0
        %944 = vmatprep.subr.mxu0 0.0
        %945 = vmatpush1.msra.mxu0 0.0
        %946 = vmatprep.subr.mxu0 0.0
        %947 = vmatpush1.msra.mxu0 0.0
        %948 = vmatprep.subr.mxu0 0.0
        %949 = vmatpush1.msra.mxu0 0.0
        %950 = vmatprep.subr.mxu0 0.0
        %951 = vmatpush1.msra.mxu0 0.0
        %952 = vmatprep.subr.mxu0 0.0
        %953 = vmatpush1.msra.mxu0 0.0
        %954 = vmatprep.subr.mxu0 0.0
        %955 = vmatpush1.msra.mxu0 0.0
        %956 = vmatprep.subr.mxu0 0.0
        %957 = vmatpush1.msra.mxu0 0.0
        %958 = vmatprep.subr.mxu0 0.0
        %959 = vmatpush1.msra.mxu0 0.0
        %960 = vmatprep.subr.mxu0 0.0
        %961 = vmatpush1.msra.mxu0 0.0
        %962 = vmatprep.subr.mxu0 0.0
        %963 = vmatpush1.msra.mxu0 0.0
        %964 = vmatprep.subr.mxu0 0.0
        %965 = vmatpush1.msra.mxu0 0.0
        %966 = vmatprep.subr.mxu0 0.0
        %967 = vmatpush1.msra.mxu0 0.0
        %968 = vmatprep.subr.mxu0 0.0
        %969 = vmatpush1.msra.mxu0 0.0
        %970 = vmatprep.mubr.f32.mxu0 0.0
        %v971 = vand.u32 %v902, 4294901760
        %v972 = vsub.f32 %v902, %v971
        %v973 = vand.u32 %v972, 4294901760
        %v974 = vsub.f32 %v972, %v973
        %v975 = vand.u32 %v974, 4294901760
        %976 = vmatmul.mubr.f32.gmra.mrb[0].mxu0 %v975
        %v977 = vpop.f32.mrb[0].mxu0
        %v978 = vadd.f32 0.0, %v977
        %v979 = vpop.f32.mrb[0].mxu0
        %980 = vdwg.mxu0
        %981 = vmatprep.subr.mxu0 0.0
        %v982 = vand.u32 %v898, 4294901760
        %v983 = vsub.f32 %v898, %v982
        %v984 = vand.u32 %v983, 4294901760
        %v985 = vsub.f32 %v983, %v984
        %v986 = vand.u32 %v985, 4294901760
        %987 = vmatpush1.msra.mxu0 %v986
        %988 = vmatprep.subr.mxu0 0.0
        %v989 = vand.u32 %v899, 4294901760
        %v990 = vsub.f32 %v899, %v989
        %v991 = vand.u32 %v990, 4294901760
        %v992 = vsub.f32 %v990, %v991
        %v993 = vand.u32 %v992, 4294901760
        %994 = vmatpush1.msra.mxu0 %v993
        %995 = vmatprep.subr.mxu0 0.0
        %996 = vmatpush1.msra.mxu0 0.0
        %997 = vmatprep.subr.mxu0 0.0
        %998 = vmatpush1.msra.mxu0 0.0
        %999 = vmatprep.subr.mxu0 0.0
        %1000 = vmatpush1.msra.mxu0 0.0
        %1001 = vmatprep.subr.mxu0 0.0
        %1002 = vmatpush1.msra.mxu0 0.0
        %1003 = vmatprep.subr.mxu0 0.0
        %1004 = vmatpush1.msra.mxu0 0.0
        %1005 = vmatprep.subr.mxu0 0.0
        %1006 = vmatpush1.msra.mxu0 0.0
        %1007 = vmatprep.subr.mxu0 0.0
        %1008 = vmatpush1.msra.mxu0 0.0
        %1009 = vmatprep.subr.mxu0 0.0
        %1010 = vmatpush1.msra.mxu0 0.0
        %1011 = vmatprep.subr.mxu0 0.0
        %1012 = vmatpush1.msra.mxu0 0.0
        %1013 = vmatprep.subr.mxu0 0.0
        %1014 = vmatpush1.msra.mxu0 0.0
        %1015 = vmatprep.subr.mxu0 0.0
        %1016 = vmatpush1.msra.mxu0 0.0
        %1017 = vmatprep.subr.mxu0 0.0
        %1018 = vmatpush1.msra.mxu0 0.0
        %1019 = vmatprep.subr.mxu0 0.0
        %1020 = vmatpush1.msra.mxu0 0.0
        %1021 = vmatprep.subr.mxu0 0.0
        %1022 = vmatpush1.msra.mxu0 0.0
        %1023 = vmatprep.subr.mxu0 0.0
        %1024 = vmatpush1.msra.mxu0 0.0
        %1025 = vmatprep.subr.mxu0 0.0
        %1026 = vmatpush1.msra.mxu0 0.0
        %1027 = vmatprep.subr.mxu0 0.0
        %1028 = vmatpush1.msra.mxu0 0.0
        %1029 = vmatprep.subr.mxu0 0.0
        %1030 = vmatpush1.msra.mxu0 0.0
        %1031 = vmatprep.subr.mxu0 0.0
        %1032 = vmatpush1.msra.mxu0 0.0
        %1033 = vmatprep.subr.mxu0 0.0
        %1034 = vmatpush1.msra.mxu0 0.0
        %1035 = vmatprep.subr.mxu0 0.0
        %1036 = vmatpush1.msra.mxu0 0.0
        %1037 = vmatprep.subr.mxu0 0.0
        %1038 = vmatpush1.msra.mxu0 0.0
        %1039 = vmatprep.subr.mxu0 0.0
        %1040 = vmatpush1.msra.mxu0 0.0
        %1041 = vmatprep.subr.mxu0 0.0
        %1042 = vmatpush1.msra.mxu0 0.0
        %1043 = vmatprep.subr.mxu0 0.0
        %1044 = vmatpush1.msra.mxu0 0.0
        %1045 = vmatprep.subr.mxu0 0.0
        %1046 = vmatpush1.msra.mxu0 0.0
        %1047 = vmatprep.subr.mxu0 0.0
        %1048 = vmatpush1.msra.mxu0 0.0
        %1049 = vmatprep.subr.mxu0 0.0
        %1050 = vmatpush1.msra.mxu0 0.0
        %1051 = vmatprep.subr.mxu0 0.0
        %1052 = vmatpush1.msra.mxu0 0.0
        %1053 = vmatprep.subr.mxu0 0.0
        %1054 = vmatpush1.msra.mxu0 0.0
        %1055 = vmatprep.mubr.f32.mxu0 0.0
        %v1056 = vand.u32 %v902, 4294901760
        %1057 = vmatmul.mubr.f32.gmra.mrb[0].mxu0 %v1056
        %v1058 = vpop.f32.mrb[0].mxu0
        %v1059 = vadd.f32 %v978, %v1058
        %v1060 = vpop.f32.mrb[0].mxu0
        %1061 = vdwg.mxu0
        %1062 = vmatprep.subr.mxu0 0.0
        %v1063 = vand.u32 %v898, 4294901760
        %v1064 = vsub.f32 %v898, %v1063
        %1065 = vmatpush1.msra.mxu0 %v1064
        %1066 = vmatprep.subr.mxu0 0.0
        %v1067 = vand.u32 %v899, 4294901760
        %v1068 = vsub.f32 %v899, %v1067
        %1069 = vmatpush1.msra.mxu0 %v1068
        %1070 = vmatprep.subr.mxu0 0.0
        %1071 = vmatpush1.msra.mxu0 0.0
        %1072 = vmatprep.subr.mxu0 0.0
        %1073 = vmatpush1.msra.mxu0 0.0
        %1074 = vmatprep.subr.mxu0 0.0
        %1075 = vmatpush1.msra.mxu0 0.0
        %1076 = vmatprep.subr.mxu0 0.0
        %1077 = vmatpush1.msra.mxu0 0.0
        %1078 = vmatprep.subr.mxu0 0.0
        %1079 = vmatpush1.msra.mxu0 0.0
        %1080 = vmatprep.subr.mxu0 0.0
        %1081 = vmatpush1.msra.mxu0 0.0
        %1082 = vmatprep.subr.mxu0 0.0
        %1083 = vmatpush1.msra.mxu0 0.0
        %1084 = vmatprep.subr.mxu0 0.0
        %1085 = vmatpush1.msra.mxu0 0.0
        %1086 = vmatprep.subr.mxu0 0.0
        %1087 = vmatpush1.msra.mxu0 0.0
        %1088 = vmatprep.subr.mxu0 0.0
        %1089 = vmatpush1.msra.mxu0 0.0
        %1090 = vmatprep.subr.mxu0 0.0
        %1091 = vmatpush1.msra.mxu0 0.0
        %1092 = vmatprep.subr.mxu0 0.0
        %1093 = vmatpush1.msra.mxu0 0.0
        %1094 = vmatprep.subr.mxu0 0.0
        %1095 = vmatpush1.msra.mxu0 0.0
        %1096 = vmatprep.subr.mxu0 0.0
        %1097 = vmatpush1.msra.mxu0 0.0
        %1098 = vmatprep.subr.mxu0 0.0
        %1099 = vmatpush1.msra.mxu0 0.0
        %1100 = vmatprep.subr.mxu0 0.0
        %1101 = vmatpush1.msra.mxu0 0.0
        %1102 = vmatprep.subr.mxu0 0.0
        %1103 = vmatpush1.msra.mxu0 0.0
        %1104 = vmatprep.subr.mxu0 0.0
        %1105 = vmatpush1.msra.mxu0 0.0
        %1106 = vmatprep.subr.mxu0 0.0
        %1107 = vmatpush1.msra.mxu0 0.0
        %1108 = vmatprep.subr.mxu0 0.0
        %1109 = vmatpush1.msra.mxu0 0.0
        %1110 = vmatprep.subr.mxu0 0.0
        %1111 = vmatpush1.msra.mxu0 0.0
        %1112 = vmatprep.subr.mxu0 0.0
        %1113 = vmatpush1.msra.mxu0 0.0
        %1114 = vmatprep.subr.mxu0 0.0
        %1115 = vmatpush1.msra.mxu0 0.0
        %1116 = vmatprep.subr.mxu0 0.0
        %1117 = vmatpush1.msra.mxu0 0.0
        %1118 = vmatprep.subr.mxu0 0.0
        %1119 = vmatpush1.msra.mxu0 0.0
        %1120 = vmatprep.subr.mxu0 0.0
        %1121 = vmatpush1.msra.mxu0 0.0
        %1122 = vmatprep.subr.mxu0 0.0
        %1123 = vmatpush1.msra.mxu0 0.0
        %1124 = vmatprep.subr.mxu0 0.0
        %1125 = vmatpush1.msra.mxu0 0.0
        %1126 = vmatprep.subr.mxu0 0.0
        %1127 = vmatpush1.msra.mxu0 0.0
        %1128 = vmatprep.subr.mxu0 0.0
        %1129 = vmatpush1.msra.mxu0 0.0
        %1130 = vmatprep.mubr.f32.mxu0 0.0
        %v1131 = vand.u32 %v902, 4294901760
        %v1132 = vsub.f32 %v902, %v1131
        %1133 = vmatmul.mubr.f32.gmra.mrb[0].mxu0 %v1132
        %v1134 = vpop.f32.mrb[0].mxu0
        %v1135 = vadd.f32 %v1059, %v1134
        %v1136 = vpop.f32.mrb[0].mxu0
        %1137 = vdwg.mxu0
        %1138 = vmatprep.subr.mxu0 0.0
        %v1139 = vand.u32 %v898, 4294901760
        %1140 = vmatpush1.msra.mxu0 %v1139
        %1141 = vmatprep.subr.mxu0 0.0
        %v1142 = vand.u32 %v899, 4294901760
        %1143 = vmatpush1.msra.mxu0 %v1142
        %1144 = vmatprep.subr.mxu0 0.0
        %1145 = vmatpush1.msra.mxu0 0.0
        %1146 = vmatprep.subr.mxu0 0.0
        %1147 = vmatpush1.msra.mxu0 0.0
        %1148 = vmatprep.subr.mxu0 0.0
        %1149 = vmatpush1.msra.mxu0 0.0
        %1150 = vmatprep.subr.mxu0 0.0
        %1151 = vmatpush1.msra.mxu0 0.0
        %1152 = vmatprep.subr.mxu0 0.0
        %1153 = vmatpush1.msra.mxu0 0.0
        %1154 = vmatprep.subr.mxu0 0.0
        %1155 = vmatpush1.msra.mxu0 0.0
        %1156 = vmatprep.subr.mxu0 0.0
        %1157 = vmatpush1.msra.mxu0 0.0
        %1158 = vmatprep.subr.mxu0 0.0
        %1159 = vmatpush1.msra.mxu0 0.0
        %1160 = vmatprep.subr.mxu0 0.0
        %1161 = vmatpush1.msra.mxu0 0.0
        %1162 = vmatprep.subr.mxu0 0.0
        %1163 = vmatpush1.msra.mxu0 0.0
        %1164 = vmatprep.subr.mxu0 0.0
        %1165 = vmatpush1.msra.mxu0 0.0
        %1166 = vmatprep.subr.mxu0 0.0
        %1167 = vmatpush1.msra.mxu0 0.0
        %1168 = vmatprep.subr.mxu0 0.0
        %1169 = vmatpush1.msra.mxu0 0.0
        %1170 = vmatprep.subr.mxu0 0.0
        %1171 = vmatpush1.msra.mxu0 0.0
        %1172 = vmatprep.subr.mxu0 0.0
        %1173 = vmatpush1.msra.mxu0 0.0
        %1174 = vmatprep.subr.mxu0 0.0
        %1175 = vmatpush1.msra.mxu0 0.0
        %1176 = vmatprep.subr.mxu0 0.0
        %1177 = vmatpush1.msra.mxu0 0.0
        %1178 = vmatprep.subr.mxu0 0.0
        %1179 = vmatpush1.msra.mxu0 0.0
        %1180 = vmatprep.subr.mxu0 0.0
        %1181 = vmatpush1.msra.mxu0 0.0
        %1182 = vmatprep.subr.mxu0 0.0
        %1183 = vmatpush1.msra.mxu0 0.0
        %1184 = vmatprep.subr.mxu0 0.0
        %1185 = vmatpush1.msra.mxu0 0.0
        %1186 = vmatprep.subr.mxu0 0.0
        %1187 = vmatpush1.msra.mxu0 0.0
        %1188 = vmatprep.subr.mxu0 0.0
        %1189 = vmatpush1.msra.mxu0 0.0
        %1190 = vmatprep.subr.mxu0 0.0
        %1191 = vmatpush1.msra.mxu0 0.0
        %1192 = vmatprep.subr.mxu0 0.0
        %1193 = vmatpush1.msra.mxu0 0.0
        %1194 = vmatprep.subr.mxu0 0.0
        %1195 = vmatpush1.msra.mxu0 0.0
        %1196 = vmatprep.subr.mxu0 0.0
        %1197 = vmatpush1.msra.mxu0 0.0
        %1198 = vmatprep.subr.mxu0 0.0
        %1199 = vmatpush1.msra.mxu0 0.0
        %1200 = vmatprep.subr.mxu0 0.0
        %1201 = vmatpush1.msra.mxu0 0.0
        %1202 = vmatprep.subr.mxu0 0.0
        %1203 = vmatpush1.msra.mxu0 0.0
        %1204 = vmatprep.mubr.f32.mxu0 0.0
        %v1205 = vand.u32 %v902, 4294901760
        %v1206 = vsub.f32 %v902, %v1205
        %v1207 = vand.u32 %v1206, 4294901760
        %1208 = vmatmul.mubr.f32.gmra.mrb[0].mxu0 %v1207
        %v1209 = vpop.f32.mrb[0].mxu0
        %v1210 = vadd.f32 %v1135, %v1209
        %v1211 = vpop.f32.mrb[0].mxu0
        %1212 = vdwg.mxu0
        %1213 = vmatprep.subr.mxu0 0.0
        %v1214 = vand.u32 %v898, 4294901760
        %v1215 = vsub.f32 %v898, %v1214
        %v1216 = vand.u32 %v1215, 4294901760
        %1217 = vmatpush1.msra.mxu0 %v1216
        %1218 = vmatprep.subr.mxu0 0.0
        %v1219 = vand.u32 %v899, 4294901760
        %v1220 = vsub.f32 %v899, %v1219
        %v1221 = vand.u32 %v1220, 4294901760
        %1222 = vmatpush1.msra.mxu0 %v1221
        %1223 = vmatprep.subr.mxu0 0.0
        %1224 = vmatpush1.msra.mxu0 0.0
        %1225 = vmatprep.subr.mxu0 0.0
        %1226 = vmatpush1.msra.mxu0 0.0
        %1227 = vmatprep.subr.mxu0 0.0
        %1228 = vmatpush1.msra.mxu0 0.0
        %1229 = vmatprep.subr.mxu0 0.0
        %1230 = vmatpush1.msra.mxu0 0.0
        %1231 = vmatprep.subr.mxu0 0.0
        %1232 = vmatpush1.msra.mxu0 0.0
        %1233 = vmatprep.subr.mxu0 0.0
        %1234 = vmatpush1.msra.mxu0 0.0
        %1235 = vmatprep.subr.mxu0 0.0
        %1236 = vmatpush1.msra.mxu0 0.0
        %1237 = vmatprep.subr.mxu0 0.0
        %1238 = vmatpush1.msra.mxu0 0.0
        %1239 = vmatprep.subr.mxu0 0.0
        %1240 = vmatpush1.msra.mxu0 0.0
        %1241 = vmatprep.subr.mxu0 0.0
        %1242 = vmatpush1.msra.mxu0 0.0
        %1243 = vmatprep.subr.mxu0 0.0
        %1244 = vmatpush1.msra.mxu0 0.0
        %1245 = vmatprep.subr.mxu0 0.0
        %1246 = vmatpush1.msra.mxu0 0.0
        %1247 = vmatprep.subr.mxu0 0.0
        %1248 = vmatpush1.msra.mxu0 0.0
        %1249 = vmatprep.subr.mxu0 0.0
        %1250 = vmatpush1.msra.mxu0 0.0
        %1251 = vmatprep.subr.mxu0 0.0
        %1252 = vmatpush1.msra.mxu0 0.0
        %1253 = vmatprep.subr.mxu0 0.0
        %1254 = vmatpush1.msra.mxu0 0.0
        %1255 = vmatprep.subr.mxu0 0.0
        %1256 = vmatpush1.msra.mxu0 0.0
        %1257 = vmatprep.subr.mxu0 0.0
        %1258 = vmatpush1.msra.mxu0 0.0
        %1259 = vmatprep.subr.mxu0 0.0
        %1260 = vmatpush1.msra.mxu0 0.0
        %1261 = vmatprep.subr.mxu0 0.0
        %1262 = vmatpush1.msra.mxu0 0.0
        %1263 = vmatprep.subr.mxu0 0.0
        %1264 = vmatpush1.msra.mxu0 0.0
        %1265 = vmatprep.subr.mxu0 0.0
        %1266 = vmatpush1.msra.mxu0 0.0
        %1267 = vmatprep.subr.mxu0 0.0
        %1268 = vmatpush1.msra.mxu0 0.0
        %1269 = vmatprep.subr.mxu0 0.0
        %1270 = vmatpush1.msra.mxu0 0.0
        %1271 = vmatprep.subr.mxu0 0.0
        %1272 = vmatpush1.msra.mxu0 0.0
        %1273 = vmatprep.subr.mxu0 0.0
        %1274 = vmatpush1.msra.mxu0 0.0
        %1275 = vmatprep.subr.mxu0 0.0
        %1276 = vmatpush1.msra.mxu0 0.0
        %1277 = vmatprep.subr.mxu0 0.0
        %1278 = vmatpush1.msra.mxu0 0.0
        %1279 = vmatprep.subr.mxu0 0.0
        %1280 = vmatpush1.msra.mxu0 0.0
        %1281 = vmatprep.subr.mxu0 0.0
        %1282 = vmatpush1.msra.mxu0 0.0
        %1283 = vmatprep.mubr.f32.mxu0 0.0
        %v1284 = vand.u32 %v902, 4294901760
        %1285 = vmatmul.mubr.f32.gmra.mrb[0].mxu0 %v1284
        %v1286 = vpop.f32.mrb[0].mxu0
        %v1287 = vadd.f32 %v1210, %v1286
        %v1288 = vpop.f32.mrb[0].mxu0
        %1289 = vdwg.mxu0
        %1290 = vmatprep.subr.mxu0 0.0
        %v1291 = vand.u32 %v898, 4294901760
        %1292 = vmatpush1.msra.mxu0 %v1291
        %1293 = vmatprep.subr.mxu0 0.0
        %v1294 = vand.u32 %v899, 4294901760
        %1295 = vmatpush1.msra.mxu0 %v1294
        %1296 = vmatprep.subr.mxu0 0.0
        %1297 = vmatpush1.msra.mxu0 0.0
        %1298 = vmatprep.subr.mxu0 0.0
        %1299 = vmatpush1.msra.mxu0 0.0
        %1300 = vmatprep.subr.mxu0 0.0
        %1301 = vmatpush1.msra.mxu0 0.0
        %1302 = vmatprep.subr.mxu0 0.0
        %1303 = vmatpush1.msra.mxu0 0.0
        %1304 = vmatprep.subr.mxu0 0.0
        %1305 = vmatpush1.msra.mxu0 0.0
        %1306 = vmatprep.subr.mxu0 0.0
        %1307 = vmatpush1.msra.mxu0 0.0
        %1308 = vmatprep.subr.mxu0 0.0
        %1309 = vmatpush1.msra.mxu0 0.0
        %1310 = vmatprep.subr.mxu0 0.0
        %1311 = vmatpush1.msra.mxu0 0.0
        %1312 = vmatprep.subr.mxu0 0.0
        %1313 = vmatpush1.msra.mxu0 0.0
        %1314 = vmatprep.subr.mxu0 0.0
        %1315 = vmatpush1.msra.mxu0 0.0
        %1316 = vmatprep.subr.mxu0 0.0
        %1317 = vmatpush1.msra.mxu0 0.0
        %1318 = vmatprep.subr.mxu0 0.0
        %1319 = vmatpush1.msra.mxu0 0.0
        %1320 = vmatprep.subr.mxu0 0.0
        %1321 = vmatpush1.msra.mxu0 0.0
        %1322 = vmatprep.subr.mxu0 0.0
        %1323 = vmatpush1.msra.mxu0 0.0
        %1324 = vmatprep.subr.mxu0 0.0
        %1325 = vmatpush1.msra.mxu0 0.0
        %1326 = vmatprep.subr.mxu0 0.0
        %1327 = vmatpush1.msra.mxu0 0.0
        %1328 = vmatprep.subr.mxu0 0.0
        %1329 = vmatpush1.msra.mxu0 0.0
        %1330 = vmatprep.subr.mxu0 0.0
        %1331 = vmatpush1.msra.mxu0 0.0
        %1332 = vmatprep.subr.mxu0 0.0
        %1333 = vmatpush1.msra.mxu0 0.0
        %1334 = vmatprep.subr.mxu0 0.0
        %1335 = vmatpush1.msra.mxu0 0.0
        %1336 = vmatprep.subr.mxu0 0.0
        %1337 = vmatpush1.msra.mxu0 0.0
        %1338 = vmatprep.subr.mxu0 0.0
        %1339 = vmatpush1.msra.mxu0 0.0
        %1340 = vmatprep.subr.mxu0 0.0
        %1341 = vmatpush1.msra.mxu0 0.0
        %1342 = vmatprep.subr.mxu0 0.0
        %1343 = vmatpush1.msra.mxu0 0.0
        %1344 = vmatprep.subr.mxu0 0.0
        %1345 = vmatpush1.msra.mxu0 0.0
        %1346 = vmatprep.subr.mxu0 0.0
        %1347 = vmatpush1.msra.mxu0 0.0
        %1348 = vmatprep.subr.mxu0 0.0
        %1349 = vmatpush1.msra.mxu0 0.0
        %1350 = vmatprep.subr.mxu0 0.0
        %1351 = vmatpush1.msra.mxu0 0.0
        %1352 = vmatprep.subr.mxu0 0.0
        %1353 = vmatpush1.msra.mxu0 0.0
        %1354 = vmatprep.subr.mxu0 0.0
        %1355 = vmatpush1.msra.mxu0 0.0
        %1356 = vmatprep.mubr.f32.mxu0 0.0
        %v1357 = vand.u32 %v902, 4294901760
        %1358 = vmatmul.mubr.f32.gmra.mrb[0].mxu0 %v1357
        %v1359 = vpop.f32.mrb[0].mxu0
        %v1360 = vadd.f32 %v1287, %v1359
        %v1361 = vpop.f32.mrb[0].mxu0
        %1362 = vdwg.mxu0
        %v1363 = vmul.f32 %v1360, %v1360
        %v1364 = vsel %vm295, %v1363, 0.0
        %1365 = vadd.xlane.f32.xlu0 %v1364
        %v1366 = vpop.xlane.xlu0 %1365
        %v1367 = vrot.slane %v1366, 4
        %v1368 = vadd.f32 %v1366, %v1367
        %v1369 = vrot.slane %v1368, 2
        %v1370 = vadd.f32 %v1368, %v1369
        %v1371 = vrot.slane %v1370, 1
        %v1372 = vadd.f32 %v1370, %v1371
        %s1373 = vtos %v1372
        %s1374 = smul.f32 %s1373, 0.015625
        %s1375 = sadd.f32 %s1374, 1.1920929e-07
        %v1376 = vstv %s1375
        %v1377 = vrsqrt.pop %v1376
        %s1378 = vtos %v1377
        %v1379 = vstv %s1378
        %v1380 = vmul.f32 %v1360, %v1379
        %v1381 = vmul.f32 %v1380, %v283
        %v1382 = vadd.f32 %v1381, %v287
        %1383 = vst [vmem:[%s269] sm:$0xf] %v1382
        %s1384 = sand.u32 %s181, 1
        %s1385 = scalar_lea.sflag [#allocation3], %s1384
        %s1386 = sand.u32 %s181, 1
        %s1387 = smul.addr %s1386, 4
        %s1388 = scalar_lea.vmem [#allocation2], %s1387
        // Predicated region
        $region49: #{tpu_custom_call.1} parent=47 // pred_check
          %p1389 = pneg %p191
        $region50: #{tpu_custom_call.1} parent=47 // pred_check_branch
          %1391 = sbr.rel (%p1389) target = $region52
        $region51: #{tpu_custom_call.1} parent=47 // pred_region
          %s1393 = ssub.s32 64, 64
          %1394 = vsyncadd %s1385, %s1393
          %s1395 = smul.addr %s21, 64
          %s1396 = scalar_lea.hbm %s7, %s1395
          %s1398 = sshll.u32 %s1388, 4
          %s1399 = int_to_ptr.vmem [resolvable:$true] %s1398
          %1401 = dma.vmem_to_hbm [thread:$0]  %s1399, 64, %s1396, %s1385
        $region52: #{tpu_custom_call.1} parent=47 // pred_fallthru
          _
      $region48: #{tpu_custom_call.1} parent=5 // pred_fallthru
        _
      %p1402 = scmp.le.s32.totalorder 2, %s16
      // Predicated region
      $region53: #{tpu_custom_call.1} parent=5 // pred_check
        %p1403 = pneg %p1402
      $region54: #{tpu_custom_call.1} parent=5 // pred_check_branch
        %1405 = sbr.rel (%p1403) target = $region56
      $region55: #{tpu_custom_call.1} parent=5 // pred_region
        %s1406 = ssub.s32 %s16, 2
        // Predicated region
        $region57: #{tpu_custom_call.1} parent=55 // pred_check
          %p1407 = pneg %p197
        $region58: #{tpu_custom_call.1} parent=55 // pred_check_branch
          %1409 = sbr.rel (%p1407) target = $region60
        $region59: #{tpu_custom_call.1} parent=55 // pred_region
          %s1410 = sand.u32 %s182, 1
          %s1411 = scalar_lea.sflag [#allocation3], %s1410
          %s1412 = sand.u32 %s182, 1
          %s1413 = smul.addr %s1412, 4
          %s1414 = scalar_lea.vmem [#allocation2], %s1413
          %1415 = dma.done %s1411, 64
        $region60: #{tpu_custom_call.1} parent=55 // pred_fallthru
          _
      $region56: #{tpu_custom_call.1} parent=5 // pred_fallthru
        _
    $region6: #{tpu_custom_call.1} parent=1 // loop_footer
      %s20 = sadd.s32 1, %s16
    $region7: #{tpu_custom_call.1} parent=1 // loop_footer_branch
      %15 = sbr.rel target = $region3
    $region8: #{tpu_custom_call.1} parent=1 // loop_exit
      _
    %1416 = vsyncpa [#allocation3], 1
    %s1417 = scalar_lea.sflag [#allocation3], 1
    %1418 = vsyncpa %s1417, 1

// kernel: tpu_custom_call.1
$region0: #{tpu_custom_call.1}
  #allocation0 [shape = 'u32[]', space=smem, size = 0x4, offset = 0x4, fixed_abs, tag = 'smem constant byte address 0x4 - core index']
  #allocation1 [shape = 'u32[144,128]{1,0:T(1,128)}', space=vmem, size = 0x12000, scoped, tag = 'internal scratch']
  %s0 = inlined_call_operand.vmem [shape: f32[2,4,128], index: 0, kind: input, shape index: {}]
  %s1 = inlined_call_operand.vmem [shape: f32[16,4], index: 1, kind: input, shape index: {}]
  %s2 = inlined_call_operand.vmem [shape: f32[16,128], index: 2, kind: input, shape index: {}]
  %s3 = inlined_call_operand.vmem [shape: f32[16,3], index: 3, kind: input, shape index: {}]
  %s4 = inlined_call_operand.vmem [shape: f32[16,128], index: 4, kind: input, shape index: {}]
  %s5 = inlined_call_operand.vmem [shape: f32[4,16], index: 5, kind: input, shape index: {}]
  %s6 = inlined_call_operand.vmem [shape: f32[4,128], index: 6, kind: input, shape index: {}]
  %s7 = inlined_call_operand.hbm [shape: f32[2,4,128], index: 7, kind: output, shape index: {}]
  %s8 = sld [smem:[#allocation0]]
  $region61: #{tpu_custom_call.1} parent=0
    _
  %s10 = ssub.s32 1, %s8
  %s11 = scalar_select 0, %s10, %s8
  $region1: #{tpu_custom_call.1} parent=0
    #allocation2 [shape = 'u8[4096]{0}', space=vmem, size = 0x1000, scoped, tag = 'output window, operand 0']
    #allocation3 [shape = 's32[2]{0}', space=sflag, size = 0x8, scoped, tag = 'scoped memory for tpu_custom_call.1']
    %12 = vsyncpa [#allocation3], 0
    %s13 = scalar_lea.sflag [#allocation3], 1
    %14 = vsyncpa %s13, 0
    loop: start=0, step=1, limit=4
    $region2: #{tpu_custom_call.1} parent=1 // loop_pre_header
      _
    $region3: #{tpu_custom_call.1} parent=1 // loop_header
      %s16 = sphi 0, %s20
      %p17 = scmp.ge.s32.totalorder %s16, 4
      %s26 = sphi 0, %s28
      %s29 = sphi 0, %s26
      %s30 = sphi 0, %s29
      %s46 = sphi 0, %s30
      %s50 = sphi 0, %s50
      %s52 = sphi 0, %s50
      %s53 = sphi 0, %s52
      %s67 = sphi 0, %s53
      %s71 = sphi 0, %s71
      %s73 = sphi 0, %s71
      %s74 = sphi 0, %s73
      %s88 = sphi 0, %s74
      %s92 = sphi 0, %s92
      %s94 = sphi 0, %s92
      %s95 = sphi 0, %s94
      %s109 = sphi 0, %s95
      %s113 = sphi 0, %s113
      %s115 = sphi 0, %s113
      %s116 = sphi 0, %s115
      %s130 = sphi 0, %s116
      %s134 = sphi 0, %s134
      %s136 = sphi 0, %s134
      %s137 = sphi 0, %s136
      %s151 = sphi 0, %s137
      %s155 = sphi 0, %s155
      %s157 = sphi 0, %s155
      %s158 = sphi 0, %s157
      %s172 = sphi 0, %s158
      %s178 = sphi 0, %s180
      %s181 = sphi 0, %s178
      %s182 = sphi 0, %s181
      %s198 = sphi 0, %s182
    $region4: #{tpu_custom_call.1} parent=1 // loop_header_branch
      %19 = sbr.rel (%p17) target = $region8
    $region5: #{tpu_custom_call.1} parent=1 // loop_body
      %s21 = ssub.s32 %s16, 1
      %s22 = ssub.s32 %s16, 2
      %s23 = sadd.s32 %s16, 1
      %s24 = ssub.s32 %s16, %s23
      %p25 = scmp.eq.s32.totalorder %s24, 0
      %s27 = sadd.s32 %s26, 1
      %s28 = scalar_select %p25, %s26, %s27
      %p31 = pneg %p25
      %p32 = scmp.eq.s32.totalorder %s16, 1
      %p33 = por %p31, %p32
      %p34 = scmp.ne.s32.totalorder %s26, %s29
      %p35 = scmp.eq.s32.totalorder %s16, 0
      %p36 = por %p34, %p35
      %p37 = scmp.ne.s32.totalorder %s26, %s29
      %p38 = scmp.eq.s32.totalorder %s21, 1
      %p39 = por %p37, %p38
      %p40 = scmp.ne.s32.totalorder %s29, %s30
      %p41 = scmp.eq.s32.totalorder %s21, 0
      %p42 = por %p40, %p41
      %p43 = scmp.ne.s32.totalorder %s29, %s30
      %p44 = scmp.eq.s32.totalorder %s22, 1
      %p45 = por %p43, %p44
      %p47 = scmp.ne.s32.totalorder %s30, %s46
      %p48 = scmp.eq.s32.totalorder %s22, 0
      %p49 = por %p47, %p48
      %s51 = sadd.s32 %s50, 1
      %p54 = scmp.eq.s32.totalorder %s16, 1
      %p55 = scmp.ne.s32.totalorder %s50, %s52
      %p56 = scmp.eq.s32.totalorder %s16, 0
      %p57 = por %p55, %p56
      %p58 = scmp.ne.s32.totalorder %s50, %s52
      %p59 = scmp.eq.s32.totalorder %s21, 1
      %p60 = por %p58, %p59
      %p61 = scmp.ne.s32.totalorder %s52, %s53
      %p62 = scmp.eq.s32.totalorder %s21, 0
      %p63 = por %p61, %p62
      %p64 = scmp.ne.s32.totalorder %s52, %s53
      %p65 = scmp.eq.s32.totalorder %s22, 1
      %p66 = por %p64, %p65
      %p68 = scmp.ne.s32.totalorder %s53, %s67
      %p69 = scmp.eq.s32.totalorder %s22, 0
      %p70 = por %p68, %p69
      %s72 = sadd.s32 %s71, 1
      %p75 = scmp.eq.s32.totalorder %s16, 1
      %p76 = scmp.ne.s32.totalorder %s71, %s73
      %p77 = scmp.eq.s32.totalorder %s16, 0
      %p78 = por %p76, %p77
      %p79 = scmp.ne.s32.totalorder %s71, %s73
      %p80 = scmp.eq.s32.totalorder %s21, 1
      %p81 = por %p79, %p80
      %p82 = scmp.ne.s32.totalorder %s73, %s74
      %p83 = scmp.eq.s32.totalorder %s21, 0
      %p84 = por %p82, %p83
      %p85 = scmp.ne.s32.totalorder %s73, %s74
      %p86 = scmp.eq.s32.totalorder %s22, 1
      %p87 = por %p85, %p86
      %p89 = scmp.ne.s32.totalorder %s74, %s88
      %p90 = scmp.eq.s32.totalorder %s22, 0
      %p91 = por %p89, %p90
      %s93 = sadd.s32 %s92, 1
      %p96 = scmp.eq.s32.totalorder %s16, 1
      %p97 = scmp.ne.s32.totalorder %s92, %s94
      %p98 = scmp.eq.s32.totalorder %s16, 0
      %p99 = por %p97, %p98
      %p100 = scmp.ne.s32.totalorder %s92, %s94
      %p101 = scmp.eq.s32.totalorder %s21, 1
      %p102 = por %p100, %p101
      %p103 = scmp.ne.s32.totalorder %s94, %s95
      %p104 = scmp.eq.s32.totalorder %s21, 0
      %p105 = por %p103, %p104
      %p106 = scmp.ne.s32.totalorder %s94, %s95
      %p107 = scmp.eq.s32.totalorder %s22, 1
      %p108 = por %p106, %p107
      %p110 = scmp.ne.s32.totalorder %s95, %s109
      %p111 = scmp.eq.s32.totalorder %s22, 0
      %p112 = por %p110, %p111
      %s114 = sadd.s32 %s113, 1
      %p117 = scmp.eq.s32.totalorder %s16, 1
      %p118 = scmp.ne.s32.totalorder %s113, %s115
      %p119 = scmp.eq.s32.totalorder %s16, 0
      %p120 = por %p118, %p119
      %p121 = scmp.ne.s32.totalorder %s113, %s115
      %p122 = scmp.eq.s32.totalorder %s21, 1
      %p123 = por %p121, %p122
      %p124 = scmp.ne.s32.totalorder %s115, %s116
      %p125 = scmp.eq.s32.totalorder %s21, 0
      %p126 = por %p124, %p125
      %p127 = scmp.ne.s32.totalorder %s115, %s116
      %p128 = scmp.eq.s32.totalorder %s22, 1
      %p129 = por %p127, %p128
      %p131 = scmp.ne.s32.totalorder %s116, %s130
      %p132 = scmp.eq.s32.totalorder %s22, 0
      %p133 = por %p131, %p132
      %s135 = sadd.s32 %s134, 1
      %p138 = scmp.eq.s32.totalorder %s16, 1
      %p139 = scmp.ne.s32.totalorder %s134, %s136
      %p140 = scmp.eq.s32.totalorder %s16, 0
      %p141 = por %p139, %p140
      %p142 = scmp.ne.s32.totalorder %s134, %s136
      %p143 = scmp.eq.s32.totalorder %s21, 1
      %p144 = por %p142, %p143
      %p145 = scmp.ne.s32.totalorder %s136, %s137
      %p146 = scmp.eq.s32.totalorder %s21, 0
      %p147 = por %p145, %p146
      %p148 = scmp.ne.s32.totalorder %s136, %s137
      %p149 = scmp.eq.s32.totalorder %s22, 1
      %p150 = por %p148, %p149
      %p152 = scmp.ne.s32.totalorder %s137, %s151
      %p153 = scmp.eq.s32.totalorder %s22, 0
      %p154 = por %p152, %p153
      %s156 = sadd.s32 %s155, 1
      %p159 = scmp.eq.s32.totalorder %s16, 1
      %p160 = scmp.ne.s32.totalorder %s155, %s157
      %p161 = scmp.eq.s32.totalorder %s16, 0
      %p162 = por %p160, %p161
      %p163 = scmp.ne.s32.totalorder %s155, %s157
      %p164 = scmp.eq.s32.totalorder %s21, 1
      %p165 = por %p163, %p164
      %p166 = scmp.ne.s32.totalorder %s157, %s158
      %p167 = scmp.eq.s32.totalorder %s21, 0
      %p168 = por %p166, %p167
      %p169 = scmp.ne.s32.totalorder %s157, %s158
      %p170 = scmp.eq.s32.totalorder %s22, 1
      %p171 = por %p169, %p170
      %p173 = scmp.ne.s32.totalorder %s158, %s172
      %p174 = scmp.eq.s32.totalorder %s22, 0
      %p175 = por %p173, %p174
      %s176 = ssub.s32 %s16, %s23
      %p177 = scmp.eq.s32.totalorder %s176, 0
      %s179 = sadd.s32 %s178, 1
      %s180 = scalar_select %p177, %s178, %s179
      %p183 = pneg %p177
      %p184 = scmp.eq.s32.totalorder %s16, 1
      %p185 = por %p183, %p184
      %p186 = scmp.ne.s32.totalorder %s178, %s181
      %p187 = scmp.eq.s32.totalorder %s16, 0
      %p188 = por %p186, %p187
      %p189 = scmp.ne.s32.totalorder %s178, %s181
      %p190 = scmp.eq.s32.totalorder %s21, 1
      %p191 = por %p189, %p190
      %p192 = scmp.ne.s32.totalorder %s181, %s182
      %p193 = scmp.eq.s32.totalorder %s21, 0
      %p194 = por %p192, %p193
      %p195 = scmp.ne.s32.totalorder %s181, %s182
      %p196 = scmp.eq.s32.totalorder %s22, 1
      %p197 = por %p195, %p196
      %p199 = scmp.ne.s32.totalorder %s182, %s198
      %p200 = scmp.eq.s32.totalorder %s22, 0
      %p201 = por %p199, %p200
      %p202 = scmp.le.s32.totalorder 1, %s16
      %p203 = scmp.lt.s32.totalorder %s16, 3
      %p204 = pnand %p202, %p203
      %p205 = pneg %p204
      // Predicated region
      $region9: #{tpu_custom_call.1} parent=5 // pred_check
        _
      $region10: #{tpu_custom_call.1} parent=5 // pred_check_branch
        %207 = sbr.rel (%p204) target = $region12
      $region11: #{tpu_custom_call.1} parent=5 // pred_region
        %s208 = ssub.s32 %s16, 1
        // Predicated region
        $region13: #{tpu_custom_call.1} parent=11 // pred_check
          %p209 = pneg %p63
        $region14: #{tpu_custom_call.1} parent=11 // pred_check_branch
          %211 = sbr.rel (%p209) target = $region16
        $region15: #{tpu_custom_call.1} parent=11 // pred_region
          _
        $region16: #{tpu_custom_call.1} parent=11 // pred_fallthru
          _
        // Predicated region
        $region17: #{tpu_custom_call.1} parent=11 // pred_check
          %p212 = pneg %p84
        $region18: #{tpu_custom_call.1} parent=11 // pred_check_branch
          %214 = sbr.rel (%p212) target = $region20
        $region19: #{tpu_custom_call.1} parent=11 // pred_region
          _
        $region20: #{tpu_custom_call.1} parent=11 // pred_fallthru
          _
        // Predicated region
        $region21: #{tpu_custom_call.1} parent=11 // pred_check
          %p215 = pneg %p105
        $region22: #{tpu_custom_call.1} parent=11 // pred_check_branch
          %217 = sbr.rel (%p215) target = $region24
        $region23: #{tpu_custom_call.1} parent=11 // pred_region
          _
        $region24: #{tpu_custom_call.1} parent=11 // pred_fallthru
          _
        // Predicated region
        $region25: #{tpu_custom_call.1} parent=11 // pred_check
          %p218 = pneg %p126
        $region26: #{tpu_custom_call.1} parent=11 // pred_check_branch
          %220 = sbr.rel (%p218) target = $region28
        $region27: #{tpu_custom_call.1} parent=11 // pred_region
          _
        $region28: #{tpu_custom_call.1} parent=11 // pred_fallthru
          _
        // Predicated region
        $region29: #{tpu_custom_call.1} parent=11 // pred_check
          %p221 = pneg %p147
        $region30: #{tpu_custom_call.1} parent=11 // pred_check_branch
          %223 = sbr.rel (%p221) target = $region32
        $region31: #{tpu_custom_call.1} parent=11 // pred_region
          _
        $region32: #{tpu_custom_call.1} parent=11 // pred_fallthru
          _
        // Predicated region
        $region33: #{tpu_custom_call.1} parent=11 // pred_check
          %p224 = pneg %p168
        $region34: #{tpu_custom_call.1} parent=11 // pred_check_branch
          %226 = sbr.rel (%p224) target = $region36
        $region35: #{tpu_custom_call.1} parent=11 // pred_region
          _
        $region36: #{tpu_custom_call.1} parent=11 // pred_fallthru
          _
      $region12: #{tpu_custom_call.1} parent=5 // pred_fallthru
        _
      %p227 = scmp.lt.s32.totalorder %s16, 2
      // Predicated region
      $region37: #{tpu_custom_call.1} parent=5 // pred_check
        %p228 = pneg %p227
      $region38: #{tpu_custom_call.1} parent=5 // pred_check_branch
        %230 = sbr.rel (%p228) target = $region40
      $region39: #{tpu_custom_call.1} parent=5 // pred_region
        // Predicated region
        $region41: #{tpu_custom_call.1} parent=39 // pred_check
          %p231 = pneg %p36
        $region42: #{tpu_custom_call.1} parent=39 // pred_check_branch
          %233 = sbr.rel (%p231) target = $region44
        $region43: #{tpu_custom_call.1} parent=39 // pred_region
          %p234 = scmp.lt.s32.totalorder %s16, 1
          %s235 = scalar_select %p234, %s16, 1
          %s236 = smul.addr %s235, 4
          %s237 = scalar_lea.vmem %s0, %s236
        $region44: #{tpu_custom_call.1} parent=39 // pred_fallthru
          _
      $region40: #{tpu_custom_call.1} parent=5 // pred_fallthru
        _
      %p238 = scmp.le.s32.totalorder 1, %s16
      %p239 = scmp.lt.s32.totalorder %s16, 3
      %p240 = pnand %p238, %p239
      %p241 = pneg %p240
      // Predicated region
      $region45: #{tpu_custom_call.1} parent=5 // pred_check
        _
      $region46: #{tpu_custom_call.1} parent=5 // pred_check_branch
        %243 = sbr.rel (%p240) target = $region48
      $region47: #{tpu_custom_call.1} parent=5 // pred_region
        %s244 = ssub.s32 %s16, 1
        %p245 = scmp.lt.s32.totalorder %s21, 1
        %s246 = scalar_select %p245, %s21, 1
        %s247 = smul.addr %s246, 4
        %s248 = scalar_lea.vmem %s0, %s247
        %p249 = pneg %p42
        %p250 = pneg %p39
        %p251 = pneg %p63
        %p252 = pneg %p60
        %p253 = pneg %p84
        %p254 = pneg %p81
        %p255 = pneg %p105
        %p256 = pneg %p102
        %p257 = pneg %p126
        %p258 = pneg %p123
        %p259 = pneg %p147
        %p260 = pneg %p144
        %p261 = pneg %p168
        %p262 = pneg %p165
        %p263 = pneg %p194
        %p264 = pneg %p191
        %s265 = sand.u32 %s181, 1
        %s266 = scalar_lea.sflag [#allocation3], %s265
        %s267 = sand.u32 %s181, 1
        %s268 = smul.addr %s267, 4
        %s269 = scalar_lea.vmem [#allocation2], %s268
        %p270 = scmp.lt.s32.totalorder %s21, 1
        %s271 = scalar_select %p270, %s21, 1
        %s272 = smul.addr %s271, 4
        %s273 = scalar_lea.vmem %s0, %s272
        %v274 = vld [vmem:[%s1] sm:$0xff]
        %v275 = vld [vmem:[%s1 + $0x8] sm:$0xff]
        %v276 = vld [vmem:[%s2] sm:$0xff]
        %v277 = vld [vmem:[%s2 + $0x8] sm:$0xff]
        %v278 = vld [vmem:[%s3] sm:$0xff]
        %v279 = vld [vmem:[%s3 + $0x8] sm:$0xff]
        %v280 = vld [vmem:[%s4] sm:$0xff]
        %v281 = vld [vmem:[%s4 + $0x8] sm:$0xff]
        %v282 = vld [vmem:[%s5] sm:$0xf]
        %v283 = vld [vmem:[%s6] sm:$0xf]
        %v284 = vlaneseq
        %v285 = vand.u32 %v284, 127
        %vm286 = vcmp.ge.s32.totalorder %v285, 16
        %v287 = vld [vmem:[%s273] sm:$0xf]
        %vm288 = vcmask 31744
        %v290 = vsel %vm288, %v274, 0
        %v293 = vsel %vm288, %v275, 0
        %vm295 = vcmask 1043456
        %v297 = vsel %vm295, %v287, 0
        %299 = vmatprep.subr.mxu0 0.0
        %v300 = vand.u32 %v297, 4294901760
        %301 = vmatpush1.msra.mxu0 %v300
        %302 = vmatprep.subr.mxu0 0.0
        %303 = vmatpush1.msra.mxu0 0.0
        %304 = vmatprep.subr.mxu0 0.0
        %305 = vmatpush1.msra.mxu0 0.0
        %306 = vmatprep.subr.mxu0 0.0
        %307 = vmatpush1.msra.mxu0 0.0
        %308 = vmatprep.subr.mxu0 0.0
        %309 = vmatpush1.msra.mxu0 0.0
        %310 = vmatprep.subr.mxu0 0.0
        %311 = vmatpush1.msra.mxu0 0.0
        %312 = vmatprep.subr.mxu0 0.0
        %313 = vmatpush1.msra.mxu0 0.0
        %314 = vmatprep.subr.mxu0 0.0
        %315 = vmatpush1.msra.mxu0 0.0
        %316 = vmatprep.subr.mxu0 0.0
        %317 = vmatpush1.msra.mxu0 0.0
        %318 = vmatprep.subr.mxu0 0.0
        %319 = vmatpush1.msra.mxu0 0.0
        %320 = vmatprep.subr.mxu0 0.0
        %321 = vmatpush1.msra.mxu0 0.0
        %322 = vmatprep.subr.mxu0 0.0
        %323 = vmatpush1.msra.mxu0 0.0
        %324 = vmatprep.subr.mxu0 0.0
        %325 = vmatpush1.msra.mxu0 0.0
        %326 = vmatprep.subr.mxu0 0.0
        %327 = vmatpush1.msra.mxu0 0.0
        %328 = vmatprep.subr.mxu0 0.0
        %329 = vmatpush1.msra.mxu0 0.0
        %330 = vmatprep.subr.mxu0 0.0
        %331 = vmatpush1.msra.mxu0 0.0
        %332 = vmatprep.subr.mxu0 0.0
        %333 = vmatpush1.msra.mxu0 0.0
        %334 = vmatprep.subr.mxu0 0.0
        %335 = vmatpush1.msra.mxu0 0.0
        %336 = vmatprep.subr.mxu0 0.0
        %337 = vmatpush1.msra.mxu0 0.0
        %338 = vmatprep.subr.mxu0 0.0
        %339 = vmatpush1.msra.mxu0 0.0
        %340 = vmatprep.subr.mxu0 0.0
        %341 = vmatpush1.msra.mxu0 0.0
        %342 = vmatprep.subr.mxu0 0.0
        %343 = vmatpush1.msra.mxu0 0.0
        %344 = vmatprep.subr.mxu0 0.0
        %345 = vmatpush1.msra.mxu0 0.0
        %346 = vmatprep.subr.mxu0 0.0
        %347 = vmatpush1.msra.mxu0 0.0
        %348 = vmatprep.subr.mxu0 0.0
        %349 = vmatpush1.msra.mxu0 0.0
        %350 = vmatprep.subr.mxu0 0.0
        %351 = vmatpush1.msra.mxu0 0.0
        %352 = vmatprep.subr.mxu0 0.0
        %353 = vmatpush1.msra.mxu0 0.0
        %354 = vmatprep.subr.mxu0 0.0
        %355 = vmatpush1.msra.mxu0 0.0
        %356 = vmatprep.subr.mxu0 0.0
        %357 = vmatpush1.msra.mxu0 0.0
        %358 = vmatprep.subr.mxu0 0.0
        %359 = vmatpush1.msra.mxu0 0.0
        %360 = vmatprep.subr.mxu0 0.0
        %361 = vmatpush1.msra.mxu0 0.0
        %362 = vmatprep.subr.mxu0 0.0
        %363 = vmatpush1.msra.mxu0 0.0
        %364 = vmatprep.mubr.f32.mxu0 0.0
        %v365 = vand.u32 %v290, 4294901760
        %v366 = vsub.f32 %v290, %v365
        %v367 = vand.u32 %v366, 4294901760
        %v368 = vsub.f32 %v366, %v367
        %v369 = vand.u32 %v368, 4294901760
        %370 = vmatmul.mubr.f32.gmra.mrb[0].mxu0 %v369
        %v371 = vpop.f32.mrb[0].mxu0
        %v372 = vadd.f32 0.0, %v371
        %v373 = vpop.f32.mrb[0].mxu0
        %374 = vmatprep.mubr.f32.mxu0 0.0
        %v375 = vand.u32 %v293, 4294901760
        %v376 = vsub.f32 %v293, %v375
        %v377 = vand.u32 %v376, 4294901760
        %v378 = vsub.f32 %v376, %v377
        %v379 = vand.u32 %v378, 4294901760
        %380 = vmatmul.mubr.f32.gmra.mrb[0].mxu0 %v379
        %v381 = vpop.f32.mrb[0].mxu0
        %v382 = vadd.f32 0.0, %v381
        %v383 = vpop.f32.mrb[0].mxu0
        %384 = vdwg.mxu0
        %385 = vmatprep.subr.mxu0 0.0
        %v386 = vand.u32 %v297, 4294901760
        %v387 = vsub.f32 %v297, %v386
        %v388 = vand.u32 %v387, 4294901760
        %v389 = vsub.f32 %v387, %v388
        %v390 = vand.u32 %v389, 4294901760
        %391 = vmatpush1.msra.mxu0 %v390
        %392 = vmatprep.subr.mxu0 0.0
        %393 = vmatpush1.msra.mxu0 0.0
        %394 = vmatprep.subr.mxu0 0.0
        %395 = vmatpush1.msra.mxu0 0.0
        %396 = vmatprep.subr.mxu0 0.0
        %397 = vmatpush1.msra.mxu0 0.0
        %398 = vmatprep.subr.mxu0 0.0
        %399 = vmatpush1.msra.mxu0 0.0
        %400 = vmatprep.subr.mxu0 0.0
        %401 = vmatpush1.msra.mxu0 0.0
        %402 = vmatprep.subr.mxu0 0.0
        %403 = vmatpush1.msra.mxu0 0.0
        %404 = vmatprep.subr.mxu0 0.0
        %405 = vmatpush1.msra.mxu0 0.0
        %406 = vmatprep.subr.mxu0 0.0
        %407 = vmatpush1.msra.mxu0 0.0
        %408 = vmatprep.subr.mxu0 0.0
        %409 = vmatpush1.msra.mxu0 0.0
        %410 = vmatprep.subr.mxu0 0.0
        %411 = vmatpush1.msra.mxu0 0.0
        %412 = vmatprep.subr.mxu0 0.0
        %413 = vmatpush1.msra.mxu0 0.0
        %414 = vmatprep.subr.mxu0 0.0
        %415 = vmatpush1.msra.mxu0 0.0
        %416 = vmatprep.subr.mxu0 0.0
        %417 = vmatpush1.msra.mxu0 0.0
        %418 = vmatprep.subr.mxu0 0.0
        %419 = vmatpush1.msra.mxu0 0.0
        %420 = vmatprep.subr.mxu0 0.0
        %421 = vmatpush1.msra.mxu0 0.0
        %422 = vmatprep.subr.mxu0 0.0
        %423 = vmatpush1.msra.mxu0 0.0
        %424 = vmatprep.subr.mxu0 0.0
        %425 = vmatpush1.msra.mxu0 0.0
        %426 = vmatprep.subr.mxu0 0.0
        %427 = vmatpush1.msra.mxu0 0.0
        %428 = vmatprep.subr.mxu0 0.0
        %429 = vmatpush1.msra.mxu0 0.0
        %430 = vmatprep.subr.mxu0 0.0
        %431 = vmatpush1.msra.mxu0 0.0
        %432 = vmatprep.subr.mxu0 0.0
        %433 = vmatpush1.msra.mxu0 0.0
        %434 = vmatprep.subr.mxu0 0.0
        %435 = vmatpush1.msra.mxu0 0.0
        %436 = vmatprep.subr.mxu0 0.0
        %437 = vmatpush1.msra.mxu0 0.0
        %438 = vmatprep.subr.mxu0 0.0
        %439 = vmatpush1.msra.mxu0 0.0
        %440 = vmatprep.subr.mxu0 0.0
        %441 = vmatpush1.msra.mxu0 0.0
        %442 = vmatprep.subr.mxu0 0.0
        %443 = vmatpush1.msra.mxu0 0.0
        %444 = vmatprep.subr.mxu0 0.0
        %445 = vmatpush1.msra.mxu0 0.0
        %446 = vmatprep.subr.mxu0 0.0
        %447 = vmatpush1.msra.mxu0 0.0
        %448 = vmatprep.subr.mxu0 0.0
        %449 = vmatpush1.msra.mxu0 0.0
        %450 = vmatprep.subr.mxu0 0.0
        %451 = vmatpush1.msra.mxu0 0.0
        %452 = vmatprep.subr.mxu0 0.0
        %453 = vmatpush1.msra.mxu0 0.0
        %454 = vmatprep.mubr.f32.mxu0 0.0
        %v455 = vand.u32 %v290, 4294901760
        %456 = vmatmul.mubr.f32.gmra.mrb[0].mxu0 %v455
        %v457 = vpop.f32.mrb[0].mxu0
        %v458 = vadd.f32 %v372, %v457
        %v459 = vpop.f32.mrb[0].mxu0
        %460 = vmatprep.mubr.f32.mxu0 0.0
        %v461 = vand.u32 %v293, 4294901760
        %462 = vmatmul.mubr.f32.gmra.mrb[0].mxu0 %v461
        %v463 = vpop.f32.mrb[0].mxu0
        %v464 = vadd.f32 %v382, %v463
        %v465 = vpop.f32.mrb[0].mxu0
        %466 = vdwg.mxu0
        %467 = vmatprep.subr.mxu0 0.0
        %v468 = vand.u32 %v297, 4294901760
        %v469 = vsub.f32 %v297, %v468
        %470 = vmatpush1.msra.mxu0 %v469
        %471 = vmatprep.subr.mxu0 0.0
        %472 = vmatpush1.msra.mxu0 0.0
        %473 = vmatprep.subr.mxu0 0.0
        %474 = vmatpush1.msra.mxu0 0.0
        %475 = vmatprep.subr.mxu0 0.0
        %476 = vmatpush1.msra.mxu0 0.0
        %477 = vmatprep.subr.mxu0 0.0
        %478 = vmatpush1.msra.mxu0 0.0
        %479 = vmatprep.subr.mxu0 0.0
        %480 = vmatpush1.msra.mxu0 0.0
        %481 = vmatprep.subr.mxu0 0.0
        %482 = vmatpush1.msra.mxu0 0.0
        %483 = vmatprep.subr.mxu0 0.0
        %484 = vmatpush1.msra.mxu0 0.0
        %485 = vmatprep.subr.mxu0 0.0
        %486 = vmatpush1.msra.mxu0 0.0
        %487 = vmatprep.subr.mxu0 0.0
        %488 = vmatpush1.msra.mxu0 0.0
        %489 = vmatprep.subr.mxu0 0.0
        %490 = vmatpush1.msra.mxu0 0.0
        %491 = vmatprep.subr.mxu0 0.0
        %492 = vmatpush1.msra.mxu0 0.0
        %493 = vmatprep.subr.mxu0 0.0
        %494 = vmatpush1.msra.mxu0 0.0
        %495 = vmatprep.subr.mxu0 0.0
        %496 = vmatpush1.msra.mxu0 0.0
        %497 = vmatprep.subr.mxu0 0.0
        %498 = vmatpush1.msra.mxu0 0.0
        %499 = vmatprep.subr.mxu0 0.0
        %500 = vmatpush1.msra.mxu0 0.0
        %501 = vmatprep.subr.mxu0 0.0
        %502 = vmatpush1.msra.mxu0 0.0
        %503 = vmatprep.subr.mxu0 0.0
        %504 = vmatpush1.msra.mxu0 0.0
        %505 = vmatprep.subr.mxu0 0.0
        %506 = vmatpush1.msra.mxu0 0.0
        %507 = vmatprep.subr.mxu0 0.0
        %508 = vmatpush1.msra.mxu0 0.0
        %509 = vmatprep.subr.mxu0 0.0
        %510 = vmatpush1.msra.mxu0 0.0
        %511 = vmatprep.subr.mxu0 0.0
        %512 = vmatpush1.msra.mxu0 0.0
        %513 = vmatprep.subr.mxu0 0.0
        %514 = vmatpush1.msra.mxu0 0.0
        %515 = vmatprep.subr.mxu0 0.0
        %516 = vmatpush1.msra.mxu0 0.0
        %517 = vmatprep.subr.mxu0 0.0
        %518 = vmatpush1.msra.mxu0 0.0
        %519 = vmatprep.subr.mxu0 0.0
        %520 = vmatpush1.msra.mxu0 0.0
        %521 = vmatprep.subr.mxu0 0.0
        %522 = vmatpush1.msra.mxu0 0.0
        %523 = vmatprep.subr.mxu0 0.0
        %524 = vmatpush1.msra.mxu0 0.0
        %525 = vmatprep.subr.mxu0 0.0
        %526 = vmatpush1.msra.mxu0 0.0
        %527 = vmatprep.subr.mxu0 0.0
        %528 = vmatpush1.msra.mxu0 0.0
        %529 = vmatprep.subr.mxu0 0.0
        %530 = vmatpush1.msra.mxu0 0.0
        %531 = vmatprep.subr.mxu0 0.0
        %532 = vmatpush1.msra.mxu0 0.0
        %533 = vmatprep.mubr.f32.mxu0 0.0
        %v534 = vand.u32 %v290, 4294901760
        %v535 = vsub.f32 %v290, %v534
        %536 = vmatmul.mubr.f32.gmra.mrb[0].mxu0 %v535
        %v537 = vpop.f32.mrb[0].mxu0
        %v538 = vadd.f32 %v458, %v537
        %v539 = vpop.f32.mrb[0].mxu0
        %540 = vmatprep.mubr.f32.mxu0 0.0
        %v541 = vand.u32 %v293, 4294901760
        %v542 = vsub.f32 %v293, %v541
        %543 = vmatmul.mubr.f32.gmra.mrb[0].mxu0 %v542
        %v544 = vpop.f32.mrb[0].mxu0
        %v545 = vadd.f32 %v464, %v544
        %v546 = vpop.f32.mrb[0].mxu0
        %547 = vdwg.mxu0
        %548 = vmatprep.subr.mxu0 0.0
        %v549 = vand.u32 %v297, 4294901760
        %550 = vmatpush1.msra.mxu0 %v549
        %551 = vmatprep.subr.mxu0 0.0
        %552 = vmatpush1.msra.mxu0 0.0
        %553 = vmatprep.subr.mxu0 0.0
        %554 = vmatpush1.msra.mxu0 0.0
        %555 = vmatprep.subr.mxu0 0.0
        %556 = vmatpush1.msra.mxu0 0.0
        %557 = vmatprep.subr.mxu0 0.0
        %558 = vmatpush1.msra.mxu0 0.0
        %559 = vmatprep.subr.mxu0 0.0
        %560 = vmatpush1.msra.mxu0 0.0
        %561 = vmatprep.subr.mxu0 0.0
        %562 = vmatpush1.msra.mxu0 0.0
        %563 = vmatprep.subr.mxu0 0.0
        %564 = vmatpush1.msra.mxu0 0.0
        %565 = vmatprep.subr.mxu0 0.0
        %566 = vmatpush1.msra.mxu0 0.0
        %567 = vmatprep.subr.mxu0 0.0
        %568 = vmatpush1.msra.mxu0 0.0
        %569 = vmatprep.subr.mxu0 0.0
        %570 = vmatpush1.msra.mxu0 0.0
        %571 = vmatprep.subr.mxu0 0.0
        %572 = vmatpush1.msra.mxu0 0.0
        %573 = vmatprep.subr.mxu0 0.0
        %574 = vmatpush1.msra.mxu0 0.0
        %575 = vmatprep.subr.mxu0 0.0
        %576 = vmatpush1.msra.mxu0 0.0
        %577 = vmatprep.subr.mxu0 0.0
        %578 = vmatpush1.msra.mxu0 0.0
        %579 = vmatprep.subr.mxu0 0.0
        %580 = vmatpush1.msra.mxu0 0.0
        %581 = vmatprep.subr.mxu0 0.0
        %582 = vmatpush1.msra.mxu0 0.0
        %583 = vmatprep.subr.mxu0 0.0
        %584 = vmatpush1.msra.mxu0 0.0
        %585 = vmatprep.subr.mxu0 0.0
        %586 = vmatpush1.msra.mxu0 0.0
        %587 = vmatprep.subr.mxu0 0.0
        %588 = vmatpush1.msra.mxu0 0.0
        %589 = vmatprep.subr.mxu0 0.0
        %590 = vmatpush1.msra.mxu0 0.0
        %591 = vmatprep.subr.mxu0 0.0
        %592 = vmatpush1.msra.mxu0 0.0
        %593 = vmatprep.subr.mxu0 0.0
        %594 = vmatpush1.msra.mxu0 0.0
        %595 = vmatprep.subr.mxu0 0.0
        %596 = vmatpush1.msra.mxu0 0.0
        %597 = vmatprep.subr.mxu0 0.0
        %598 = vmatpush1.msra.mxu0 0.0
        %599 = vmatprep.subr.mxu0 0.0
        %600 = vmatpush1.msra.mxu0 0.0
        %601 = vmatprep.subr.mxu0 0.0
        %602 = vmatpush1.msra.mxu0 0.0
        %603 = vmatprep.subr.mxu0 0.0
        %604 = vmatpush1.msra.mxu0 0.0
        %605 = vmatprep.subr.mxu0 0.0
        %606 = vmatpush1.msra.mxu0 0.0
        %607 = vmatprep.subr.mxu0 0.0
        %608 = vmatpush1.msra.mxu0 0.0
        %609 = vmatprep.subr.mxu0 0.0
        %610 = vmatpush1.msra.mxu0 0.0
        %611 = vmatprep.subr.mxu0 0.0
        %612 = vmatpush1.msra.mxu0 0.0
        %613 = vmatprep.mubr.f32.mxu0 0.0
        %v614 = vand.u32 %v290, 4294901760
        %v615 = vsub.f32 %v290, %v614
        %v616 = vand.u32 %v615, 4294901760
        %617 = vmatmul.mubr.f32.gmra.mrb[0].mxu0 %v616
        %v618 = vpop.f32.mrb[0].mxu0
        %v619 = vadd.f32 %v538, %v618
        %v620 = vpop.f32.mrb[0].mxu0
        %621 = vmatprep.mubr.f32.mxu0 0.0
        %v622 = vand.u32 %v293, 4294901760
        %v623 = vsub.f32 %v293, %v622
        %v624 = vand.u32 %v623, 4294901760
        %625 = vmatmul.mubr.f32.gmra.mrb[0].mxu0 %v624
        %v626 = vpop.f32.mrb[0].mxu0
        %v627 = vadd.f32 %v545, %v626
        %v628 = vpop.f32.mrb[0].mxu0
        %629 = vdwg.mxu0
        %630 = vmatprep.subr.mxu0 0.0
        %v631 = vand.u32 %v297, 4294901760
        %v632 = vsub.f32 %v297, %v631
        %v633 = vand.u32 %v632, 4294901760
        %634 = vmatpush1.msra.mxu0 %v633
        %635 = vmatprep.subr.mxu0 0.0
        %636 = vmatpush1.msra.mxu0 0.0
        %637 = vmatprep.subr.mxu0 0.0
        %638 = vmatpush1.msra.mxu0 0.0
        %639 = vmatprep.subr.mxu0 0.0
        %640 = vmatpush1.msra.mxu0 0.0
        %641 = vmatprep.subr.mxu0 0.0
        %642 = vmatpush1.msra.mxu0 0.0
        %643 = vmatprep.subr.mxu0 0.0
        %644 = vmatpush1.msra.mxu0 0.0
        %645 = vmatprep.subr.mxu0 0.0
        %646 = vmatpush1.msra.mxu0 0.0
        %647 = vmatprep.subr.mxu0 0.0
        %648 = vmatpush1.msra.mxu0 0.0
        %649 = vmatprep.subr.mxu0 0.0
        %650 = vmatpush1.msra.mxu0 0.0
        %651 = vmatprep.subr.mxu0 0.0
        %652 = vmatpush1.msra.mxu0 0.0
        %653 = vmatprep.subr.mxu0 0.0
        %654 = vmatpush1.msra.mxu0 0.0
        %655 = vmatprep.subr.mxu0 0.0
        %656 = vmatpush1.msra.mxu0 0.0
        %657 = vmatprep.subr.mxu0 0.0
        %658 = vmatpush1.msra.mxu0 0.0
        %659 = vmatprep.subr.mxu0 0.0
        %660 = vmatpush1.msra.mxu0 0.0
        %661 = vmatprep.subr.mxu0 0.0
        %662 = vmatpush1.msra.mxu0 0.0
        %663 = vmatprep.subr.mxu0 0.0
        %664 = vmatpush1.msra.mxu0 0.0
        %665 = vmatprep.subr.mxu0 0.0
        %666 = vmatpush1.msra.mxu0 0.0
        %667 = vmatprep.subr.mxu0 0.0
        %668 = vmatpush1.msra.mxu0 0.0
        %669 = vmatprep.subr.mxu0 0.0
        %670 = vmatpush1.msra.mxu0 0.0
        %671 = vmatprep.subr.mxu0 0.0
        %672 = vmatpush1.msra.mxu0 0.0
        %673 = vmatprep.subr.mxu0 0.0
        %674 = vmatpush1.msra.mxu0 0.0
        %675 = vmatprep.subr.mxu0 0.0
        %676 = vmatpush1.msra.mxu0 0.0
        %677 = vmatprep.subr.mxu0 0.0
        %678 = vmatpush1.msra.mxu0 0.0
        %679 = vmatprep.subr.mxu0 0.0
        %680 = vmatpush1.msra.mxu0 0.0
        %681 = vmatprep.subr.mxu0 0.0
        %682 = vmatpush1.msra.mxu0 0.0
        %683 = vmatprep.subr.mxu0 0.0
        %684 = vmatpush1.msra.mxu0 0.0
        %685 = vmatprep.subr.mxu0 0.0
        %686 = vmatpush1.msra.mxu0 0.0
        %687 = vmatprep.subr.mxu0 0.0
        %688 = vmatpush1.msra.mxu0 0.0
        %689 = vmatprep.subr.mxu0 0.0
        %690 = vmatpush1.msra.mxu0 0.0
        %691 = vmatprep.subr.mxu0 0.0
        %692 = vmatpush1.msra.mxu0 0.0
        %693 = vmatprep.subr.mxu0 0.0
        %694 = vmatpush1.msra.mxu0 0.0
        %695 = vmatprep.subr.mxu0 0.0
        %696 = vmatpush1.msra.mxu0 0.0
        %697 = vmatprep.mubr.f32.mxu0 0.0
        %v698 = vand.u32 %v290, 4294901760
        %699 = vmatmul.mubr.f32.gmra.mrb[0].mxu0 %v698
        %v700 = vpop.f32.mrb[0].mxu0
        %v701 = vadd.f32 %v619, %v700
        %v702 = vpop.f32.mrb[0].mxu0
        %703 = vmatprep.mubr.f32.mxu0 0.0
        %v704 = vand.u32 %v293, 4294901760
        %705 = vmatmul.mubr.f32.gmra.mrb[0].mxu0 %v704
        %v706 = vpop.f32.mrb[0].mxu0
        %v707 = vadd.f32 %v627, %v706
        %v708 = vpop.f32.mrb[0].mxu0
        %709 = vdwg.mxu0
        %710 = vmatprep.subr.mxu0 0.0
        %v711 = vand.u32 %v297, 4294901760
        %712 = vmatpush1.msra.mxu0 %v711
        %713 = vmatprep.subr.mxu0 0.0
        %714 = vmatpush1.msra.mxu0 0.0
        %715 = vmatprep.subr.mxu0 0.0
        %716 = vmatpush1.msra.mxu0 0.0
        %717 = vmatprep.subr.mxu0 0.0
        %718 = vmatpush1.msra.mxu0 0.0
        %719 = vmatprep.subr.mxu0 0.0
        %720 = vmatpush1.msra.mxu0 0.0
        %721 = vmatprep.subr.mxu0 0.0
        %722 = vmatpush1.msra.mxu0 0.0
        %723 = vmatprep.subr.mxu0 0.0
        %724 = vmatpush1.msra.mxu0 0.0
        %725 = vmatprep.subr.mxu0 0.0
        %726 = vmatpush1.msra.mxu0 0.0
        %727 = vmatprep.subr.mxu0 0.0
        %728 = vmatpush1.msra.mxu0 0.0
        %729 = vmatprep.subr.mxu0 0.0
        %730 = vmatpush1.msra.mxu0 0.0
        %731 = vmatprep.subr.mxu0 0.0
        %732 = vmatpush1.msra.mxu0 0.0
        %733 = vmatprep.subr.mxu0 0.0
        %734 = vmatpush1.msra.mxu0 0.0
        %735 = vmatprep.subr.mxu0 0.0
        %736 = vmatpush1.msra.mxu0 0.0
        %737 = vmatprep.subr.mxu0 0.0
        %738 = vmatpush1.msra.mxu0 0.0
        %739 = vmatprep.subr.mxu0 0.0
        %740 = vmatpush1.msra.mxu0 0.0
        %741 = vmatprep.subr.mxu0 0.0
        %742 = vmatpush1.msra.mxu0 0.0
        %743 = vmatprep.subr.mxu0 0.0
        %744 = vmatpush1.msra.mxu0 0.0
        %745 = vmatprep.subr.mxu0 0.0
        %746 = vmatpush1.msra.mxu0 0.0
        %747 = vmatprep.subr.mxu0 0.0
        %748 = vmatpush1.msra.mxu0 0.0
        %749 = vmatprep.subr.mxu0 0.0
        %750 = vmatpush1.msra.mxu0 0.0
        %751 = vmatprep.subr.mxu0 0.0
        %752 = vmatpush1.msra.mxu0 0.0
        %753 = vmatprep.subr.mxu0 0.0
        %754 = vmatpush1.msra.mxu0 0.0
        %755 = vmatprep.subr.mxu0 0.0
        %756 = vmatpush1.msra.mxu0 0.0
        %757 = vmatprep.subr.mxu0 0.0
        %758 = vmatpush1.msra.mxu0 0.0
        %759 = vmatprep.subr.mxu0 0.0
        %760 = vmatpush1.msra.mxu0 0.0
        %761 = vmatprep.subr.mxu0 0.0
        %762 = vmatpush1.msra.mxu0 0.0
        %763 = vmatprep.subr.mxu0 0.0
        %764 = vmatpush1.msra.mxu0 0.0
        %765 = vmatprep.subr.mxu0 0.0
        %766 = vmatpush1.msra.mxu0 0.0
        %767 = vmatprep.subr.mxu0 0.0
        %768 = vmatpush1.msra.mxu0 0.0
        %769 = vmatprep.subr.mxu0 0.0
        %770 = vmatpush1.msra.mxu0 0.0
        %771 = vmatprep.subr.mxu0 0.0
        %772 = vmatpush1.msra.mxu0 0.0
        %773 = vmatprep.subr.mxu0 0.0
        %774 = vmatpush1.msra.mxu0 0.0
        %775 = vmatprep.mubr.f32.mxu0 0.0
        %v776 = vand.u32 %v290, 4294901760
        %777 = vmatmul.mubr.f32.gmra.mrb[0].mxu0 %v776
        %v778 = vpop.f32.mrb[0].mxu0
        %v779 = vadd.f32 %v701, %v778
        %v780 = vpop.f32.mrb[0].mxu0
        %781 = vmatprep.mubr.f32.mxu0 0.0
        %v782 = vand.u32 %v293, 4294901760
        %783 = vmatmul.mubr.f32.gmra.mrb[0].mxu0 %v782
        %v784 = vpop.f32.mrb[0].mxu0
        %v785 = vadd.f32 %v707, %v784
        %v786 = vpop.f32.mrb[0].mxu0
        %787 = vdwg.mxu0
        %v788 = vmul.f32 %v779, %v779
        %v789 = vmul.f32 %v785, %v785
        %v790 = vadd.f32 %v788, %v789
        %791 = vadd.xlane.f32.xlu0 %v790
        %v792 = vpop.xlane.xlu0 %791
        %v793 = vrot.slane %v792, 4
        %v794 = vadd.f32 %v792, %v793
        %v795 = vrot.slane %v794, 2
        %v796 = vadd.f32 %v794, %v795
        %v797 = vrot.slane %v796, 1
        %v798 = vadd.f32 %v796, %v797
        %s799 = vtos %v798
        %s800 = smul.f32 %s799, 0.00390625
        %s801 = sadd.f32 %s800, 1.1920929e-07
        %v802 = vstv %s801
        %v803 = vrsqrt.pop %v802
        %s804 = vtos %v803
        %v805 = vstv %s804
        %v806 = vmul.f32 %v779, %v805
        %v807 = vmul.f32 %v785, %v805
        %v808 = vmul.f32 %v806, %v276
        %v809 = vmul.f32 %v807, %v277
        %v810 = vmul.f32 %v808, 0.5
        %v811 = vmul.f32 %v809, 0.5
        %v812 = vmul.f32 %v808, 0.70710677
        %v813 = vmul.f32 %v809, 0.70710677
        %v814 = verf.f32.pop %v812
        %v815 = verf.f32.pop %v813
        %v816 = vadd.f32 %v814, 1.0
        %v817 = vadd.f32 %v815, 1.0
        %v818 = vmul.f32 %v810, %v816
        %v819 = vmul.f32 %v811, %v817
        %820 = vrot.lane.b32.xlu0 %v818, 1
        %v821 = vpop.permute.xlu0 %820
        %822 = vrot.lane.b32.xlu0 %v819, 1
        %v823 = vpop.permute.xlu0 %822
        %824 = vrot.lane.b32.xlu0 %v818, 127
        %v825 = vpop.permute.xlu0 %824
        %826 = vrot.lane.b32.xlu0 %v819, 127
        %v827 = vpop.permute.xlu0 %826
        %829 = vset.pattern.permute.xlu0 1
        %830 = vperm.xlu0 %829, %v278
        %v831 = vpop.permute.xlu0 %830
        %834 = vset.pattern.permute.xlu0 1
        %835 = vperm.xlu0 %834, %v279
        %v836 = vpop.permute.xlu0 %835
        %v838 = vmul.f32 %v831, %v818
        %v839 = vmul.f32 %v836, %v819
        %840 = vset.pattern.permute.xlu0 0
        %841 = vperm.xlu0 %840, %v278
        %v842 = vpop.permute.xlu0 %841
        %844 = vset.pattern.permute.xlu0 0
        %845 = vperm.xlu0 %844, %v279
        %v846 = vpop.permute.xlu0 %845
        %v848 = vmul.f32 %v842, %v821
        %v849 = vmul.f32 %v846, %v823
        %v850 = vadd.f32 %v838, %v848
        %v851 = vadd.f32 %v839, %v849
        %852 = vset.pattern.permute.xlu0 2
        %853 = vperm.xlu0 %852, %v278
        %v854 = vpop.permute.xlu0 %853
        %856 = vset.pattern.permute.xlu0 2
        %857 = vperm.xlu0 %856, %v279
        %v858 = vpop.permute.xlu0 %857
        %v860 = vmul.f32 %v854, %v825
        %v861 = vmul.f32 %v858, %v827
        %v862 = vadd.f32 %v850, %v860
        %v863 = vadd.f32 %v851, %v861
        %v864 = vsel %vm286, 1, 0
        %vm865 = vcmp.eq.s32.totalorder %v864, 1
        %v866 = vsel %vm865, 0.0, %v862
        %v867 = vsel %vm865, 0.0, %v863
        %v868 = vmul.f32 %v866, %v866
        %v869 = vmul.f32 %v867, %v867
        %v870 = vadd.f32 %v868, %v869
        %871 = vadd.xlane.f32.xlu0 %v870
        %v872 = vpop.xlane.xlu0 %871
        %v873 = vrot.slane %v872, 4
        %v874 = vadd.f32 %v872, %v873
        %v875 = vrot.slane %v874, 2
        %v876 = vadd.f32 %v874, %v875
        %v877 = vrot.slane %v876, 1
        %v878 = vadd.f32 %v876, %v877
        %s879 = vtos %v878
        %s880 = smul.f32 %s879, 0.00390625
        %s881 = sadd.f32 %s880, 1.1920929e-07
        %v882 = vstv %s881
        %v883 = vrsqrt.pop %v882
        %s884 = vtos %v883
        %v885 = vstv %s884
        %v886 = vmul.f32 %v866, %v885
        %v887 = vmul.f32 %v867, %v885
        %v888 = vmul.f32 %v886, %v280
        %v889 = vmul.f32 %v887, %v281
        %v890 = vmul.f32 %v888, 0.5
        %v891 = vmul.f32 %v889, 0.5
        %v892 = vmul.f32 %v888, 0.70710677
        %v893 = vmul.f32 %v889, 0.70710677
        %v894 = verf.f32.pop %v892
        %v895 = verf.f32.pop %v893
        %v896 = vadd.f32 %v894, 1.0
        %v897 = vadd.f32 %v895, 1.0
        %v898 = vmul.f32 %v890, %v896
        %v899 = vmul.f32 %v891, %v897
        %vm900 = vcmask 130048
        %v902 = vsel %vm900, %v282, 0
        %904 = vmatprep.subr.mxu0 0.0
        %v905 = vand.u32 %v898, 4294901760
        %906 = vmatpush1.msra.mxu0 %v905
        %907 = vmatprep.subr.mxu0 0.0
        %v908 = vand.u32 %v899, 4294901760
        %909 = vmatpush1.msra.mxu0 %v908
        %910 = vmatprep.subr.mxu0 0.0
        %911 = vmatpush1.msra.mxu0 0.0
        %912 = vmatprep.subr.mxu0 0.0
        %913 = vmatpush1.msra.mxu0 0.0
        %914 = vmatprep.subr.mxu0 0.0
        %915 = vmatpush1.msra.mxu0 0.0
        %916 = vmatprep.subr.mxu0 0.0
        %917 = vmatpush1.msra.mxu0 0.0
        %918 = vmatprep.subr.mxu0 0.0
        %919 = vmatpush1.msra.mxu0 0.0
        %920 = vmatprep.subr.mxu0 0.0
        %921 = vmatpush1.msra.mxu0 0.0
        %922 = vmatprep.subr.mxu0 0.0
        %923 = vmatpush1.msra.mxu0 0.0
        %924 = vmatprep.subr.mxu0 0.0
        %925 = vmatpush1.msra.mxu0 0.0
        %926 = vmatprep.subr.mxu0 0.0
        %927 = vmatpush1.msra.mxu0 0.0
        %928 = vmatprep.subr.mxu0 0.0
        %929 = vmatpush1.msra.mxu0 0.0
        %930 = vmatprep.subr.mxu0 0.0
        %931 = vmatpush1.msra.mxu0 0.0
        %932 = vmatprep.subr.mxu0 0.0
        %933 = vmatpush1.msra.mxu0 0.0
        %934 = vmatprep.subr.mxu0 0.0
        %935 = vmatpush1.msra.mxu0 0.0
        %936 = vmatprep.subr.mxu0 0.0
        %937 = vmatpush1.msra.mxu0 0.0
        %938 = vmatprep.subr.mxu0 0.0
        %939 = vmatpush1.msra.mxu0 0.0
        %940 = vmatprep.subr.mxu0 0.0
        %941 = vmatpush1.msra.mxu0 0.0
        %942 = vmatprep.subr.mxu0 0.0
        %943 = vmatpush1.msra.mxu0 0.0
        %944 = vmatprep.subr.mxu0 0.0
        %945 = vmatpush1.msra.mxu0 0.0
        %946 = vmatprep.subr.mxu0 0.0
        %947 = vmatpush1.msra.mxu0 0.0
        %948 = vmatprep.subr.mxu0 0.0
        %949 = vmatpush1.msra.mxu0 0.0
        %950 = vmatprep.subr.mxu0 0.0
        %951 = vmatpush1.msra.mxu0 0.0
        %952 = vmatprep.subr.mxu0 0.0
        %953 = vmatpush1.msra.mxu0 0.0
        %954 = vmatprep.subr.mxu0 0.0
        %955 = vmatpush1.msra.mxu0 0.0
        %956 = vmatprep.subr.mxu0 0.0
        %957 = vmatpush1.msra.mxu0 0.0
        %958 = vmatprep.subr.mxu0 0.0
        %959 = vmatpush1.msra.mxu0 0.0
        %960 = vmatprep.subr.mxu0 0.0
        %961 = vmatpush1.msra.mxu0 0.0
        %962 = vmatprep.subr.mxu0 0.0
        %963 = vmatpush1.msra.mxu0 0.0
        %964 = vmatprep.subr.mxu0 0.0
        %965 = vmatpush1.msra.mxu0 0.0
        %966 = vmatprep.subr.mxu0 0.0
        %967 = vmatpush1.msra.mxu0 0.0
        %968 = vmatprep.subr.mxu0 0.0
        %969 = vmatpush1.msra.mxu0 0.0
        %970 = vmatprep.mubr.f32.mxu0 0.0
        %v971 = vand.u32 %v902, 4294901760
        %v972 = vsub.f32 %v902, %v971
        %v973 = vand.u32 %v972, 4294901760
        %v974 = vsub.f32 %v972, %v973
        %v975 = vand.u32 %v974, 4294901760
        %976 = vmatmul.mubr.f32.gmra.mrb[0].mxu0 %v975
        %v977 = vpop.f32.mrb[0].mxu0
        %v978 = vadd.f32 0.0, %v977
        %v979 = vpop.f32.mrb[0].mxu0
        %980 = vdwg.mxu0
        %981 = vmatprep.subr.mxu0 0.0
        %v982 = vand.u32 %v898, 4294901760
        %v983 = vsub.f32 %v898, %v982
        %v984 = vand.u32 %v983, 4294901760
        %v985 = vsub.f32 %v983, %v984
        %v986 = vand.u32 %v985, 4294901760
        %987 = vmatpush1.msra.mxu0 %v986
        %988 = vmatprep.subr.mxu0 0.0
        %v989 = vand.u32 %v899, 4294901760
        %v990 = vsub.f32 %v899, %v989
        %v991 = vand.u32 %v990, 4294901760
        %v992 = vsub.f32 %v990, %v991
        %v993 = vand.u32 %v992, 4294901760
        %994 = vmatpush1.msra.mxu0 %v993
        %995 = vmatprep.subr.mxu0 0.0
        %996 = vmatpush1.msra.mxu0 0.0
        %997 = vmatprep.subr.mxu0 0.0
        %998 = vmatpush1.msra.mxu0 0.0
        %999 = vmatprep.subr.mxu0 0.0
        %1000 = vmatpush1.msra.mxu0 0.0
        %1001 = vmatprep.subr.mxu0 0.0
        %1002 = vmatpush1.msra.mxu0 0.0
        %1003 = vmatprep.subr.mxu0 0.0
        %1004 = vmatpush1.msra.mxu0 0.0
        %1005 = vmatprep.subr.mxu0 0.0
        %1006 = vmatpush1.msra.mxu0 0.0
        %1007 = vmatprep.subr.mxu0 0.0
        %1008 = vmatpush1.msra.mxu0 0.0
        %1009 = vmatprep.subr.mxu0 0.0
        %1010 = vmatpush1.msra.mxu0 0.0
        %1011 = vmatprep.subr.mxu0 0.0
        %1012 = vmatpush1.msra.mxu0 0.0
        %1013 = vmatprep.subr.mxu0 0.0
        %1014 = vmatpush1.msra.mxu0 0.0
        %1015 = vmatprep.subr.mxu0 0.0
        %1016 = vmatpush1.msra.mxu0 0.0
        %1017 = vmatprep.subr.mxu0 0.0
        %1018 = vmatpush1.msra.mxu0 0.0
        %1019 = vmatprep.subr.mxu0 0.0
        %1020 = vmatpush1.msra.mxu0 0.0
        %1021 = vmatprep.subr.mxu0 0.0
        %1022 = vmatpush1.msra.mxu0 0.0
        %1023 = vmatprep.subr.mxu0 0.0
        %1024 = vmatpush1.msra.mxu0 0.0
        %1025 = vmatprep.subr.mxu0 0.0
        %1026 = vmatpush1.msra.mxu0 0.0
        %1027 = vmatprep.subr.mxu0 0.0
        %1028 = vmatpush1.msra.mxu0 0.0
        %1029 = vmatprep.subr.mxu0 0.0
        %1030 = vmatpush1.msra.mxu0 0.0
        %1031 = vmatprep.subr.mxu0 0.0
        %1032 = vmatpush1.msra.mxu0 0.0
        %1033 = vmatprep.subr.mxu0 0.0
        %1034 = vmatpush1.msra.mxu0 0.0
        %1035 = vmatprep.subr.mxu0 0.0
        %1036 = vmatpush1.msra.mxu0 0.0
        %1037 = vmatprep.subr.mxu0 0.0
        %1038 = vmatpush1.msra.mxu0 0.0
        %1039 = vmatprep.subr.mxu0 0.0
        %1040 = vmatpush1.msra.mxu0 0.0
        %1041 = vmatprep.subr.mxu0 0.0
        %1042 = vmatpush1.msra.mxu0 0.0
        %1043 = vmatprep.subr.mxu0 0.0
        %1044 = vmatpush1.msra.mxu0 0.0
        %1045 = vmatprep.subr.mxu0 0.0
        %1046 = vmatpush1.msra.mxu0 0.0
        %1047 = vmatprep.subr.mxu0 0.0
        %1048 = vmatpush1.msra.mxu0 0.0
        %1049 = vmatprep.subr.mxu0 0.0
        %1050 = vmatpush1.msra.mxu0 0.0
        %1051 = vmatprep.subr.mxu0 0.0
        %1052 = vmatpush1.msra.mxu0 0.0
        %1053 = vmatprep.subr.mxu0 0.0
        %1054 = vmatpush1.msra.mxu0 0.0
        %1055 = vmatprep.mubr.f32.mxu0 0.0
        %v1056 = vand.u32 %v902, 4294901760
        %1057 = vmatmul.mubr.f32.gmra.mrb[0].mxu0 %v1056
        %v1058 = vpop.f32.mrb[0].mxu0
        %v1059 = vadd.f32 %v978, %v1058
        %v1060 = vpop.f32.mrb[0].mxu0
        %1061 = vdwg.mxu0
        %1062 = vmatprep.subr.mxu0 0.0
        %v1063 = vand.u32 %v898, 4294901760
        %v1064 = vsub.f32 %v898, %v1063
        %1065 = vmatpush1.msra.mxu0 %v1064
        %1066 = vmatprep.subr.mxu0 0.0
        %v1067 = vand.u32 %v899, 4294901760
        %v1068 = vsub.f32 %v899, %v1067
        %1069 = vmatpush1.msra.mxu0 %v1068
        %1070 = vmatprep.subr.mxu0 0.0
        %1071 = vmatpush1.msra.mxu0 0.0
        %1072 = vmatprep.subr.mxu0 0.0
        %1073 = vmatpush1.msra.mxu0 0.0
        %1074 = vmatprep.subr.mxu0 0.0
        %1075 = vmatpush1.msra.mxu0 0.0
        %1076 = vmatprep.subr.mxu0 0.0
        %1077 = vmatpush1.msra.mxu0 0.0
        %1078 = vmatprep.subr.mxu0 0.0
        %1079 = vmatpush1.msra.mxu0 0.0
        %1080 = vmatprep.subr.mxu0 0.0
        %1081 = vmatpush1.msra.mxu0 0.0
        %1082 = vmatprep.subr.mxu0 0.0
        %1083 = vmatpush1.msra.mxu0 0.0
        %1084 = vmatprep.subr.mxu0 0.0
        %1085 = vmatpush1.msra.mxu0 0.0
        %1086 = vmatprep.subr.mxu0 0.0
        %1087 = vmatpush1.msra.mxu0 0.0
        %1088 = vmatprep.subr.mxu0 0.0
        %1089 = vmatpush1.msra.mxu0 0.0
        %1090 = vmatprep.subr.mxu0 0.0
        %1091 = vmatpush1.msra.mxu0 0.0
        %1092 = vmatprep.subr.mxu0 0.0
        %1093 = vmatpush1.msra.mxu0 0.0
        %1094 = vmatprep.subr.mxu0 0.0
        %1095 = vmatpush1.msra.mxu0 0.0
        %1096 = vmatprep.subr.mxu0 0.0
        %1097 = vmatpush1.msra.mxu0 0.0
        %1098 = vmatprep.subr.mxu0 0.0
        %1099 = vmatpush1.msra.mxu0 0.0
        %1100 = vmatprep.subr.mxu0 0.0
        %1101 = vmatpush1.msra.mxu0 0.0
        %1102 = vmatprep.subr.mxu0 0.0
        %1103 = vmatpush1.msra.mxu0 0.0
        %1104 = vmatprep.subr.mxu0 0.0
        %1105 = vmatpush1.msra.mxu0 0.0
        %1106 = vmatprep.subr.mxu0 0.0
        %1107 = vmatpush1.msra.mxu0 0.0
        %1108 = vmatprep.subr.mxu0 0.0
        %1109 = vmatpush1.msra.mxu0 0.0
        %1110 = vmatprep.subr.mxu0 0.0
        %1111 = vmatpush1.msra.mxu0 0.0
        %1112 = vmatprep.subr.mxu0 0.0
        %1113 = vmatpush1.msra.mxu0 0.0
        %1114 = vmatprep.subr.mxu0 0.0
        %1115 = vmatpush1.msra.mxu0 0.0
        %1116 = vmatprep.subr.mxu0 0.0
        %1117 = vmatpush1.msra.mxu0 0.0
        %1118 = vmatprep.subr.mxu0 0.0
        %1119 = vmatpush1.msra.mxu0 0.0
        %1120 = vmatprep.subr.mxu0 0.0
        %1121 = vmatpush1.msra.mxu0 0.0
        %1122 = vmatprep.subr.mxu0 0.0
        %1123 = vmatpush1.msra.mxu0 0.0
        %1124 = vmatprep.subr.mxu0 0.0
        %1125 = vmatpush1.msra.mxu0 0.0
        %1126 = vmatprep.subr.mxu0 0.0
        %1127 = vmatpush1.msra.mxu0 0.0
        %1128 = vmatprep.subr.mxu0 0.0
        %1129 = vmatpush1.msra.mxu0 0.0
        %1130 = vmatprep.mubr.f32.mxu0 0.0
        %v1131 = vand.u32 %v902, 4294901760
        %v1132 = vsub.f32 %v902, %v1131
        %1133 = vmatmul.mubr.f32.gmra.mrb[0].mxu0 %v1132
        %v1134 = vpop.f32.mrb[0].mxu0
        %v1135 = vadd.f32 %v1059, %v1134
        %v1136 = vpop.f32.mrb[0].mxu0
        %1137 = vdwg.mxu0
        %1138 = vmatprep.subr.mxu0 0.0
        %v1139 = vand.u32 %v898, 4294901760
        %1140 = vmatpush1.msra.mxu0 %v1139
        %1141 = vmatprep.subr.mxu0 0.0
        %v1142 = vand.u32 %v899, 4294901760
        %1143 = vmatpush1.msra.mxu0 %v1142
        %1144 = vmatprep.subr.mxu0 0.0
        %1145 = vmatpush1.msra.mxu0 0.0
        %1146 = vmatprep.subr.mxu0 0.0
        %1147 = vmatpush1.msra.mxu0 0.0
        %1148 = vmatprep.subr.mxu0 0.0
        %1149 = vmatpush1.msra.mxu0 0.0
        %1150 = vmatprep.subr.mxu0 0.0
        %1151 = vmatpush1.msra.mxu0 0.0
        %1152 = vmatprep.subr.mxu0 0.0
        %1153 = vmatpush1.msra.mxu0 0.0
        %1154 = vmatprep.subr.mxu0 0.0
        %1155 = vmatpush1.msra.mxu0 0.0
        %1156 = vmatprep.subr.mxu0 0.0
        %1157 = vmatpush1.msra.mxu0 0.0
        %1158 = vmatprep.subr.mxu0 0.0
        %1159 = vmatpush1.msra.mxu0 0.0
        %1160 = vmatprep.subr.mxu0 0.0
        %1161 = vmatpush1.msra.mxu0 0.0
        %1162 = vmatprep.subr.mxu0 0.0
        %1163 = vmatpush1.msra.mxu0 0.0
        %1164 = vmatprep.subr.mxu0 0.0
        %1165 = vmatpush1.msra.mxu0 0.0
        %1166 = vmatprep.subr.mxu0 0.0
        %1167 = vmatpush1.msra.mxu0 0.0
        %1168 = vmatprep.subr.mxu0 0.0
        %1169 = vmatpush1.msra.mxu0 0.0
        %1170 = vmatprep.subr.mxu0 0.0
        %1171 = vmatpush1.msra.mxu0 0.0
        %1172 = vmatprep.subr.mxu0 0.0
        %1173 = vmatpush1.msra.mxu0 0.0
        %1174 = vmatprep.subr.mxu0 0.0
        %1175 = vmatpush1.msra.mxu0 0.0
        %1176 = vmatprep.subr.mxu0 0.0
        %1177 = vmatpush1.msra.mxu0 0.0
        %1178 = vmatprep.subr.mxu0 0.0
        %1179 = vmatpush1.msra.mxu0 0.0
        %1180 = vmatprep.subr.mxu0 0.0
        %1181 = vmatpush1.msra.mxu0 0.0
        %1182 = vmatprep.subr.mxu0 0.0
        %1183 = vmatpush1.msra.mxu0 0.0
        %1184 = vmatprep.subr.mxu0 0.0
        %1185 = vmatpush1.msra.mxu0 0.0
        %1186 = vmatprep.subr.mxu0 0.0
        %1187 = vmatpush1.msra.mxu0 0.0
        %1188 = vmatprep.subr.mxu0 0.0
        %1189 = vmatpush1.msra.mxu0 0.0
        %1190 = vmatprep.subr.mxu0 0.0
        %1191 = vmatpush1.msra.mxu0 0.0
        %1192 = vmatprep.subr.mxu0 0.0
        %1193 = vmatpush1.msra.mxu0 0.0
        %1194 = vmatprep.subr.mxu0 0.0
        %1195 = vmatpush1.msra.mxu0 0.0
        %1196 = vmatprep.subr.mxu0 0.0
        %1197 = vmatpush1.msra.mxu0 0.0
        %1198 = vmatprep.subr.mxu0 0.0
        %1199 = vmatpush1.msra.mxu0 0.0
        %1200 = vmatprep.subr.mxu0 0.0
        %1201 = vmatpush1.msra.mxu0 0.0
        %1202 = vmatprep.subr.mxu0 0.0
        %1203 = vmatpush1.msra.mxu0 0.0
        %1204 = vmatprep.mubr.f32.mxu0 0.0
        %v1205 = vand.u32 %v902, 4294901760
        %v1206 = vsub.f32 %v902, %v1205
        %v1207 = vand.u32 %v1206, 4294901760
        %1208 = vmatmul.mubr.f32.gmra.mrb[0].mxu0 %v1207
        %v1209 = vpop.f32.mrb[0].mxu0
        %v1210 = vadd.f32 %v1135, %v1209
        %v1211 = vpop.f32.mrb[0].mxu0
        %1212 = vdwg.mxu0
        %1213 = vmatprep.subr.mxu0 0.0
        %v1214 = vand.u32 %v898, 4294901760
        %v1215 = vsub.f32 %v898, %v1214
        %v1216 = vand.u32 %v1215, 4294901760
        %1217 = vmatpush1.msra.mxu0 %v1216
        %1218 = vmatprep.subr.mxu0 0.0
        %v1219 = vand.u32 %v899, 4294901760
        %v1220 = vsub.f32 %v899, %v1219
        %v1221 = vand.u32 %v1220, 4294901760
        %1222 = vmatpush1.msra.mxu0 %v1221
        %1223 = vmatprep.subr.mxu0 0.0
        %1224 = vmatpush1.msra.mxu0 0.0
        %1225 = vmatprep.subr.mxu0 0.0
        %1226 = vmatpush1.msra.mxu0 0.0
        %1227 = vmatprep.subr.mxu0 0.0
        %1228 = vmatpush1.msra.mxu0 0.0
        %1229 = vmatprep.subr.mxu0 0.0
        %1230 = vmatpush1.msra.mxu0 0.0
        %1231 = vmatprep.subr.mxu0 0.0
        %1232 = vmatpush1.msra.mxu0 0.0
        %1233 = vmatprep.subr.mxu0 0.0
        %1234 = vmatpush1.msra.mxu0 0.0
        %1235 = vmatprep.subr.mxu0 0.0
        %1236 = vmatpush1.msra.mxu0 0.0
        %1237 = vmatprep.subr.mxu0 0.0
        %1238 = vmatpush1.msra.mxu0 0.0
        %1239 = vmatprep.subr.mxu0 0.0
        %1240 = vmatpush1.msra.mxu0 0.0
        %1241 = vmatprep.subr.mxu0 0.0
        %1242 = vmatpush1.msra.mxu0 0.0
        %1243 = vmatprep.subr.mxu0 0.0
        %1244 = vmatpush1.msra.mxu0 0.0
        %1245 = vmatprep.subr.mxu0 0.0
        %1246 = vmatpush1.msra.mxu0 0.0
        %1247 = vmatprep.subr.mxu0 0.0
        %1248 = vmatpush1.msra.mxu0 0.0
        %1249 = vmatprep.subr.mxu0 0.0
        %1250 = vmatpush1.msra.mxu0 0.0
        %1251 = vmatprep.subr.mxu0 0.0
        %1252 = vmatpush1.msra.mxu0 0.0
        %1253 = vmatprep.subr.mxu0 0.0
        %1254 = vmatpush1.msra.mxu0 0.0
        %1255 = vmatprep.subr.mxu0 0.0
        %1256 = vmatpush1.msra.mxu0 0.0
        %1257 = vmatprep.subr.mxu0 0.0
        %1258 = vmatpush1.msra.mxu0 0.0
        %1259 = vmatprep.subr.mxu0 0.0
        %1260 = vmatpush1.msra.mxu0 0.0
        %1261 = vmatprep.subr.mxu0 0.0
        %1262 = vmatpush1.msra.mxu0 0.0
        %1263 = vmatprep.subr.mxu0 0.0
        %1264 = vmatpush1.msra.mxu0 0.0
        %1265 = vmatprep.subr.mxu0 0.0
        %1266 = vmatpush1.msra.mxu0 0.0
        %1267 = vmatprep.subr.mxu0 0.0
        %1268 = vmatpush1.msra.mxu0 0.0
        %1269 = vmatprep.subr.mxu0 0.0
        %1270 = vmatpush1.msra.mxu0 0.0
        %1271 = vmatprep.subr.mxu0 0.0
        %1272 = vmatpush1.msra.mxu0 0.0
        %1273 = vmatprep.subr.mxu0 0.0
        %1274 = vmatpush1.msra.mxu0 0.0
        %1275 = vmatprep.subr.mxu0 0.0
        %1276 = vmatpush1.msra.mxu0 0.0
        %1277 = vmatprep.subr.mxu0 0.0
        %1278 = vmatpush1.msra.mxu0 0.0
        %1279 = vmatprep.subr.mxu0 0.0
        %1280 = vmatpush1.msra.mxu0 0.0
        %1281 = vmatprep.subr.mxu0 0.0
        %1282 = vmatpush1.msra.mxu0 0.0
        %1283 = vmatprep.mubr.f32.mxu0 0.0
        %v1284 = vand.u32 %v902, 4294901760
        %1285 = vmatmul.mubr.f32.gmra.mrb[0].mxu0 %v1284
        %v1286 = vpop.f32.mrb[0].mxu0
        %v1287 = vadd.f32 %v1210, %v1286
        %v1288 = vpop.f32.mrb[0].mxu0
        %1289 = vdwg.mxu0
        %1290 = vmatprep.subr.mxu0 0.0
        %v1291 = vand.u32 %v898, 4294901760
        %1292 = vmatpush1.msra.mxu0 %v1291
        %1293 = vmatprep.subr.mxu0 0.0
        %v1294 = vand.u32 %v899, 4294901760
        %1295 = vmatpush1.msra.mxu0 %v1294
        %1296 = vmatprep.subr.mxu0 0.0
        %1297 = vmatpush1.msra.mxu0 0.0
        %1298 = vmatprep.subr.mxu0 0.0
        %1299 = vmatpush1.msra.mxu0 0.0
        %1300 = vmatprep.subr.mxu0 0.0
        %1301 = vmatpush1.msra.mxu0 0.0
        %1302 = vmatprep.subr.mxu0 0.0
        %1303 = vmatpush1.msra.mxu0 0.0
        %1304 = vmatprep.subr.mxu0 0.0
        %1305 = vmatpush1.msra.mxu0 0.0
        %1306 = vmatprep.subr.mxu0 0.0
        %1307 = vmatpush1.msra.mxu0 0.0
        %1308 = vmatprep.subr.mxu0 0.0
        %1309 = vmatpush1.msra.mxu0 0.0
        %1310 = vmatprep.subr.mxu0 0.0
        %1311 = vmatpush1.msra.mxu0 0.0
        %1312 = vmatprep.subr.mxu0 0.0
        %1313 = vmatpush1.msra.mxu0 0.0
        %1314 = vmatprep.subr.mxu0 0.0
        %1315 = vmatpush1.msra.mxu0 0.0
        %1316 = vmatprep.subr.mxu0 0.0
        %1317 = vmatpush1.msra.mxu0 0.0
        %1318 = vmatprep.subr.mxu0 0.0
        %1319 = vmatpush1.msra.mxu0 0.0
        %1320 = vmatprep.subr.mxu0 0.0
        %1321 = vmatpush1.msra.mxu0 0.0
        %1322 = vmatprep.subr.mxu0 0.0
        %1323 = vmatpush1.msra.mxu0 0.0
        %1324 = vmatprep.subr.mxu0 0.0
        %1325 = vmatpush1.msra.mxu0 0.0
        %1326 = vmatprep.subr.mxu0 0.0
        %1327 = vmatpush1.msra.mxu0 0.0
        %1328 = vmatprep.subr.mxu0 0.0
        %1329 = vmatpush1.msra.mxu0 0.0
        %1330 = vmatprep.subr.mxu0 0.0
        %1331 = vmatpush1.msra.mxu0 0.0
        %1332 = vmatprep.subr.mxu0 0.0
        %1333 = vmatpush1.msra.mxu0 0.0
        %1334 = vmatprep.subr.mxu0 0.0
        %1335 = vmatpush1.msra.mxu0 0.0
        %1336 = vmatprep.subr.mxu0 0.0
        %1337 = vmatpush1.msra.mxu0 0.0
        %1338 = vmatprep.subr.mxu0 0.0
        %1339 = vmatpush1.msra.mxu0 0.0
        %1340 = vmatprep.subr.mxu0 0.0
        %1341 = vmatpush1.msra.mxu0 0.0
        %1342 = vmatprep.subr.mxu0 0.0
        %1343 = vmatpush1.msra.mxu0 0.0
        %1344 = vmatprep.subr.mxu0 0.0
        %1345 = vmatpush1.msra.mxu0 0.0
        %1346 = vmatprep.subr.mxu0 0.0
        %1347 = vmatpush1.msra.mxu0 0.0
        %1348 = vmatprep.subr.mxu0 0.0
        %1349 = vmatpush1.msra.mxu0 0.0
        %1350 = vmatprep.subr.mxu0 0.0
        %1351 = vmatpush1.msra.mxu0 0.0
        %1352 = vmatprep.subr.mxu0 0.0
        %1353 = vmatpush1.msra.mxu0 0.0
        %1354 = vmatprep.subr.mxu0 0.0
        %1355 = vmatpush1.msra.mxu0 0.0
        %1356 = vmatprep.mubr.f32.mxu0 0.0
        %v1357 = vand.u32 %v902, 4294901760
        %1358 = vmatmul.mubr.f32.gmra.mrb[0].mxu0 %v1357
        %v1359 = vpop.f32.mrb[0].mxu0
        %v1360 = vadd.f32 %v1287, %v1359
        %v1361 = vpop.f32.mrb[0].mxu0
        %1362 = vdwg.mxu0
        %v1363 = vmul.f32 %v1360, %v1360
        %v1364 = vsel %vm295, %v1363, 0.0
        %1365 = vadd.xlane.f32.xlu0 %v1364
        %v1366 = vpop.xlane.xlu0 %1365
        %v1367 = vrot.slane %v1366, 4
        %v1368 = vadd.f32 %v1366, %v1367
        %v1369 = vrot.slane %v1368, 2
        %v1370 = vadd.f32 %v1368, %v1369
        %v1371 = vrot.slane %v1370, 1
        %v1372 = vadd.f32 %v1370, %v1371
        %s1373 = vtos %v1372
        %s1374 = smul.f32 %s1373, 0.015625
        %s1375 = sadd.f32 %s1374, 1.1920929e-07
        %v1376 = vstv %s1375
        %v1377 = vrsqrt.pop %v1376
        %s1378 = vtos %v1377
        %v1379 = vstv %s1378
        %v1380 = vmul.f32 %v1360, %v1379
        %v1381 = vmul.f32 %v1380, %v283
        %v1382 = vadd.f32 %v1381, %v287
        %1383 = vst [vmem:[%s269] sm:$0xf] %v1382
        %s1384 = sand.u32 %s181, 1
        %s1385 = scalar_lea.sflag [#allocation3], %s1384
        %s1386 = sand.u32 %s181, 1
        %s1387 = smul.addr %s1386, 4
        %s1388 = scalar_lea.vmem [#allocation2], %s1387
        // Predicated region
        $region49: #{tpu_custom_call.1} parent=47 // pred_check
          %p1389 = pneg %p191
        $region50: #{tpu_custom_call.1} parent=47 // pred_check_branch
          %1391 = sbr.rel (%p1389) target = $region52
        $region51: #{tpu_custom_call.1} parent=47 // pred_region
          %s1393 = ssub.s32 64, 64
          %1394 = vsyncadd %s1385, %s1393
          %s1395 = smul.addr %s21, 64
          %s1396 = scalar_lea.hbm %s7, %s1395
          %s1398 = sshll.u32 %s1388, 4
          %s1399 = int_to_ptr.vmem [resolvable:$true] %s1398
          %1401 = dma.vmem_to_hbm [thread:$0]  %s1399, 64, %s1396, %s1385
        $region52: #{tpu_custom_call.1} parent=47 // pred_fallthru
          _
      $region48: #{tpu_custom_call.1} parent=5 // pred_fallthru
        _
      %p1402 = scmp.le.s32.totalorder 2, %s16
      // Predicated region
      $region53: #{tpu_custom_call.1} parent=5 // pred_check
        %p1403 = pneg %p1402
      $region54: #{tpu_custom_call.1} parent=5 // pred_check_branch
        %1405 = sbr.rel (%p1403) target = $region56
      $region55: #{tpu_custom_call.1} parent=5 // pred_region
        %s1406 = ssub.s32 %s16, 2
        // Predicated region
        $region57: #{tpu_custom_call.1} parent=55 // pred_check
          %p1407 = pneg %p197
        $region58: #{tpu_custom_call.1} parent=55 // pred_check_branch
          %1409 = sbr.rel (%p1407) target = $region60
        $region59: #{tpu_custom_call.1} parent=55 // pred_region
          %s1410 = sand.u32 %s182, 1
          %s1411 = scalar_lea.sflag [#allocation3], %s1410
          %s1412 = sand.u32 %s182, 1
          %s1413 = smul.addr %s1412, 4
          %s1414 = scalar_lea.vmem [#allocation2], %s1413
          %1415 = dma.done %s1411, 64
        $region60: #{tpu_custom_call.1} parent=55 // pred_fallthru
          _
      $region56: #{tpu_custom_call.1} parent=5 // pred_fallthru
        _
    $region6: #{tpu_custom_call.1} parent=1 // loop_footer
      %s20 = sadd.s32 1, %s16
    $region7: #{tpu_custom_call.1} parent=1 // loop_footer_branch
      %15 = sbr.rel target = $region3
    $region8: #{tpu_custom_call.1} parent=1 // loop_exit
      _
    %1416 = vsyncpa [#allocation3], 1
    %s1417 = scalar_lea.sflag [#allocation3], 1
    %1418 = vsyncpa %s1417, 1

</llo_original>
